<compile_context>
chip_gen: v7x
topology: tpu7x:2x2x1
jax: 0.10.0
libtpu: 0.0.40
codegen_flags: <defaults>
</compile_context>

<pallas_src>
import numpy as np
import jax
import jax.numpy as jnp
from jax.experimental import pallas as pl
from jax.experimental.pallas import tpu as pltpu


def _kilonerf_kernel(x_ref, cond_ref,
                     wa_ref, whid_ref, wdc_ref, we_ref,
                     bhid_ref, be_ref,
                     out_ref):
    """One (module m, point-block i) step.

    Shapes seen by the kernel (leading module dim squeezed away):
      x_ref    : (in_d , bn)      cond_ref : (dir_d, bn)
      wa_ref   : (w, in_d)        whid_ref : (3, w, w)   [Wb, Wc, Wd_x]
      wdc_ref  : (w, dir_d)       we_ref   : (3, w)
      bhid_ref : (w, 4)  columns = [ba, bb, bc, bd]
      be_ref   : (3, 1)
      out_ref  : (4, bn)  rows 0..2 = rgb, row 3 = sigma
    """
    f32 = jnp.float32
    x = x_ref[...]          # (in_d , bn)
    cond = cond_ref[...]    # (dir_d, bn)

    # h = relu(a(x))
    h = jnp.dot(wa_ref[...], x, preferred_element_type=f32) + bhid_ref[:, 0:1]
    h = jnp.maximum(h, 0.0)
    # h = relu(b(h))
    h = jnp.dot(whid_ref[0], h, preferred_element_type=f32) + bhid_ref[:, 1:2]
    h = jnp.maximum(h, 0.0)
    # h = c(h)   (no activation)
    h = jnp.dot(whid_ref[1], h, preferred_element_type=f32) + bhid_ref[:, 2:3]

    # sigma = relu(h[:1])   (computed from pre-concat h, matching torch)
    sigma = jnp.maximum(h[0:1, :], 0.0)

    # g = relu(d(cat(h, cond))) == relu(Wd_x @ h + Wd_dir @ cond + bd)
    g = (jnp.dot(whid_ref[2], h, preferred_element_type=f32)
         + jnp.dot(wdc_ref[...], cond, preferred_element_type=f32)
         + bhid_ref[:, 3:4])
    g = jnp.maximum(g, 0.0)

    # rgb = sigmoid(e(g))
    rgb = jax.nn.sigmoid(
        jnp.dot(we_ref[...], g, preferred_element_type=f32) + be_ref[...])

    # Lane-dense stores; no lane concat needed.
    out_ref[0:3, :] = rgb.astype(out_ref.dtype)
    out_ref[3:4, :] = sigma.astype(out_ref.dtype)


def kilonerf_forward(x, cond, packed, *, block_n=1024):
    """Batched KiloNeRF forward.

    x     : (M, N, in_d)   cond : (M, N, dir_d)
    packed: dict from pack_params() (leading module axis M on every array)
    returns (M, N, 4)  (rgb, sigma)
    """
    M, N, in_d = x.shape
    dir_d = cond.shape[-1]
    w = packed["wa"].shape[1]

    block_n = min(block_n, N)
    assert block_n % 128 == 0, "block_n must be a multiple of 128"
    assert N % block_n == 0, "N must be a multiple of block_n"

    # Layout plumbing only (outside the kernel): points on the lane axis.
    xt = jnp.transpose(x, (0, 2, 1))      # (M, in_d , N)
    ct = jnp.transpose(cond, (0, 2, 1))   # (M, dir_d, N)

    grid = (M, N // block_n)              # module axis outer, point blocks inner

    def per_module(shape):
        nd = len(shape)
        return pl.BlockSpec((None,) + shape,
                            lambda m, i, _nd=nd: (m,) + (0,) * _nd)

    in_specs = [
        pl.BlockSpec((None, in_d, block_n), lambda m, i: (m, 0, i)),    # x
        pl.BlockSpec((None, dir_d, block_n), lambda m, i: (m, 0, i)),   # cond
        per_module((w, in_d)),       # wa
        per_module((3, w, w)),       # w_hid  = [Wb, Wc, Wd_x]
        per_module((w, dir_d)),      # wdc    = Wd_dir
        per_module((3, w)),          # we
        per_module((w, 4)),          # b_hid  = [ba, bb, bc, bd]
        per_module((3, 1)),          # be
    ]
    out_spec = pl.BlockSpec((None, 4, block_n), lambda m, i: (m, 0, i))

    out_t = pl.pallas_call(
        _kilonerf_kernel,
        out_shape=jax.ShapeDtypeStruct((M, 4, N), jnp.float32),
        grid_spec=pltpu.PrefetchScalarGridSpec(
            num_scalar_prefetch=0,
            grid=grid,
            in_specs=in_specs,
            out_specs=out_spec,
        ),
        compiler_params=pltpu.CompilerParams(
            dimension_semantics=("parallel", "parallel")),
    )(xt, ct,
      packed["wa"], packed["w_hid"], packed["wdc"], packed["we"],
      packed["b_hid"], packed["be"])

    return jnp.transpose(out_t, (0, 2, 1))   # (M, N, 4)


def nerf_module_forward(x, cond, packed_single, *, block_n=1024):
    """Single NeRFModule forward (original torch module semantics).

    x: (N, in_d), cond: (N, dir_d) -> (N, 4).
    """
    packed = jax.tree_util.tree_map(lambda a: a[None], packed_single)
    return kilonerf_forward(x[None], cond[None], packed, block_n=block_n)[0]


# ----------------------------- parameters ---------------------------------

def init_torch_params(key, M, in_d, dir_d, w):
    """torch.nn.Linear-style init, stacked over M modules.

    Weights: (M, out_features, in_features); biases: (M, out_features).
    """
    def linear(k, fan_in, fan_out):
        kw, kb = jax.random.split(k)
        bound = 1.0 / np.sqrt(fan_in)
        W = jax.random.uniform(kw, (M, fan_out, fan_in), jnp.float32,
                               -bound, bound)
        b = jax.random.uniform(kb, (M, fan_out), jnp.float32, -bound, bound)
        return W, b

    ka, kb, kc, kd, ke = jax.random.split(key, 5)
    Wa, ba = linear(ka, in_d, w)
    Wb, bb = linear(kb, w, w)
    Wc, bc = linear(kc, w, w)
    Wd, bd = linear(kd, w + dir_d, w)
    We, be = linear(ke, w, 3)
    return dict(Wa=Wa, ba=ba, Wb=Wb, bb=bb, Wc=Wc, bc=bc,
                Wd=Wd, bd=bd, We=We, be=be)


def pack_params(tp, w, dtype=jnp.float32):
    """Pack torch-layout params into the consolidated kernel slabs.

    (Splits Wd into its h-part / cond-part once, here, not per call.
     Pass dtype=jnp.bfloat16 for bf16 weights on v6e/v7x; f32 accumulation
     is preserved via preferred_element_type in the kernel.)
    """
    w_hid = jnp.stack([tp["Wb"], tp["Wc"], tp["Wd"][..., :w]], axis=1)
    b_hid = jnp.stack([tp["ba"], tp["bb"], tp["bc"], tp["bd"]], axis=-1)
    return dict(
        wa=tp["Wa"].astype(dtype),            # (M, w, in_d)
        w_hid=w_hid.astype(dtype),            # (M, 3, w, w)
        wdc=tp["Wd"][..., w:].astype(dtype),  # (M, w, dir_d)
        we=tp["We"].astype(dtype),            # (M, 3, w)
        b_hid=b_hid.astype(jnp.float32),      # (M, w, 4)
        be=tp["be"][..., None].astype(jnp.float32),  # (M, 3, 1)
    )


# ----------------------------- reference -----------------------------------

def nerf_reference(x, cond, tp):
    """Pure-JAX port of NeRFModule.forward, vmapped over the module axis."""
    def single(xm, cm, Wa, ba, Wb, bb, Wc, bc, Wd, bd, We, be):
        h = jax.nn.relu(xm @ Wa.T + ba)
        h = jax.nn.relu(h @ Wb.T + bb)
        h = h @ Wc.T + bc
        sigma = jax.nn.relu(h[..., :1])
        h = jnp.concatenate([h, cm], -1)
        h = jax.nn.relu(h @ Wd.T + bd)
        rgb = jax.nn.sigmoid(h @ We.T + be)
        return jnp.concatenate([rgb, sigma], -1)

    return jax.vmap(single)(x, cond,
                            tp["Wa"], tp["ba"], tp["Wb"], tp["bb"],
                            tp["Wc"], tp["bc"], tp["Wd"], tp["bd"],
                            tp["We"], tp["be"])


# ------------------------------- main ---------------------------------------

if __name__ == "__main__":
    in_d, dir_d, w = 32, 16, 32     # small NeRF module sizes
    M = 4                           # number of KiloNeRF modules in one call
    N = 2048                        # query points per module
    block_n = 1024                  # points per grid step (lane axis)

    key = jax.random.PRNGKey(0)
    kp, kx, kc = jax.random.split(key, 3)
    torch_params = init_torch_params(kp, M, in_d, dir_d, w)
    packed = pack_params(torch_params, w)

    x = jax.random.normal(kx, (M, N, in_d), jnp.float32)
    cond = jax.random.normal(kc, (M, N, dir_d), jnp.float32)

    # Batched multi-module forward.
    out = kilonerf_forward(x, cond, packed, block_n=block_n)
    out = jax.block_until_ready(out)
    ref = nerf_reference(x, cond, torch_params)
    assert out.shape == (M, N, 4)
    assert jnp.allclose(out, ref, atol=1e-4, rtol=1e-4), "mismatch vs reference"

    # Single-module path (exact original NeRFModule.forward semantics).
    packed1 = jax.tree_util.tree_map(lambda a: a[0], packed)
    out1 = nerf_module_forward(x[0], cond[0], packed1, block_n=512)
    out1 = jax.block_until_ready(out1)
    assert out1.shape == (N, 4)
    assert jnp.allclose(out1, ref[0], atol=1e-4, rtol=1e-4), "single-module mismatch"

    print("KERNEL_OK")
</pallas_src>

<mosaic_0001>
module attributes {stable_mosaic.version = 11 : i64} {
  func.func @_kilonerf_kernel(%arg0: i32, %arg1: i32, %arg2: memref<1x32x1024xf32, #tpu.memory_space<vmem>>, %arg3: memref<1x16x1024xf32, #tpu.memory_space<vmem>>, %arg4: memref<1x32x32xf32, #tpu.memory_space<vmem>>, %arg5: memref<1x3x32x32xf32, #tpu.memory_space<vmem>>, %arg6: memref<1x32x16xf32, #tpu.memory_space<vmem>>, %arg7: memref<1x3x32xf32, #tpu.memory_space<vmem>>, %arg8: memref<1x32x4xf32, #tpu.memory_space<vmem>>, %arg9: memref<1x3x1xf32, #tpu.memory_space<vmem>>, %arg10: memref<1x4x1024xf32, #tpu.memory_space<vmem>>) attributes {dimension_semantics = [#tpu.dimension_semantics<parallel>, #tpu.dimension_semantics<parallel>], iteration_bounds = array<i64: 4, 2>, scalar_prefetch = 0 : i64, scratch_operands = 0 : i64, tpu.core_type = #tpu.core_type<tc>, window_params = [{transform_indices = @transform_0, window_bounds = array<i64: 1, 32, 1024>}, {transform_indices = @transform_1, window_bounds = array<i64: 1, 16, 1024>}, {transform_indices = @transform_2, window_bounds = array<i64: 1, 32, 32>}, {transform_indices = @transform_3, window_bounds = array<i64: 1, 3, 32, 32>}, {transform_indices = @transform_4, window_bounds = array<i64: 1, 32, 16>}, {transform_indices = @transform_5, window_bounds = array<i64: 1, 3, 32>}, {transform_indices = @transform_6, window_bounds = array<i64: 1, 32, 4>}, {transform_indices = @transform_7, window_bounds = array<i64: 1, 3, 1>}, {transform_indices = @transform_8, window_bounds = array<i64: 1, 4, 1024>}]} {
    %c0 = arith.constant 0 : index
    %c0_0 = arith.constant 0 : index
    %c0_1 = arith.constant 0 : index
    %0 = vector.load %arg2[%c0, %c0_0, %c0_1] : memref<1x32x1024xf32, #tpu.memory_space<vmem>>, vector<1x32x1024xf32>
    %1 = vector.shape_cast %0 : vector<1x32x1024xf32> to vector<32x1024xf32>
    %c0_2 = arith.constant 0 : index
    %c0_3 = arith.constant 0 : index
    %c0_4 = arith.constant 0 : index
    %2 = vector.load %arg3[%c0_2, %c0_3, %c0_4] : memref<1x16x1024xf32, #tpu.memory_space<vmem>>, vector<1x16x1024xf32>
    %3 = vector.shape_cast %2 : vector<1x16x1024xf32> to vector<16x1024xf32>
    %c0_5 = arith.constant 0 : index
    %c0_6 = arith.constant 0 : index
    %c0_7 = arith.constant 0 : index
    %4 = vector.load %arg4[%c0_5, %c0_6, %c0_7] : memref<1x32x32xf32, #tpu.memory_space<vmem>>, vector<1x32x32xf32>
    %5 = vector.shape_cast %4 : vector<1x32x32xf32> to vector<32x32xf32>
    %cst = arith.constant dense<0.000000e+00> : vector<32x1024xf32>
    %6 = tpu.matmul %5, %1, %cst {dimension_numbers = #tpu.dot_dimension_numbers<[1], [0], [0], [1], [0, 0, 1, 1], [], []>} : vector<32x32xf32>, vector<32x1024xf32>, vector<32x1024xf32> -> vector<32x1024xf32>
    %c0_8 = arith.constant 0 : index
    %c0_9 = arith.constant 0 : index
    %c0_10 = arith.constant 0 : index
    %7 = vector.load %arg8[%c0_8, %c0_9, %c0_10] : memref<1x32x4xf32, #tpu.memory_space<vmem>>, vector<1x32x1xf32>
    %8 = vector.shape_cast %7 : vector<1x32x1xf32> to vector<32x1xf32>
    %9 = vector.broadcast %8 : vector<32x1xf32> to vector<32x1024xf32>
    %10 = arith.addf %6, %9 : vector<32x1024xf32>
    %cst_11 = arith.constant 0.000000e+00 : f32
    %11 = vector.broadcast %cst_11 : f32 to vector<32x1024xf32>
    %12 = arith.maximumf %10, %11 : vector<32x1024xf32>
    %c0_12 = arith.constant 0 : index
    %c0_13 = arith.constant 0 : index
    %c0_14 = arith.constant 0 : index
    %c0_15 = arith.constant 0 : index
    %13 = vector.load %arg5[%c0_12, %c0_13, %c0_14, %c0_15] : memref<1x3x32x32xf32, #tpu.memory_space<vmem>>, vector<1x1x32x32xf32>
    %14 = vector.shape_cast %13 : vector<1x1x32x32xf32> to vector<32x32xf32>
    %cst_16 = arith.constant dense<0.000000e+00> : vector<32x1024xf32>
    %15 = tpu.matmul %14, %12, %cst_16 {dimension_numbers = #tpu.dot_dimension_numbers<[1], [0], [0], [1], [0, 0, 1, 1], [], []>} : vector<32x32xf32>, vector<32x1024xf32>, vector<32x1024xf32> -> vector<32x1024xf32>
    %c0_17 = arith.constant 0 : index
    %c0_18 = arith.constant 0 : index
    %c1 = arith.constant 1 : index
    %16 = vector.load %arg8[%c0_17, %c0_18, %c1] : memref<1x32x4xf32, #tpu.memory_space<vmem>>, vector<1x32x1xf32>
    %17 = vector.shape_cast %16 : vector<1x32x1xf32> to vector<32x1xf32>
    %18 = vector.broadcast %17 : vector<32x1xf32> to vector<32x1024xf32>
    %19 = arith.addf %15, %18 : vector<32x1024xf32>
    %cst_19 = arith.constant 0.000000e+00 : f32
    %20 = vector.broadcast %cst_19 : f32 to vector<32x1024xf32>
    %21 = arith.maximumf %19, %20 : vector<32x1024xf32>
    %c0_20 = arith.constant 0 : index
    %c1_21 = arith.constant 1 : index
    %c0_22 = arith.constant 0 : index
    %c0_23 = arith.constant 0 : index
    %22 = vector.load %arg5[%c0_20, %c1_21, %c0_22, %c0_23] : memref<1x3x32x32xf32, #tpu.memory_space<vmem>>, vector<1x1x32x32xf32>
    %23 = vector.shape_cast %22 : vector<1x1x32x32xf32> to vector<32x32xf32>
    %cst_24 = arith.constant dense<0.000000e+00> : vector<32x1024xf32>
    %24 = tpu.matmul %23, %21, %cst_24 {dimension_numbers = #tpu.dot_dimension_numbers<[1], [0], [0], [1], [0, 0, 1, 1], [], []>} : vector<32x32xf32>, vector<32x1024xf32>, vector<32x1024xf32> -> vector<32x1024xf32>
    %c0_25 = arith.constant 0 : index
    %c0_26 = arith.constant 0 : index
    %c2 = arith.constant 2 : index
    %25 = vector.load %arg8[%c0_25, %c0_26, %c2] : memref<1x32x4xf32, #tpu.memory_space<vmem>>, vector<1x32x1xf32>
    %26 = vector.shape_cast %25 : vector<1x32x1xf32> to vector<32x1xf32>
    %27 = vector.broadcast %26 : vector<32x1xf32> to vector<32x1024xf32>
    %28 = arith.addf %24, %27 : vector<32x1024xf32>
    %29 = vector.extract_strided_slice %28 {offsets = [0, 0], sizes = [1, 1024], strides = [1, 1]} : vector<32x1024xf32> to vector<1x1024xf32>
    %cst_27 = arith.constant 0.000000e+00 : f32
    %30 = vector.broadcast %cst_27 : f32 to vector<1x1024xf32>
    %31 = arith.maximumf %29, %30 : vector<1x1024xf32>
    %c0_28 = arith.constant 0 : index
    %c2_29 = arith.constant 2 : index
    %c0_30 = arith.constant 0 : index
    %c0_31 = arith.constant 0 : index
    %32 = vector.load %arg5[%c0_28, %c2_29, %c0_30, %c0_31] : memref<1x3x32x32xf32, #tpu.memory_space<vmem>>, vector<1x1x32x32xf32>
    %33 = vector.shape_cast %32 : vector<1x1x32x32xf32> to vector<32x32xf32>
    %cst_32 = arith.constant dense<0.000000e+00> : vector<32x1024xf32>
    %34 = tpu.matmul %33, %28, %cst_32 {dimension_numbers = #tpu.dot_dimension_numbers<[1], [0], [0], [1], [0, 0, 1, 1], [], []>} : vector<32x32xf32>, vector<32x1024xf32>, vector<32x1024xf32> -> vector<32x1024xf32>
    %c0_33 = arith.constant 0 : index
    %c0_34 = arith.constant 0 : index
    %c0_35 = arith.constant 0 : index
    %35 = vector.load %arg6[%c0_33, %c0_34, %c0_35] : memref<1x32x16xf32, #tpu.memory_space<vmem>>, vector<1x32x16xf32>
    %36 = vector.shape_cast %35 : vector<1x32x16xf32> to vector<32x16xf32>
    %cst_36 = arith.constant dense<0.000000e+00> : vector<32x1024xf32>
    %37 = tpu.matmul %36, %3, %cst_36 {dimension_numbers = #tpu.dot_dimension_numbers<[1], [0], [0], [1], [0, 0, 1, 1], [], []>} : vector<32x16xf32>, vector<16x1024xf32>, vector<32x1024xf32> -> vector<32x1024xf32>
    %38 = arith.addf %34, %37 : vector<32x1024xf32>
    %c0_37 = arith.constant 0 : index
    %c0_38 = arith.constant 0 : index
    %c3 = arith.constant 3 : index
    %39 = vector.load %arg8[%c0_37, %c0_38, %c3] : memref<1x32x4xf32, #tpu.memory_space<vmem>>, vector<1x32x1xf32>
    %40 = vector.shape_cast %39 : vector<1x32x1xf32> to vector<32x1xf32>
    %41 = vector.broadcast %40 : vector<32x1xf32> to vector<32x1024xf32>
    %42 = arith.addf %38, %41 : vector<32x1024xf32>
    %cst_39 = arith.constant 0.000000e+00 : f32
    %43 = vector.broadcast %cst_39 : f32 to vector<32x1024xf32>
    %44 = arith.maximumf %42, %43 : vector<32x1024xf32>
    %c0_40 = arith.constant 0 : index
    %c0_41 = arith.constant 0 : index
    %c0_42 = arith.constant 0 : index
    %45 = vector.load %arg7[%c0_40, %c0_41, %c0_42] : memref<1x3x32xf32, #tpu.memory_space<vmem>>, vector<1x3x32xf32>
    %46 = vector.shape_cast %45 : vector<1x3x32xf32> to vector<3x32xf32>
    %cst_43 = arith.constant dense<0.000000e+00> : vector<3x1024xf32>
    %47 = tpu.matmul %46, %44, %cst_43 {dimension_numbers = #tpu.dot_dimension_numbers<[1], [0], [0], [1], [0, 0, 1, 1], [], []>} : vector<3x32xf32>, vector<32x1024xf32>, vector<3x1024xf32> -> vector<3x1024xf32>
    %c0_44 = arith.constant 0 : index
    %c0_45 = arith.constant 0 : index
    %c0_46 = arith.constant 0 : index
    %48 = vector.load %arg9[%c0_44, %c0_45, %c0_46] : memref<1x3x1xf32, #tpu.memory_space<vmem>>, vector<1x3x1xf32>
    %49 = vector.shape_cast %48 : vector<1x3x1xf32> to vector<3x1xf32>
    %50 = vector.broadcast %49 : vector<3x1xf32> to vector<3x1024xf32>
    %51 = arith.addf %47, %50 : vector<3x1024xf32>
    %52 = arith.negf %51 : vector<3x1024xf32>
    %53 = math.exp %52 : vector<3x1024xf32>
    %cst_47 = arith.constant 1.000000e+00 : f32
    %54 = vector.broadcast %cst_47 : f32 to vector<3x1024xf32>
    %55 = arith.addf %54, %53 : vector<3x1024xf32>
    %56 = arith.divf %54, %55 : vector<3x1024xf32>
    %c0_48 = arith.constant 0 : index
    %c0_49 = arith.constant 0 : index
    %c0_50 = arith.constant 0 : index
    %57 = vector.load %arg10[%c0_48, %c0_49, %c0_50] : memref<1x4x1024xf32, #tpu.memory_space<vmem>>, vector<1x3x1024xf32>
    %58 = vector.shape_cast %57 : vector<1x3x1024xf32> to vector<3x1024xf32>
    %59 = vector.shape_cast %56 : vector<3x1024xf32> to vector<1x3x1024xf32>
    tpu.vector_store %arg10[%c0_48, %c0_49, %c0_50], %59 {strides = array<i32>} : memref<1x4x1024xf32, #tpu.memory_space<vmem>>, vector<1x3x1024xf32>,
    %c0_51 = arith.constant 0 : index
    %c3_52 = arith.constant 3 : index
    %c0_53 = arith.constant 0 : index
    %60 = vector.load %arg10[%c0_51, %c3_52, %c0_53] : memref<1x4x1024xf32, #tpu.memory_space<vmem>>, vector<1x1x1024xf32>
    %61 = vector.shape_cast %60 : vector<1x1x1024xf32> to vector<1x1024xf32>
    %62 = vector.shape_cast %31 : vector<1x1024xf32> to vector<1x1x1024xf32>
    tpu.vector_store %arg10[%c0_51, %c3_52, %c0_53], %62 {strides = array<i32>} : memref<1x4x1024xf32, #tpu.memory_space<vmem>>, vector<1x1x1024xf32>,
    return
  }
  func.func @transform_0(%arg0: i32, %arg1: i32) -> (i32, i32, i32) {
    %c0_i32 = arith.constant 0 : i32
    %c0_i32_0 = arith.constant 0 : i32
    return %arg0, %c0_i32, %arg1 : i32, i32, i32
  }
  func.func @transform_1(%arg0: i32, %arg1: i32) -> (i32, i32, i32) {
    %c0_i32 = arith.constant 0 : i32
    %c0_i32_0 = arith.constant 0 : i32
    return %arg0, %c0_i32, %arg1 : i32, i32, i32
  }
  func.func @transform_2(%arg0: i32, %arg1: i32) -> (i32, i32, i32) {
    %c0_i32 = arith.constant 0 : i32
    %c0_i32_0 = arith.constant 0 : i32
    %c0_i32_1 = arith.constant 0 : i32
    return %arg0, %c0_i32, %c0_i32_0 : i32, i32, i32
  }
  func.func @transform_3(%arg0: i32, %arg1: i32) -> (i32, i32, i32, i32) {
    %c0_i32 = arith.constant 0 : i32
    %c0_i32_0 = arith.constant 0 : i32
    %c0_i32_1 = arith.constant 0 : i32
    %c0_i32_2 = arith.constant 0 : i32
    return %arg0, %c0_i32, %c0_i32_0, %c0_i32_1 : i32, i32, i32, i32
  }
  func.func @transform_4(%arg0: i32, %arg1: i32) -> (i32, i32, i32) {
    %c0_i32 = arith.constant 0 : i32
    %c0_i32_0 = arith.constant 0 : i32
    %c0_i32_1 = arith.constant 0 : i32
    return %arg0, %c0_i32, %c0_i32_0 : i32, i32, i32
  }
  func.func @transform_5(%arg0: i32, %arg1: i32) -> (i32, i32, i32) {
    %c0_i32 = arith.constant 0 : i32
    %c0_i32_0 = arith.constant 0 : i32
    %c0_i32_1 = arith.constant 0 : i32
    return %arg0, %c0_i32, %c0_i32_0 : i32, i32, i32
  }
  func.func @transform_6(%arg0: i32, %arg1: i32) -> (i32, i32, i32) {
    %c0_i32 = arith.constant 0 : i32
    %c0_i32_0 = arith.constant 0 : i32
    %c0_i32_1 = arith.constant 0 : i32
    return %arg0, %c0_i32, %c0_i32_0 : i32, i32, i32
  }
  func.func @transform_7(%arg0: i32, %arg1: i32) -> (i32, i32, i32) {
    %c0_i32 = arith.constant 0 : i32
    %c0_i32_0 = arith.constant 0 : i32
    %c0_i32_1 = arith.constant 0 : i32
    return %arg0, %c0_i32, %c0_i32_0 : i32, i32, i32
  }
  func.func @transform_8(%arg0: i32, %arg1: i32) -> (i32, i32, i32) {
    %c0_i32 = arith.constant 0 : i32
    %c0_i32_0 = arith.constant 0 : i32
    return %arg0, %c0_i32, %arg1 : i32, i32, i32
  }
}

</mosaic_0001>

<llo_original>
// kernel: tpu_custom_call.1
$region0: #{tpu_custom_call.1}
  #allocation0 [shape = 'u32[]', space=smem, size = 0x4, offset = 0x4, fixed_abs, tag = 'smem constant byte address 0x4 - core index']
  #allocation1 [shape = 'u32[144,128]{1,0:T(1,128)}', space=vmem, size = 0x12000, scoped, tag = 'internal scratch']
  %s0 = inlined_call_operand.hbm [shape: f32[4,32,2048], index: 0, kind: input, shape index: {}]
  %s1 = inlined_call_operand.hbm [shape: f32[4,16,2048], index: 1, kind: input, shape index: {}]
  %s2 = inlined_call_operand.hbm [shape: f32[4,32,32], index: 2, kind: input, shape index: {}]
  %s3 = inlined_call_operand.vmem [shape: f32[4,3,32,32], index: 3, kind: input, shape index: {}]
  %s4 = inlined_call_operand.vmem [shape: f32[4,32,16], index: 4, kind: input, shape index: {}]
  %s5 = inlined_call_operand.vmem [shape: f32[4,3,32], index: 5, kind: input, shape index: {}]
  %s6 = inlined_call_operand.vmem [shape: f32[4,32,4], index: 6, kind: input, shape index: {}]
  %s7 = inlined_call_operand.vmem [shape: f32[4,3,1], index: 7, kind: input, shape index: {}]
  %s8 = inlined_call_operand.hbm [shape: f32[4,4,2048], index: 8, kind: output, shape index: {}]
  %s9 = sld [smem:[#allocation0]]
  $region77: #{tpu_custom_call.1} parent=0
    _
  %s11 = ssub.s32 1, %s9
  %s12 = scalar_select 0, %s11, %s9
  $region1: #{tpu_custom_call.1} parent=0
    #allocation2 [shape = 'u8[262144]{0}', space=vmem, size = 0x40000, scoped, tag = 'input window, operand 0']
    #allocation3 [shape = 's32[2]{0}', space=sflag, size = 0x8, scoped, tag = 'scoped memory for tpu_custom_call.1']
    #allocation4 [shape = 's32[2]{0}', space=sflag, size = 0x8, scoped, tag = 'scoped memory for tpu_custom_call.1']
    #allocation5 [shape = 'u8[131072]{0}', space=vmem, size = 0x20000, scoped, tag = 'input window, operand 1']
    #allocation6 [shape = 's32[2]{0}', space=sflag, size = 0x8, scoped, tag = 'scoped memory for tpu_custom_call.1']
    #allocation7 [shape = 'u8[32768]{0}', space=vmem, size = 0x8000, scoped, tag = 'input window, operand 2']
    #allocation8 [shape = 'u8[32768]{0}', space=vmem, size = 0x8000, scoped, tag = 'output window, operand 0']
    %13 = vsyncpa [#allocation3], 0
    %s14 = scalar_lea.sflag [#allocation3], 1
    %15 = vsyncpa %s14, 0
    %16 = vsyncpa [#allocation6], 0
    %s17 = scalar_lea.sflag [#allocation6], 1
    %18 = vsyncpa %s17, 0
    %19 = vsyncpa [#allocation4], 0
    %s20 = scalar_lea.sflag [#allocation4], 1
    %21 = vsyncpa %s20, 0
    loop: start=0, step=1, limit=10
    $region2: #{tpu_custom_call.1} parent=1 // loop_pre_header
      _
    $region3: #{tpu_custom_call.1} parent=1 // loop_header
      %s23 = sphi 0, %s27
      %p24 = scmp.ge.s32.totalorder %s23, 10
      %s30 = sphi 0, %s42
      %s31 = sphi 0, %s38
      %s32 = sphi 0, %s30
      %s33 = sphi 0, %s31
      %s34 = sphi 0, %s32
      %s35 = sphi 0, %s33
      %s47 = sphi 0, %s49
      %s50 = sphi 0, %s47
      %s51 = sphi 0, %s50
      %s67 = sphi 0, %s51
      %s75 = sphi 0, %s77
      %s78 = sphi 0, %s75
      %s79 = sphi 0, %s78
      %s95 = sphi 0, %s79
      %s101 = sphi 0, %s103
      %s104 = sphi 0, %s101
      %s105 = sphi 0, %s104
      %s121 = sphi 0, %s105
      %s127 = sphi 0, %s129
      %s130 = sphi 0, %s127
      %s131 = sphi 0, %s130
      %s147 = sphi 0, %s131
      %s153 = sphi 0, %s155
      %s156 = sphi 0, %s153
      %s157 = sphi 0, %s156
      %s173 = sphi 0, %s157
      %s179 = sphi 0, %s181
      %s182 = sphi 0, %s179
      %s183 = sphi 0, %s182
      %s199 = sphi 0, %s183
      %s205 = sphi 0, %s207
      %s208 = sphi 0, %s205
      %s209 = sphi 0, %s208
      %s225 = sphi 0, %s209
      %s231 = sphi 0, %s233
      %s234 = sphi 0, %s231
      %s235 = sphi 0, %s234
      %s251 = sphi 0, %s235
      %s259 = sphi 0, %s261
      %s262 = sphi 0, %s259
      %s263 = sphi 0, %s262
      %s279 = sphi 0, %s263
    $region4: #{tpu_custom_call.1} parent=1 // loop_header_branch
      %26 = sbr.rel (%p24) target = $region8
    $region5: #{tpu_custom_call.1} parent=1 // loop_body
      %s28 = ssub.s32 %s23, 1
      %s29 = ssub.s32 %s23, 2
      %s36 = sadd.s32 1, %s31
      %p37 = scmp.ge.s32.totalorder %s36, 2
      %s38 = scalar_select %p37, 0, %s36
      %s39 = sadd.s32 1, %s30
      %s40 = scalar_select %p37, %s39, %s30
      %p41 = scmp.ge.s32.totalorder %s40, 4
      %s42 = scalar_select %p41, 0, %s40
      %s43 = ssub.s32 %s30, %s42
      %s44 = ssub.s32 %s31, %s38
      %s45 = sor.u32 %s43, %s44
      %p46 = scmp.eq.s32.totalorder %s45, 0
      %s48 = sadd.s32 %s47, 1
      %s49 = scalar_select %p46, %s47, %s48
      %p52 = pneg %p46
      %p53 = scmp.eq.s32.totalorder %s23, 7
      %p54 = por %p52, %p53
      %p55 = scmp.ne.s32.totalorder %s47, %s50
      %p56 = scmp.eq.s32.totalorder %s23, 0
      %p57 = por %p55, %p56
      %p58 = scmp.ne.s32.totalorder %s47, %s50
      %p59 = scmp.eq.s32.totalorder %s28, 7
      %p60 = por %p58, %p59
      %p61 = scmp.ne.s32.totalorder %s50, %s51
      %p62 = scmp.eq.s32.totalorder %s28, 0
      %p63 = por %p61, %p62
      %p64 = scmp.ne.s32.totalorder %s50, %s51
      %p65 = scmp.eq.s32.totalorder %s29, 7
      %p66 = por %p64, %p65
      %p68 = scmp.ne.s32.totalorder %s51, %s67
      %p69 = scmp.eq.s32.totalorder %s29, 0
      %p70 = por %p68, %p69
      %s71 = ssub.s32 %s30, %s42
      %s72 = ssub.s32 %s31, %s38
      %s73 = sor.u32 %s71, %s72
      %p74 = scmp.eq.s32.totalorder %s73, 0
      %s76 = sadd.s32 %s75, 1
      %s77 = scalar_select %p74, %s75, %s76
      %p80 = pneg %p74
      %p81 = scmp.eq.s32.totalorder %s23, 7
      %p82 = por %p80, %p81
      %p83 = scmp.ne.s32.totalorder %s75, %s78
      %p84 = scmp.eq.s32.totalorder %s23, 0
      %p85 = por %p83, %p84
      %p86 = scmp.ne.s32.totalorder %s75, %s78
      %p87 = scmp.eq.s32.totalorder %s28, 7
      %p88 = por %p86, %p87
      %p89 = scmp.ne.s32.totalorder %s78, %s79
      %p90 = scmp.eq.s32.totalorder %s28, 0
      %p91 = por %p89, %p90
      %p92 = scmp.ne.s32.totalorder %s78, %s79
      %p93 = scmp.eq.s32.totalorder %s29, 7
      %p94 = por %p92, %p93
      %p96 = scmp.ne.s32.totalorder %s79, %s95
      %p97 = scmp.eq.s32.totalorder %s29, 0
      %p98 = por %p96, %p97
      %s99 = ssub.s32 %s30, %s42
      %p100 = scmp.eq.s32.totalorder %s99, 0
      %s102 = sadd.s32 %s101, 1
      %s103 = scalar_select %p100, %s101, %s102
      %p106 = pneg %p100
      %p107 = scmp.eq.s32.totalorder %s23, 7
      %p108 = por %p106, %p107
      %p109 = scmp.ne.s32.totalorder %s101, %s104
      %p110 = scmp.eq.s32.totalorder %s23, 0
      %p111 = por %p109, %p110
      %p112 = scmp.ne.s32.totalorder %s101, %s104
      %p113 = scmp.eq.s32.totalorder %s28, 7
      %p114 = por %p112, %p113
      %p115 = scmp.ne.s32.totalorder %s104, %s105
      %p116 = scmp.eq.s32.totalorder %s28, 0
      %p117 = por %p115, %p116
      %p118 = scmp.ne.s32.totalorder %s104, %s105
      %p119 = scmp.eq.s32.totalorder %s29, 7
      %p120 = por %p118, %p119
      %p122 = scmp.ne.s32.totalorder %s105, %s121
      %p123 = scmp.eq.s32.totalorder %s29, 0
      %p124 = por %p122, %p123
      %s125 = ssub.s32 %s30, %s42
      %p126 = scmp.eq.s32.totalorder %s125, 0
      %s128 = sadd.s32 %s127, 1
      %s129 = scalar_select %p126, %s127, %s128
      %p132 = pneg %p126
      %p133 = scmp.eq.s32.totalorder %s23, 7
      %p134 = por %p132, %p133
      %p135 = scmp.ne.s32.totalorder %s127, %s130
      %p136 = scmp.eq.s32.totalorder %s23, 0
      %p137 = por %p135, %p136
      %p138 = scmp.ne.s32.totalorder %s127, %s130
      %p139 = scmp.eq.s32.totalorder %s28, 7
      %p140 = por %p138, %p139
      %p141 = scmp.ne.s32.totalorder %s130, %s131
      %p142 = scmp.eq.s32.totalorder %s28, 0
      %p143 = por %p141, %p142
      %p144 = scmp.ne.s32.totalorder %s130, %s131
      %p145 = scmp.eq.s32.totalorder %s29, 7
      %p146 = por %p144, %p145
      %p148 = scmp.ne.s32.totalorder %s131, %s147
      %p149 = scmp.eq.s32.totalorder %s29, 0
      %p150 = por %p148, %p149
      %s151 = ssub.s32 %s30, %s42
      %p152 = scmp.eq.s32.totalorder %s151, 0
      %s154 = sadd.s32 %s153, 1
      %s155 = scalar_select %p152, %s153, %s154
      %p158 = pneg %p152
      %p159 = scmp.eq.s32.totalorder %s23, 7
      %p160 = por %p158, %p159
      %p161 = scmp.ne.s32.totalorder %s153, %s156
      %p162 = scmp.eq.s32.totalorder %s23, 0
      %p163 = por %p161, %p162
      %p164 = scmp.ne.s32.totalorder %s153, %s156
      %p165 = scmp.eq.s32.totalorder %s28, 7
      %p166 = por %p164, %p165
      %p167 = scmp.ne.s32.totalorder %s156, %s157
      %p168 = scmp.eq.s32.totalorder %s28, 0
      %p169 = por %p167, %p168
      %p170 = scmp.ne.s32.totalorder %s156, %s157
      %p171 = scmp.eq.s32.totalorder %s29, 7
      %p172 = por %p170, %p171
      %p174 = scmp.ne.s32.totalorder %s157, %s173
      %p175 = scmp.eq.s32.totalorder %s29, 0
      %p176 = por %p174, %p175
      %s177 = ssub.s32 %s30, %s42
      %p178 = scmp.eq.s32.totalorder %s177, 0
      %s180 = sadd.s32 %s179, 1
      %s181 = scalar_select %p178, %s179, %s180
      %p184 = pneg %p178
      %p185 = scmp.eq.s32.totalorder %s23, 7
      %p186 = por %p184, %p185
      %p187 = scmp.ne.s32.totalorder %s179, %s182
      %p188 = scmp.eq.s32.totalorder %s23, 0
      %p189 = por %p187, %p188
      %p190 = scmp.ne.s32.totalorder %s179, %s182
      %p191 = scmp.eq.s32.totalorder %s28, 7
      %p192 = por %p190, %p191
      %p193 = scmp.ne.s32.totalorder %s182, %s183
      %p194 = scmp.eq.s32.totalorder %s28, 0
      %p195 = por %p193, %p194
      %p196 = scmp.ne.s32.totalorder %s182, %s183
      %p197 = scmp.eq.s32.totalorder %s29, 7
      %p198 = por %p196, %p197
      %p200 = scmp.ne.s32.totalorder %s183, %s199
      %p201 = scmp.eq.s32.totalorder %s29, 0
      %p202 = por %p200, %p201
      %s203 = ssub.s32 %s30, %s42
      %p204 = scmp.eq.s32.totalorder %s203, 0
      %s206 = sadd.s32 %s205, 1
      %s207 = scalar_select %p204, %s205, %s206
      %p210 = pneg %p204
      %p211 = scmp.eq.s32.totalorder %s23, 7
      %p212 = por %p210, %p211
      %p213 = scmp.ne.s32.totalorder %s205, %s208
      %p214 = scmp.eq.s32.totalorder %s23, 0
      %p215 = por %p213, %p214
      %p216 = scmp.ne.s32.totalorder %s205, %s208
      %p217 = scmp.eq.s32.totalorder %s28, 7
      %p218 = por %p216, %p217
      %p219 = scmp.ne.s32.totalorder %s208, %s209
      %p220 = scmp.eq.s32.totalorder %s28, 0
      %p221 = por %p219, %p220
      %p222 = scmp.ne.s32.totalorder %s208, %s209
      %p223 = scmp.eq.s32.totalorder %s29, 7
      %p224 = por %p222, %p223
      %p226 = scmp.ne.s32.totalorder %s209, %s225
      %p227 = scmp.eq.s32.totalorder %s29, 0
      %p228 = por %p226, %p227
      %s229 = ssub.s32 %s30, %s42
      %p230 = scmp.eq.s32.totalorder %s229, 0
      %s232 = sadd.s32 %s231, 1
      %s233 = scalar_select %p230, %s231, %s232
      %p236 = pneg %p230
      %p237 = scmp.eq.s32.totalorder %s23, 7
      %p238 = por %p236, %p237
      %p239 = scmp.ne.s32.totalorder %s231, %s234
      %p240 = scmp.eq.s32.totalorder %s23, 0
      %p241 = por %p239, %p240
      %p242 = scmp.ne.s32.totalorder %s231, %s234
      %p243 = scmp.eq.s32.totalorder %s28, 7
      %p244 = por %p242, %p243
      %p245 = scmp.ne.s32.totalorder %s234, %s235
      %p246 = scmp.eq.s32.totalorder %s28, 0
      %p247 = por %p245, %p246
      %p248 = scmp.ne.s32.totalorder %s234, %s235
      %p249 = scmp.eq.s32.totalorder %s29, 7
      %p250 = por %p248, %p249
      %p252 = scmp.ne.s32.totalorder %s235, %s251
      %p253 = scmp.eq.s32.totalorder %s29, 0
      %p254 = por %p252, %p253
      %s255 = ssub.s32 %s30, %s42
      %s256 = ssub.s32 %s31, %s38
      %s257 = sor.u32 %s255, %s256
      %p258 = scmp.eq.s32.totalorder %s257, 0
      %s260 = sadd.s32 %s259, 1
      %s261 = scalar_select %p258, %s259, %s260
      %p264 = pneg %p258
      %p265 = scmp.eq.s32.totalorder %s23, 7
      %p266 = por %p264, %p265
      %p267 = scmp.ne.s32.totalorder %s259, %s262
      %p268 = scmp.eq.s32.totalorder %s23, 0
      %p269 = por %p267, %p268
      %p270 = scmp.ne.s32.totalorder %s259, %s262
      %p271 = scmp.eq.s32.totalorder %s28, 7
      %p272 = por %p270, %p271
      %p273 = scmp.ne.s32.totalorder %s262, %s263
      %p274 = scmp.eq.s32.totalorder %s28, 0
      %p275 = por %p273, %p274
      %p276 = scmp.ne.s32.totalorder %s262, %s263
      %p277 = scmp.eq.s32.totalorder %s29, 7
      %p278 = por %p276, %p277
      %p280 = scmp.ne.s32.totalorder %s263, %s279
      %p281 = scmp.eq.s32.totalorder %s29, 0
      %p282 = por %p280, %p281
      %p283 = scmp.le.s32.totalorder 1, %s23
      %p284 = scmp.lt.s32.totalorder %s23, 9
      %p285 = pnand %p283, %p284
      %p286 = pneg %p285
      // Predicated region
      $region9: #{tpu_custom_call.1} parent=5 // pred_check
        _
      $region10: #{tpu_custom_call.1} parent=5 // pred_check_branch
        %288 = sbr.rel (%p285) target = $region12
      $region11: #{tpu_custom_call.1} parent=5 // pred_region
        %s289 = ssub.s32 %s23, 1
      $region12: #{tpu_custom_call.1} parent=5 // pred_fallthru
        _
      %p290 = scmp.lt.s32.totalorder %s23, 8
      // Predicated region
      $region13: #{tpu_custom_call.1} parent=5 // pred_check
        %p291 = pneg %p290
      $region14: #{tpu_custom_call.1} parent=5 // pred_check_branch
        %293 = sbr.rel (%p291) target = $region16
      $region15: #{tpu_custom_call.1} parent=5 // pred_region
        // Predicated region
        $region17: #{tpu_custom_call.1} parent=15 // pred_check
          %p294 = pneg %p57
        $region18: #{tpu_custom_call.1} parent=15 // pred_check_branch
          %296 = sbr.rel (%p294) target = $region20
        $region19: #{tpu_custom_call.1} parent=15 // pred_region
          %s297 = sand.u32 %s47, 1
          %s298 = scalar_lea.sflag [#allocation3], %s297
          %s299 = sand.u32 %s47, 1
          %s300 = smul.addr %s299, 256
          %s301 = scalar_lea.vmem [#allocation2], %s300
          %s302 = smul.u32 8, %s31
          %s304 = ssub.s32 4096, 4096
          %305 = vsyncadd %s298, %s304
          %s306 = smul.addr %s30, 64
          %s307 = sadd.s32 %s302, %s306
          %s308 = smul.addr %s307, 128
          %s309 = scalar_lea.hbm %s0, %s308
          %s310 = sshll.u32 %s301, 4
          %s311 = int_to_ptr.vmem [resolvable:$true] %s310
          %316 = dma.hbm_to_vmem [thread:$0]  %s309, 4096, %s311, %s298, 2048, 1024, 64
        $region20: #{tpu_custom_call.1} parent=15 // pred_fallthru
          _
        // Predicated region
        $region21: #{tpu_custom_call.1} parent=15 // pred_check
          %p317 = pneg %p85
        $region22: #{tpu_custom_call.1} parent=15 // pred_check_branch
          %319 = sbr.rel (%p317) target = $region24
        $region23: #{tpu_custom_call.1} parent=15 // pred_region
          %s320 = sand.u32 %s23, 1
          %s321 = scalar_lea.sflag [#allocation6], %s320
          %s322 = sand.u32 %s75, 1
          %s323 = smul.addr %s322, 128
          %s324 = scalar_lea.vmem [#allocation5], %s323
          %s325 = smul.u32 8, %s31
          %s327 = ssub.s32 2048, 2048
          %328 = vsyncadd %s321, %s327
          %s329 = smul.addr %s30, 32
          %s330 = sadd.s32 %s325, %s329
          %s331 = smul.addr %s330, 128
          %s332 = scalar_lea.hbm %s1, %s331
          %s333 = sshll.u32 %s324, 4
          %s334 = int_to_ptr.vmem [resolvable:$true] %s333
          %339 = dma.hbm_to_vmem [thread:$0]  %s332, 2048, %s334, %s321, 2048, 1024, 64
        $region24: #{tpu_custom_call.1} parent=15 // pred_fallthru
          _
        // Predicated region
        $region25: #{tpu_custom_call.1} parent=15 // pred_check
          %p340 = pneg %p111
        $region26: #{tpu_custom_call.1} parent=15 // pred_check_branch
          %342 = sbr.rel (%p340) target = $region28
        $region27: #{tpu_custom_call.1} parent=15 // pred_region
          %s343 = sand.u32 %s23, 1
          %s344 = scalar_lea.sflag [#allocation6], %s343
          %s345 = sand.u32 %s101, 1
          %s346 = smul.addr %s345, 32
          %s347 = scalar_lea.vmem [#allocation7], %s346
          %s349 = ssub.s32 512, 512
          %350 = vsyncadd %s344, %s349
          %s351 = smul.addr %s30, 4
          %s352 = smul.addr %s351, 128
          %s353 = scalar_lea.hbm %s2, %s352
          %s354 = sshll.u32 %s347, 4
          %s355 = int_to_ptr.vmem [resolvable:$true] %s354
          %360 = dma.hbm_to_vmem [thread:$0]  %s353, 512, %s355, %s344, 128, 128, 8
        $region28: #{tpu_custom_call.1} parent=15 // pred_fallthru
          _
        // Predicated region
        $region29: #{tpu_custom_call.1} parent=15 // pred_check
          %p361 = pneg %p137
        $region30: #{tpu_custom_call.1} parent=15 // pred_check_branch
          %363 = sbr.rel (%p361) target = $region32
        $region31: #{tpu_custom_call.1} parent=15 // pred_region
          %p364 = scmp.lt.s32.totalorder %s30, 3
          %s365 = scalar_select %p364, %s30, 3
          %s366 = smul.addr %s365, 12
          %s367 = smul.addr %s366, 8
          %s368 = scalar_lea.vmem %s3, %s367
        $region32: #{tpu_custom_call.1} parent=15 // pred_fallthru
          _
        // Predicated region
        $region33: #{tpu_custom_call.1} parent=15 // pred_check
          %p369 = pneg %p163
        $region34: #{tpu_custom_call.1} parent=15 // pred_check_branch
          %371 = sbr.rel (%p369) target = $region36
        $region35: #{tpu_custom_call.1} parent=15 // pred_region
          %p372 = scmp.lt.s32.totalorder %s30, 3
          %s373 = scalar_select %p372, %s30, 3
          %s374 = smul.addr %s373, 4
          %s375 = smul.addr %s374, 8
          %s376 = scalar_lea.vmem %s4, %s375
        $region36: #{tpu_custom_call.1} parent=15 // pred_fallthru
          _
        // Predicated region
        $region37: #{tpu_custom_call.1} parent=15 // pred_check
          %p377 = pneg %p189
        $region38: #{tpu_custom_call.1} parent=15 // pred_check_branch
          %379 = sbr.rel (%p377) target = $region40
        $region39: #{tpu_custom_call.1} parent=15 // pred_region
          %p380 = scmp.lt.s32.totalorder %s30, 3
          %s381 = scalar_select %p380, %s30, 3
          %s382 = smul.addr %s381, 4
          %s383 = scalar_lea.vmem %s5, %s382
        $region40: #{tpu_custom_call.1} parent=15 // pred_fallthru
          _
        // Predicated region
        $region41: #{tpu_custom_call.1} parent=15 // pred_check
          %p384 = pneg %p215
        $region42: #{tpu_custom_call.1} parent=15 // pred_check_branch
          %386 = sbr.rel (%p384) target = $region44
        $region43: #{tpu_custom_call.1} parent=15 // pred_region
          %p387 = scmp.lt.s32.totalorder %s30, 3
          %s388 = scalar_select %p387, %s30, 3
          %s389 = smul.addr %s388, 4
          %s390 = smul.addr %s389, 8
          %s391 = scalar_lea.vmem %s6, %s390
        $region44: #{tpu_custom_call.1} parent=15 // pred_fallthru
          _
        // Predicated region
        $region45: #{tpu_custom_call.1} parent=15 // pred_check
          %p392 = pneg %p241
        $region46: #{tpu_custom_call.1} parent=15 // pred_check_branch
          %394 = sbr.rel (%p392) target = $region48
        $region47: #{tpu_custom_call.1} parent=15 // pred_region
          %p395 = scmp.lt.s32.totalorder %s30, 3
          %s396 = scalar_select %p395, %s30, 3
          %s397 = smul.addr %s396, 4
          %s398 = scalar_lea.vmem %s7, %s397
        $region48: #{tpu_custom_call.1} parent=15 // pred_fallthru
          _
      $region16: #{tpu_custom_call.1} parent=5 // pred_fallthru
        _
      %p399 = scmp.le.s32.totalorder 1, %s23
      %p400 = scmp.lt.s32.totalorder %s23, 9
      %p401 = pnand %p399, %p400
      %p402 = pneg %p401
      // Predicated region
      $region49: #{tpu_custom_call.1} parent=5 // pred_check
        _
      $region50: #{tpu_custom_call.1} parent=5 // pred_check_branch
        %404 = sbr.rel (%p401) target = $region52
      $region51: #{tpu_custom_call.1} parent=5 // pred_region
        %s405 = ssub.s32 %s23, 1
        %s406 = sand.u32 %s50, 1
        %s407 = scalar_lea.sflag [#allocation3], %s406
        %s408 = sand.u32 %s50, 1
        %s409 = smul.addr %s408, 256
        %s410 = scalar_lea.vmem [#allocation2], %s409
        // Predicated region
        $region53: #{tpu_custom_call.1} parent=51 // pred_check
          %p411 = pneg %p63
        $region54: #{tpu_custom_call.1} parent=51 // pred_check_branch
          %413 = sbr.rel (%p411) target = $region56
        $region55: #{tpu_custom_call.1} parent=51 // pred_region
          %414 = dma.done %s407, 4096
        $region56: #{tpu_custom_call.1} parent=51 // pred_fallthru
          _
        %s415 = sand.u32 %s28, 1
        %s416 = scalar_lea.sflag [#allocation6], %s415
        %s417 = sand.u32 %s78, 1
        %s418 = smul.addr %s417, 128
        %s419 = scalar_lea.vmem [#allocation5], %s418
        // Predicated region
        $region57: #{tpu_custom_call.1} parent=51 // pred_check
          %p420 = pneg %p91
        $region58: #{tpu_custom_call.1} parent=51 // pred_check_branch
          %422 = sbr.rel (%p420) target = $region60
        $region59: #{tpu_custom_call.1} parent=51 // pred_region
          %423 = dma.done %s416, 2048
        $region60: #{tpu_custom_call.1} parent=51 // pred_fallthru
          _
        %s424 = sand.u32 %s28, 1
        %s425 = scalar_lea.sflag [#allocation6], %s424
        %s426 = sand.u32 %s104, 1
        %s427 = smul.addr %s426, 32
        %s428 = scalar_lea.vmem [#allocation7], %s427
        // Predicated region
        $region61: #{tpu_custom_call.1} parent=51 // pred_check
          %p429 = pneg %p117
        $region62: #{tpu_custom_call.1} parent=51 // pred_check_branch
          %431 = sbr.rel (%p429) target = $region64
        $region63: #{tpu_custom_call.1} parent=51 // pred_region
          %432 = dma.done %s425, 512
        $region64: #{tpu_custom_call.1} parent=51 // pred_fallthru
          _
        %s433 = sand.u32 %s50, 1
        %s434 = scalar_lea.sflag [#allocation3], %s433
        %s435 = sand.u32 %s50, 1
        %s436 = smul.addr %s435, 256
        %s437 = scalar_lea.vmem [#allocation2], %s436
        %p438 = pneg %p63
        %p439 = pneg %p60
        %s440 = sand.u32 %s28, 1
        %s441 = scalar_lea.sflag [#allocation6], %s440
        %s442 = sand.u32 %s78, 1
        %s443 = smul.addr %s442, 128
        %s444 = scalar_lea.vmem [#allocation5], %s443
        %p445 = pneg %p91
        %p446 = pneg %p88
        %s447 = sand.u32 %s28, 1
        %s448 = scalar_lea.sflag [#allocation6], %s447
        %s449 = sand.u32 %s104, 1
        %s450 = smul.addr %s449, 32
        %s451 = scalar_lea.vmem [#allocation7], %s450
        %p452 = pneg %p117
        %p453 = pneg %p114
        %p454 = scmp.lt.s32.totalorder %s32, 3
        %s455 = scalar_select %p454, %s32, 3
        %s456 = smul.addr %s455, 12
        %s457 = smul.addr %s456, 8
        %s458 = scalar_lea.vmem %s3, %s457
        %p459 = pneg %p143
        %p460 = pneg %p140
        %p461 = scmp.lt.s32.totalorder %s32, 3
        %s462 = scalar_select %p461, %s32, 3
        %s463 = smul.addr %s462, 4
        %s464 = smul.addr %s463, 8
        %s465 = scalar_lea.vmem %s4, %s464
        %p466 = pneg %p169
        %p467 = pneg %p166
        %p468 = scmp.lt.s32.totalorder %s32, 3
        %s469 = scalar_select %p468, %s32, 3
        %s470 = smul.addr %s469, 4
        %s471 = scalar_lea.vmem %s5, %s470
        %p472 = pneg %p195
        %p473 = pneg %p192
        %p474 = scmp.lt.s32.totalorder %s32, 3
        %s475 = scalar_select %p474, %s32, 3
        %s476 = smul.addr %s475, 4
        %s477 = smul.addr %s476, 8
        %s478 = scalar_lea.vmem %s6, %s477
        %p479 = pneg %p221
        %p480 = pneg %p218
        %p481 = scmp.lt.s32.totalorder %s32, 3
        %s482 = scalar_select %p481, %s32, 3
        %s483 = smul.addr %s482, 4
        %s484 = scalar_lea.vmem %s7, %s483
        %p485 = pneg %p247
        %p486 = pneg %p244
        %p487 = pneg %p275
        %p488 = pneg %p272
        %s489 = sand.u32 %s262, 1
        %s490 = scalar_lea.sflag [#allocation4], %s489
        %s491 = sand.u32 %s262, 1
        %s492 = smul.addr %s491, 32
        %s493 = scalar_lea.vmem [#allocation8], %s492
        %s494 = smul.u32 8, %s33
        %s495 = smul.u32 8, %s33
        %p496 = scmp.lt.s32.totalorder %s32, 3
        %s497 = scalar_select %p496, %s32, 3
        %s498 = smul.addr %s497, 12
        %s499 = smul.addr %s498, 8
        %s500 = scalar_lea.vmem %s3, %s499
        %p501 = scmp.lt.s32.totalorder %s32, 3
        %s502 = scalar_select %p501, %s32, 3
        %s503 = smul.addr %s502, 4
        %s504 = smul.addr %s503, 8
        %s505 = scalar_lea.vmem %s4, %s504
        %p506 = scmp.lt.s32.totalorder %s32, 3
        %s507 = scalar_select %p506, %s32, 3
        %s508 = smul.addr %s507, 4
        %s509 = scalar_lea.vmem %s5, %s508
        %p510 = scmp.lt.s32.totalorder %s32, 3
        %s511 = scalar_select %p510, %s32, 3
        %s512 = smul.addr %s511, 4
        %s513 = smul.addr %s512, 8
        %s514 = scalar_lea.vmem %s6, %s513
        %p515 = scmp.lt.s32.totalorder %s32, 3
        %s516 = scalar_select %p515, %s32, 3
        %s517 = smul.addr %s516, 4
        %s518 = scalar_lea.vmem %s7, %s517
        %s519 = smul.u32 8, %s33
        %v520 = vld [vmem:[%s410] sm:$0xff]
        %v521 = vld [vmem:[%s410 + $0x8] sm:$0xff]
        %v522 = vld [vmem:[%s410 + $0x10] sm:$0xff]
        %v523 = vld [vmem:[%s410 + $0x18] sm:$0xff]
        %v524 = vld [vmem:[%s410 + $0x20] sm:$0xff]
        %v525 = vld [vmem:[%s410 + $0x28] sm:$0xff]
        %v526 = vld [vmem:[%s410 + $0x30] sm:$0xff]
        %v527 = vld [vmem:[%s410 + $0x38] sm:$0xff]
        %v528 = vld [vmem:[%s410 + $0x40] sm:$0xff]
        %v529 = vld [vmem:[%s410 + $0x48] sm:$0xff]
        %v530 = vld [vmem:[%s410 + $0x50] sm:$0xff]
        %v531 = vld [vmem:[%s410 + $0x58] sm:$0xff]
        %v532 = vld [vmem:[%s410 + $0x60] sm:$0xff]
        %v533 = vld [vmem:[%s410 + $0x68] sm:$0xff]
        %v534 = vld [vmem:[%s410 + $0x70] sm:$0xff]
        %v535 = vld [vmem:[%s410 + $0x78] sm:$0xff]
        %v536 = vld [vmem:[%s410 + $0x80] sm:$0xff]
        %v537 = vld [vmem:[%s410 + $0x88] sm:$0xff]
        %v538 = vld [vmem:[%s410 + $0x90] sm:$0xff]
        %v539 = vld [vmem:[%s410 + $0x98] sm:$0xff]
        %v540 = vld [vmem:[%s410 + $0xa0] sm:$0xff]
        %v541 = vld [vmem:[%s410 + $0xa8] sm:$0xff]
        %v542 = vld [vmem:[%s410 + $0xb0] sm:$0xff]
        %v543 = vld [vmem:[%s410 + $0xb8] sm:$0xff]
        %v544 = vld [vmem:[%s410 + $0xc0] sm:$0xff]
        %v545 = vld [vmem:[%s410 + $0xc8] sm:$0xff]
        %v546 = vld [vmem:[%s410 + $0xd0] sm:$0xff]
        %v547 = vld [vmem:[%s410 + $0xd8] sm:$0xff]
        %v548 = vld [vmem:[%s410 + $0xe0] sm:$0xff]
        %v549 = vld [vmem:[%s410 + $0xe8] sm:$0xff]
        %v550 = vld [vmem:[%s410 + $0xf0] sm:$0xff]
        %v551 = vld [vmem:[%s410 + $0xf8] sm:$0xff]
        %v552 = vld [vmem:[%s419] sm:$0xff]
        %v553 = vld [vmem:[%s419 + $0x8] sm:$0xff]
        %v554 = vld [vmem:[%s419 + $0x10] sm:$0xff]
        %v555 = vld [vmem:[%s419 + $0x18] sm:$0xff]
        %v556 = vld [vmem:[%s419 + $0x20] sm:$0xff]
        %v557 = vld [vmem:[%s419 + $0x28] sm:$0xff]
        %v558 = vld [vmem:[%s419 + $0x30] sm:$0xff]
        %v559 = vld [vmem:[%s419 + $0x38] sm:$0xff]
        %v560 = vld [vmem:[%s419 + $0x40] sm:$0xff]
        %v561 = vld [vmem:[%s419 + $0x48] sm:$0xff]
        %v562 = vld [vmem:[%s419 + $0x50] sm:$0xff]
        %v563 = vld [vmem:[%s419 + $0x58] sm:$0xff]
        %v564 = vld [vmem:[%s419 + $0x60] sm:$0xff]
        %v565 = vld [vmem:[%s419 + $0x68] sm:$0xff]
        %v566 = vld [vmem:[%s419 + $0x70] sm:$0xff]
        %v567 = vld [vmem:[%s419 + $0x78] sm:$0xff]
        %v568 = vld [vmem:[%s428] sm:$0xff]
        %v569 = vld [vmem:[%s428 + $0x8] sm:$0xff]
        %v570 = vld [vmem:[%s428 + $0x10] sm:$0xff]
        %v571 = vld [vmem:[%s428 + $0x18] sm:$0xff]
        %v572 = vld [vmem:[%s514] sm:$0xff]
        %v573 = vld [vmem:[%s514 + $0x8] sm:$0xff]
        %v574 = vld [vmem:[%s514 + $0x10] sm:$0xff]
        %v575 = vld [vmem:[%s514 + $0x18] sm:$0xff]
        %577 = vset.pattern.permute.xlu0 0
        %578 = vperm.xlu0 %577, %v572
        %v579 = vpop.permute.xlu0 %578
        %582 = vset.pattern.permute.xlu0 0
        %583 = vperm.xlu0 %582, %v573
        %v584 = vpop.permute.xlu0 %583
        %587 = vset.pattern.permute.xlu0 0
        %588 = vperm.xlu0 %587, %v574
        %v589 = vpop.permute.xlu0 %588
        %592 = vset.pattern.permute.xlu0 0
        %593 = vperm.xlu0 %592, %v575
        %v594 = vpop.permute.xlu0 %593
        %vm596 = vcmask 261120
        %v598 = vsel %vm596, %v568, 0
        %v601 = vsel %vm596, %v569, 0
        %v604 = vsel %vm596, %v570, 0
        %v607 = vsel %vm596, %v571, 0
        %609 = vmatprep.subr.mxu0 %v521
        %610 = vmatpush1.msra.mxu0 %v520
        %611 = vmatprep.subr.mxu0 %v529
        %612 = vmatpush1.msra.mxu0 %v528
        %613 = vmatprep.subr.mxu0 %v537
        %614 = vmatpush1.msra.mxu0 %v536
        %615 = vmatprep.subr.mxu0 %v545
        %616 = vmatpush1.msra.mxu0 %v544
        %617 = vmatprep.subr.mxu0 0.0
        %618 = vmatpush1.msra.mxu0 0.0
        %619 = vmatprep.subr.mxu0 0.0
        %620 = vmatpush1.msra.mxu0 0.0
        %621 = vmatprep.subr.mxu0 0.0
        %622 = vmatpush1.msra.mxu0 0.0
        %623 = vmatprep.subr.mxu0 0.0
        %624 = vmatpush1.msra.mxu0 0.0
        %625 = vmatprep.subr.mxu0 0.0
        %626 = vmatpush1.msra.mxu0 0.0
        %627 = vmatprep.subr.mxu0 0.0
        %628 = vmatpush1.msra.mxu0 0.0
        %629 = vmatprep.subr.mxu0 0.0
        %630 = vmatpush1.msra.mxu0 0.0
        %631 = vmatprep.subr.mxu0 0.0
        %632 = vmatpush1.msra.mxu0 0.0
        %633 = vmatprep.subr.mxu0 0.0
        %634 = vmatpush1.msra.mxu0 0.0
        %635 = vmatprep.subr.mxu0 0.0
        %636 = vmatpush1.msra.mxu0 0.0
        %637 = vmatprep.subr.mxu0 0.0
        %638 = vmatpush1.msra.mxu0 0.0
        %639 = vmatprep.subr.mxu0 0.0
        %640 = vmatpush1.msra.mxu0 0.0
        %641 = vmatprep.subr.mxu0 0.0
        %642 = vmatpush1.msra.mxu0 0.0
        %643 = vmatprep.subr.mxu0 0.0
        %644 = vmatpush1.msra.mxu0 0.0
        %645 = vmatprep.subr.mxu0 0.0
        %646 = vmatpush1.msra.mxu0 0.0
        %647 = vmatprep.subr.mxu0 0.0
        %648 = vmatpush1.msra.mxu0 0.0
        %649 = vmatprep.subr.mxu0 0.0
        %650 = vmatpush1.msra.mxu0 0.0
        %651 = vmatprep.subr.mxu0 0.0
        %652 = vmatpush1.msra.mxu0 0.0
        %653 = vmatprep.subr.mxu0 0.0
        %654 = vmatpush1.msra.mxu0 0.0
        %655 = vmatprep.subr.mxu0 0.0
        %656 = vmatpush1.msra.mxu0 0.0
        %657 = vmatprep.subr.mxu0 0.0
        %658 = vmatpush1.msra.mxu0 0.0
        %659 = vmatprep.subr.mxu0 0.0
        %660 = vmatpush1.msra.mxu0 0.0
        %661 = vmatprep.subr.mxu0 0.0
        %662 = vmatpush1.msra.mxu0 0.0
        %663 = vmatprep.subr.mxu0 0.0
        %664 = vmatpush1.msra.mxu0 0.0
        %665 = vmatprep.subr.mxu0 0.0
        %666 = vmatpush1.msra.mxu0 0.0
        %667 = vmatprep.subr.mxu0 0.0
        %668 = vmatpush1.msra.mxu0 0.0
        %669 = vmatprep.subr.mxu0 0.0
        %670 = vmatpush1.msra.mxu0 0.0
        %671 = vmatprep.subr.mxu0 0.0
        %672 = vmatpush1.msra.mxu0 0.0
        %673 = vmatprep.mubr.f32.mxu0 0.0
        %674 = vmatmul.mubr.f32.gmra.mrb[0].mxu0 %v598
        %v675 = vpop.f32.mrb[0].mxu0
        %v676 = vadd.f32 %v579, %v675
        %v677 = vpop.f32.mrb[0].mxu0
        %v678 = vadd.f32 %v579, %v677
        %679 = vmatprep.mubr.f32.mxu0 0.0
        %680 = vmatmul.mubr.f32.gmra.mrb[0].mxu0 %v601
        %v681 = vpop.f32.mrb[0].mxu0
        %v682 = vadd.f32 %v584, %v681
        %v683 = vpop.f32.mrb[0].mxu0
        %v684 = vadd.f32 %v584, %v683
        %685 = vmatprep.mubr.f32.mxu0 0.0
        %686 = vmatmul.mubr.f32.gmra.mrb[0].mxu0 %v604
        %v687 = vpop.f32.mrb[0].mxu0
        %v688 = vadd.f32 %v589, %v687
        %v689 = vpop.f32.mrb[0].mxu0
        %v690 = vadd.f32 %v589, %v689
        %691 = vmatprep.mubr.f32.mxu0 0.0
        %692 = vmatmul.mubr.f32.gmra.mrb[0].mxu0 %v607
        %v693 = vpop.f32.mrb[0].mxu0
        %v694 = vadd.f32 %v594, %v693
        %v695 = vpop.f32.mrb[0].mxu0
        %v696 = vadd.f32 %v594, %v695
        %697 = vdwg.mxu0
        %698 = vmatprep.subr.mxu0 %v523
        %699 = vmatpush1.msra.mxu0 %v522
        %700 = vmatprep.subr.mxu0 %v531
        %701 = vmatpush1.msra.mxu0 %v530
        %702 = vmatprep.subr.mxu0 %v539
        %703 = vmatpush1.msra.mxu0 %v538
        %704 = vmatprep.subr.mxu0 %v547
        %705 = vmatpush1.msra.mxu0 %v546
        %706 = vmatprep.subr.mxu0 0.0
        %707 = vmatpush1.msra.mxu0 0.0
        %708 = vmatprep.subr.mxu0 0.0
        %709 = vmatpush1.msra.mxu0 0.0
        %710 = vmatprep.subr.mxu0 0.0
        %711 = vmatpush1.msra.mxu0 0.0
        %712 = vmatprep.subr.mxu0 0.0
        %713 = vmatpush1.msra.mxu0 0.0
        %714 = vmatprep.subr.mxu0 0.0
        %715 = vmatpush1.msra.mxu0 0.0
        %716 = vmatprep.subr.mxu0 0.0
        %717 = vmatpush1.msra.mxu0 0.0
        %718 = vmatprep.subr.mxu0 0.0
        %719 = vmatpush1.msra.mxu0 0.0
        %720 = vmatprep.subr.mxu0 0.0
        %721 = vmatpush1.msra.mxu0 0.0
        %722 = vmatprep.subr.mxu0 0.0
        %723 = vmatpush1.msra.mxu0 0.0
        %724 = vmatprep.subr.mxu0 0.0
        %725 = vmatpush1.msra.mxu0 0.0
        %726 = vmatprep.subr.mxu0 0.0
        %727 = vmatpush1.msra.mxu0 0.0
        %728 = vmatprep.subr.mxu0 0.0
        %729 = vmatpush1.msra.mxu0 0.0
        %730 = vmatprep.subr.mxu0 0.0
        %731 = vmatpush1.msra.mxu0 0.0
        %732 = vmatprep.subr.mxu0 0.0
        %733 = vmatpush1.msra.mxu0 0.0
        %734 = vmatprep.subr.mxu0 0.0
        %735 = vmatpush1.msra.mxu0 0.0
        %736 = vmatprep.subr.mxu0 0.0
        %737 = vmatpush1.msra.mxu0 0.0
        %738 = vmatprep.subr.mxu0 0.0
        %739 = vmatpush1.msra.mxu0 0.0
        %740 = vmatprep.subr.mxu0 0.0
        %741 = vmatpush1.msra.mxu0 0.0
        %742 = vmatprep.subr.mxu0 0.0
        %743 = vmatpush1.msra.mxu0 0.0
        %744 = vmatprep.subr.mxu0 0.0
        %745 = vmatpush1.msra.mxu0 0.0
        %746 = vmatprep.subr.mxu0 0.0
        %747 = vmatpush1.msra.mxu0 0.0
        %748 = vmatprep.subr.mxu0 0.0
        %749 = vmatpush1.msra.mxu0 0.0
        %750 = vmatprep.subr.mxu0 0.0
        %751 = vmatpush1.msra.mxu0 0.0
        %752 = vmatprep.subr.mxu0 0.0
        %753 = vmatpush1.msra.mxu0 0.0
        %754 = vmatprep.subr.mxu0 0.0
        %755 = vmatpush1.msra.mxu0 0.0
        %756 = vmatprep.subr.mxu0 0.0
        %757 = vmatpush1.msra.mxu0 0.0
        %758 = vmatprep.subr.mxu0 0.0
        %759 = vmatpush1.msra.mxu0 0.0
        %760 = vmatprep.subr.mxu0 0.0
        %761 = vmatpush1.msra.mxu0 0.0
        %762 = vmatprep.mubr.f32.mxu0 0.0
        %763 = vmatmul.mubr.f32.gmra.mrb[0].mxu0 %v598
        %v764 = vpop.f32.mrb[0].mxu0
        %v765 = vadd.f32 %v579, %v764
        %v766 = vpop.f32.mrb[0].mxu0
        %v767 = vadd.f32 %v579, %v766
        %768 = vmatprep.mubr.f32.mxu0 0.0
        %769 = vmatmul.mubr.f32.gmra.mrb[0].mxu0 %v601
        %v770 = vpop.f32.mrb[0].mxu0
        %v771 = vadd.f32 %v584, %v770
        %v772 = vpop.f32.mrb[0].mxu0
        %v773 = vadd.f32 %v584, %v772
        %774 = vmatprep.mubr.f32.mxu0 0.0
        %775 = vmatmul.mubr.f32.gmra.mrb[0].mxu0 %v604
        %v776 = vpop.f32.mrb[0].mxu0
        %v777 = vadd.f32 %v589, %v776
        %v778 = vpop.f32.mrb[0].mxu0
        %v779 = vadd.f32 %v589, %v778
        %780 = vmatprep.mubr.f32.mxu0 0.0
        %781 = vmatmul.mubr.f32.gmra.mrb[0].mxu0 %v607
        %v782 = vpop.f32.mrb[0].mxu0
        %v783 = vadd.f32 %v594, %v782
        %v784 = vpop.f32.mrb[0].mxu0
        %v785 = vadd.f32 %v594, %v784
        %786 = vdwg.mxu0
        %787 = vmatprep.subr.mxu0 %v525
        %788 = vmatpush1.msra.mxu0 %v524
        %789 = vmatprep.subr.mxu0 %v533
        %790 = vmatpush1.msra.mxu0 %v532
        %791 = vmatprep.subr.mxu0 %v541
        %792 = vmatpush1.msra.mxu0 %v540
        %793 = vmatprep.subr.mxu0 %v549
        %794 = vmatpush1.msra.mxu0 %v548
        %795 = vmatprep.subr.mxu0 0.0
        %796 = vmatpush1.msra.mxu0 0.0
        %797 = vmatprep.subr.mxu0 0.0
        %798 = vmatpush1.msra.mxu0 0.0
        %799 = vmatprep.subr.mxu0 0.0
        %800 = vmatpush1.msra.mxu0 0.0
        %801 = vmatprep.subr.mxu0 0.0
        %802 = vmatpush1.msra.mxu0 0.0
        %803 = vmatprep.subr.mxu0 0.0
        %804 = vmatpush1.msra.mxu0 0.0
        %805 = vmatprep.subr.mxu0 0.0
        %806 = vmatpush1.msra.mxu0 0.0
        %807 = vmatprep.subr.mxu0 0.0
        %808 = vmatpush1.msra.mxu0 0.0
        %809 = vmatprep.subr.mxu0 0.0
        %810 = vmatpush1.msra.mxu0 0.0
        %811 = vmatprep.subr.mxu0 0.0
        %812 = vmatpush1.msra.mxu0 0.0
        %813 = vmatprep.subr.mxu0 0.0
        %814 = vmatpush1.msra.mxu0 0.0
        %815 = vmatprep.subr.mxu0 0.0
        %816 = vmatpush1.msra.mxu0 0.0
        %817 = vmatprep.subr.mxu0 0.0
        %818 = vmatpush1.msra.mxu0 0.0
        %819 = vmatprep.subr.mxu0 0.0
        %820 = vmatpush1.msra.mxu0 0.0
        %821 = vmatprep.subr.mxu0 0.0
        %822 = vmatpush1.msra.mxu0 0.0
        %823 = vmatprep.subr.mxu0 0.0
        %824 = vmatpush1.msra.mxu0 0.0
        %825 = vmatprep.subr.mxu0 0.0
        %826 = vmatpush1.msra.mxu0 0.0
        %827 = vmatprep.subr.mxu0 0.0
        %828 = vmatpush1.msra.mxu0 0.0
        %829 = vmatprep.subr.mxu0 0.0
        %830 = vmatpush1.msra.mxu0 0.0
        %831 = vmatprep.subr.mxu0 0.0
        %832 = vmatpush1.msra.mxu0 0.0
        %833 = vmatprep.subr.mxu0 0.0
        %834 = vmatpush1.msra.mxu0 0.0
        %835 = vmatprep.subr.mxu0 0.0
        %836 = vmatpush1.msra.mxu0 0.0
        %837 = vmatprep.subr.mxu0 0.0
        %838 = vmatpush1.msra.mxu0 0.0
        %839 = vmatprep.subr.mxu0 0.0
        %840 = vmatpush1.msra.mxu0 0.0
        %841 = vmatprep.subr.mxu0 0.0
        %842 = vmatpush1.msra.mxu0 0.0
        %843 = vmatprep.subr.mxu0 0.0
        %844 = vmatpush1.msra.mxu0 0.0
        %845 = vmatprep.subr.mxu0 0.0
        %846 = vmatpush1.msra.mxu0 0.0
        %847 = vmatprep.subr.mxu0 0.0
        %848 = vmatpush1.msra.mxu0 0.0
        %849 = vmatprep.subr.mxu0 0.0
        %850 = vmatpush1.msra.mxu0 0.0
        %851 = vmatprep.mubr.f32.mxu0 0.0
        %852 = vmatmul.mubr.f32.gmra.mrb[0].mxu0 %v598
        %v853 = vpop.f32.mrb[0].mxu0
        %v854 = vadd.f32 %v579, %v853
        %v855 = vpop.f32.mrb[0].mxu0
        %v856 = vadd.f32 %v579, %v855
        %857 = vmatprep.mubr.f32.mxu0 0.0
        %858 = vmatmul.mubr.f32.gmra.mrb[0].mxu0 %v601
        %v859 = vpop.f32.mrb[0].mxu0
        %v860 = vadd.f32 %v584, %v859
        %v861 = vpop.f32.mrb[0].mxu0
        %v862 = vadd.f32 %v584, %v861
        %863 = vmatprep.mubr.f32.mxu0 0.0
        %864 = vmatmul.mubr.f32.gmra.mrb[0].mxu0 %v604
        %v865 = vpop.f32.mrb[0].mxu0
        %v866 = vadd.f32 %v589, %v865
        %v867 = vpop.f32.mrb[0].mxu0
        %v868 = vadd.f32 %v589, %v867
        %869 = vmatprep.mubr.f32.mxu0 0.0
        %870 = vmatmul.mubr.f32.gmra.mrb[0].mxu0 %v607
        %v871 = vpop.f32.mrb[0].mxu0
        %v872 = vadd.f32 %v594, %v871
        %v873 = vpop.f32.mrb[0].mxu0
        %v874 = vadd.f32 %v594, %v873
        %875 = vdwg.mxu0
        %876 = vmatprep.subr.mxu0 %v527
        %877 = vmatpush1.msra.mxu0 %v526
        %878 = vmatprep.subr.mxu0 %v535
        %879 = vmatpush1.msra.mxu0 %v534
        %880 = vmatprep.subr.mxu0 %v543
        %881 = vmatpush1.msra.mxu0 %v542
        %882 = vmatprep.subr.mxu0 %v551
        %883 = vmatpush1.msra.mxu0 %v550
        %884 = vmatprep.subr.mxu0 0.0
        %885 = vmatpush1.msra.mxu0 0.0
        %886 = vmatprep.subr.mxu0 0.0
        %887 = vmatpush1.msra.mxu0 0.0
        %888 = vmatprep.subr.mxu0 0.0
        %889 = vmatpush1.msra.mxu0 0.0
        %890 = vmatprep.subr.mxu0 0.0
        %891 = vmatpush1.msra.mxu0 0.0
        %892 = vmatprep.subr.mxu0 0.0
        %893 = vmatpush1.msra.mxu0 0.0
        %894 = vmatprep.subr.mxu0 0.0
        %895 = vmatpush1.msra.mxu0 0.0
        %896 = vmatprep.subr.mxu0 0.0
        %897 = vmatpush1.msra.mxu0 0.0
        %898 = vmatprep.subr.mxu0 0.0
        %899 = vmatpush1.msra.mxu0 0.0
        %900 = vmatprep.subr.mxu0 0.0
        %901 = vmatpush1.msra.mxu0 0.0
        %902 = vmatprep.subr.mxu0 0.0
        %903 = vmatpush1.msra.mxu0 0.0
        %904 = vmatprep.subr.mxu0 0.0
        %905 = vmatpush1.msra.mxu0 0.0
        %906 = vmatprep.subr.mxu0 0.0
        %907 = vmatpush1.msra.mxu0 0.0
        %908 = vmatprep.subr.mxu0 0.0
        %909 = vmatpush1.msra.mxu0 0.0
        %910 = vmatprep.subr.mxu0 0.0
        %911 = vmatpush1.msra.mxu0 0.0
        %912 = vmatprep.subr.mxu0 0.0
        %913 = vmatpush1.msra.mxu0 0.0
        %914 = vmatprep.subr.mxu0 0.0
        %915 = vmatpush1.msra.mxu0 0.0
        %916 = vmatprep.subr.mxu0 0.0
        %917 = vmatpush1.msra.mxu0 0.0
        %918 = vmatprep.subr.mxu0 0.0
        %919 = vmatpush1.msra.mxu0 0.0
        %920 = vmatprep.subr.mxu0 0.0
        %921 = vmatpush1.msra.mxu0 0.0
        %922 = vmatprep.subr.mxu0 0.0
        %923 = vmatpush1.msra.mxu0 0.0
        %924 = vmatprep.subr.mxu0 0.0
        %925 = vmatpush1.msra.mxu0 0.0
        %926 = vmatprep.subr.mxu0 0.0
        %927 = vmatpush1.msra.mxu0 0.0
        %928 = vmatprep.subr.mxu0 0.0
        %929 = vmatpush1.msra.mxu0 0.0
        %930 = vmatprep.subr.mxu0 0.0
        %931 = vmatpush1.msra.mxu0 0.0
        %932 = vmatprep.subr.mxu0 0.0
        %933 = vmatpush1.msra.mxu0 0.0
        %934 = vmatprep.subr.mxu0 0.0
        %935 = vmatpush1.msra.mxu0 0.0
        %936 = vmatprep.subr.mxu0 0.0
        %937 = vmatpush1.msra.mxu0 0.0
        %938 = vmatprep.subr.mxu0 0.0
        %939 = vmatpush1.msra.mxu0 0.0
        %940 = vmatprep.mubr.f32.mxu0 0.0
        %941 = vmatmul.mubr.f32.gmra.mrb[0].mxu0 %v598
        %v942 = vpop.f32.mrb[0].mxu0
        %v943 = vadd.f32 %v579, %v942
        %v944 = vpop.f32.mrb[0].mxu0
        %v945 = vadd.f32 %v579, %v944
        %946 = vmatprep.mubr.f32.mxu0 0.0
        %947 = vmatmul.mubr.f32.gmra.mrb[0].mxu0 %v601
        %v948 = vpop.f32.mrb[0].mxu0
        %v949 = vadd.f32 %v584, %v948
        %v950 = vpop.f32.mrb[0].mxu0
        %v951 = vadd.f32 %v584, %v950
        %952 = vmatprep.mubr.f32.mxu0 0.0
        %953 = vmatmul.mubr.f32.gmra.mrb[0].mxu0 %v604
        %v954 = vpop.f32.mrb[0].mxu0
        %v955 = vadd.f32 %v589, %v954
        %v956 = vpop.f32.mrb[0].mxu0
        %v957 = vadd.f32 %v589, %v956
        %958 = vmatprep.mubr.f32.mxu0 0.0
        %959 = vmatmul.mubr.f32.gmra.mrb[0].mxu0 %v607
        %v960 = vpop.f32.mrb[0].mxu0
        %v961 = vadd.f32 %v594, %v960
        %v962 = vpop.f32.mrb[0].mxu0
        %v963 = vadd.f32 %v594, %v962
        %964 = vdwg.mxu0
        %v965 = vmax.f32 %v676, 0.0
        %v966 = vmax.f32 %v678, 0.0
        %v967 = vmax.f32 %v765, 0.0
        %v968 = vmax.f32 %v767, 0.0
        %v969 = vmax.f32 %v854, 0.0
        %v970 = vmax.f32 %v856, 0.0
        %v971 = vmax.f32 %v943, 0.0
        %v972 = vmax.f32 %v945, 0.0
        %v973 = vmax.f32 %v682, 0.0
        %v974 = vmax.f32 %v684, 0.0
        %v975 = vmax.f32 %v771, 0.0
        %v976 = vmax.f32 %v773, 0.0
        %v977 = vmax.f32 %v860, 0.0
        %v978 = vmax.f32 %v862, 0.0
        %v979 = vmax.f32 %v949, 0.0
        %v980 = vmax.f32 %v951, 0.0
        %v981 = vmax.f32 %v688, 0.0
        %v982 = vmax.f32 %v690, 0.0
        %v983 = vmax.f32 %v777, 0.0
        %v984 = vmax.f32 %v779, 0.0
        %v985 = vmax.f32 %v866, 0.0
        %v986 = vmax.f32 %v868, 0.0
        %v987 = vmax.f32 %v955, 0.0
        %v988 = vmax.f32 %v957, 0.0
        %v989 = vmax.f32 %v694, 0.0
        %v990 = vmax.f32 %v696, 0.0
        %v991 = vmax.f32 %v783, 0.0
        %v992 = vmax.f32 %v785, 0.0
        %v993 = vmax.f32 %v872, 0.0
        %v994 = vmax.f32 %v874, 0.0
        %v995 = vmax.f32 %v961, 0.0
        %v996 = vmax.f32 %v963, 0.0
        %v997 = vld [vmem:[%s500] sm:$0xff]
        %v998 = vld [vmem:[%s500 + $0x8] sm:$0xff]
        %v999 = vld [vmem:[%s500 + $0x10] sm:$0xff]
        %v1000 = vld [vmem:[%s500 + $0x18] sm:$0xff]
        %1001 = vset.pattern.permute.xlu0 1
        %1002 = vperm.xlu0 %1001, %v572
        %v1003 = vpop.permute.xlu0 %1002
        %1005 = vset.pattern.permute.xlu0 1
        %1006 = vperm.xlu0 %1005, %v573
        %v1007 = vpop.permute.xlu0 %1006
        %1009 = vset.pattern.permute.xlu0 1
        %1010 = vperm.xlu0 %1009, %v574
        %v1011 = vpop.permute.xlu0 %1010
        %1013 = vset.pattern.permute.xlu0 1
        %1014 = vperm.xlu0 %1013, %v575
        %v1015 = vpop.permute.xlu0 %1014
        %v1018 = vsel %vm596, %v997, 0
        %v1021 = vsel %vm596, %v998, 0
        %v1024 = vsel %vm596, %v999, 0
        %v1027 = vsel %vm596, %v1000, 0
        %1029 = vmatprep.subr.mxu0 %v966
        %1030 = vmatpush1.msra.mxu0 %v965
        %1031 = vmatprep.subr.mxu0 %v974
        %1032 = vmatpush1.msra.mxu0 %v973
        %1033 = vmatprep.subr.mxu0 %v982
        %1034 = vmatpush1.msra.mxu0 %v981
        %1035 = vmatprep.subr.mxu0 %v990
        %1036 = vmatpush1.msra.mxu0 %v989
        %1037 = vmatprep.subr.mxu0 0.0
        %1038 = vmatpush1.msra.mxu0 0.0
        %1039 = vmatprep.subr.mxu0 0.0
        %1040 = vmatpush1.msra.mxu0 0.0
        %1041 = vmatprep.subr.mxu0 0.0
        %1042 = vmatpush1.msra.mxu0 0.0
        %1043 = vmatprep.subr.mxu0 0.0
        %1044 = vmatpush1.msra.mxu0 0.0
        %1045 = vmatprep.subr.mxu0 0.0
        %1046 = vmatpush1.msra.mxu0 0.0
        %1047 = vmatprep.subr.mxu0 0.0
        %1048 = vmatpush1.msra.mxu0 0.0
        %1049 = vmatprep.subr.mxu0 0.0
        %1050 = vmatpush1.msra.mxu0 0.0
        %1051 = vmatprep.subr.mxu0 0.0
        %1052 = vmatpush1.msra.mxu0 0.0
        %1053 = vmatprep.subr.mxu0 0.0
        %1054 = vmatpush1.msra.mxu0 0.0
        %1055 = vmatprep.subr.mxu0 0.0
        %1056 = vmatpush1.msra.mxu0 0.0
        %1057 = vmatprep.subr.mxu0 0.0
        %1058 = vmatpush1.msra.mxu0 0.0
        %1059 = vmatprep.subr.mxu0 0.0
        %1060 = vmatpush1.msra.mxu0 0.0
        %1061 = vmatprep.subr.mxu0 0.0
        %1062 = vmatpush1.msra.mxu0 0.0
        %1063 = vmatprep.subr.mxu0 0.0
        %1064 = vmatpush1.msra.mxu0 0.0
        %1065 = vmatprep.subr.mxu0 0.0
        %1066 = vmatpush1.msra.mxu0 0.0
        %1067 = vmatprep.subr.mxu0 0.0
        %1068 = vmatpush1.msra.mxu0 0.0
        %1069 = vmatprep.subr.mxu0 0.0
        %1070 = vmatpush1.msra.mxu0 0.0
        %1071 = vmatprep.subr.mxu0 0.0
        %1072 = vmatpush1.msra.mxu0 0.0
        %1073 = vmatprep.subr.mxu0 0.0
        %1074 = vmatpush1.msra.mxu0 0.0
        %1075 = vmatprep.subr.mxu0 0.0
        %1076 = vmatpush1.msra.mxu0 0.0
        %1077 = vmatprep.subr.mxu0 0.0
        %1078 = vmatpush1.msra.mxu0 0.0
        %1079 = vmatprep.subr.mxu0 0.0
        %1080 = vmatpush1.msra.mxu0 0.0
        %1081 = vmatprep.subr.mxu0 0.0
        %1082 = vmatpush1.msra.mxu0 0.0
        %1083 = vmatprep.subr.mxu0 0.0
        %1084 = vmatpush1.msra.mxu0 0.0
        %1085 = vmatprep.subr.mxu0 0.0
        %1086 = vmatpush1.msra.mxu0 0.0
        %1087 = vmatprep.subr.mxu0 0.0
        %1088 = vmatpush1.msra.mxu0 0.0
        %1089 = vmatprep.subr.mxu0 0.0
        %1090 = vmatpush1.msra.mxu0 0.0
        %1091 = vmatprep.subr.mxu0 0.0
        %1092 = vmatpush1.msra.mxu0 0.0
        %1093 = vmatprep.mubr.f32.mxu0 0.0
        %1094 = vmatmul.mubr.f32.gmra.mrb[0].mxu0 %v1018
        %v1095 = vpop.f32.mrb[0].mxu0
        %v1096 = vadd.f32 %v1003, %v1095
        %v1097 = vpop.f32.mrb[0].mxu0
        %v1098 = vadd.f32 %v1003, %v1097
        %1099 = vmatprep.mubr.f32.mxu0 0.0
        %1100 = vmatmul.mubr.f32.gmra.mrb[0].mxu0 %v1021
        %v1101 = vpop.f32.mrb[0].mxu0
        %v1102 = vadd.f32 %v1007, %v1101
        %v1103 = vpop.f32.mrb[0].mxu0
        %v1104 = vadd.f32 %v1007, %v1103
        %1105 = vmatprep.mubr.f32.mxu0 0.0
        %1106 = vmatmul.mubr.f32.gmra.mrb[0].mxu0 %v1024
        %v1107 = vpop.f32.mrb[0].mxu0
        %v1108 = vadd.f32 %v1011, %v1107
        %v1109 = vpop.f32.mrb[0].mxu0
        %v1110 = vadd.f32 %v1011, %v1109
        %1111 = vmatprep.mubr.f32.mxu0 0.0
        %1112 = vmatmul.mubr.f32.gmra.mrb[0].mxu0 %v1027
        %v1113 = vpop.f32.mrb[0].mxu0
        %v1114 = vadd.f32 %v1015, %v1113
        %v1115 = vpop.f32.mrb[0].mxu0
        %v1116 = vadd.f32 %v1015, %v1115
        %1117 = vdwg.mxu0
        %1118 = vmatprep.subr.mxu0 %v968
        %1119 = vmatpush1.msra.mxu0 %v967
        %1120 = vmatprep.subr.mxu0 %v976
        %1121 = vmatpush1.msra.mxu0 %v975
        %1122 = vmatprep.subr.mxu0 %v984
        %1123 = vmatpush1.msra.mxu0 %v983
        %1124 = vmatprep.subr.mxu0 %v992
        %1125 = vmatpush1.msra.mxu0 %v991
        %1126 = vmatprep.subr.mxu0 0.0
        %1127 = vmatpush1.msra.mxu0 0.0
        %1128 = vmatprep.subr.mxu0 0.0
        %1129 = vmatpush1.msra.mxu0 0.0
        %1130 = vmatprep.subr.mxu0 0.0
        %1131 = vmatpush1.msra.mxu0 0.0
        %1132 = vmatprep.subr.mxu0 0.0
        %1133 = vmatpush1.msra.mxu0 0.0
        %1134 = vmatprep.subr.mxu0 0.0
        %1135 = vmatpush1.msra.mxu0 0.0
        %1136 = vmatprep.subr.mxu0 0.0
        %1137 = vmatpush1.msra.mxu0 0.0
        %1138 = vmatprep.subr.mxu0 0.0
        %1139 = vmatpush1.msra.mxu0 0.0
        %1140 = vmatprep.subr.mxu0 0.0
        %1141 = vmatpush1.msra.mxu0 0.0
        %1142 = vmatprep.subr.mxu0 0.0
        %1143 = vmatpush1.msra.mxu0 0.0
        %1144 = vmatprep.subr.mxu0 0.0
        %1145 = vmatpush1.msra.mxu0 0.0
        %1146 = vmatprep.subr.mxu0 0.0
        %1147 = vmatpush1.msra.mxu0 0.0
        %1148 = vmatprep.subr.mxu0 0.0
        %1149 = vmatpush1.msra.mxu0 0.0
        %1150 = vmatprep.subr.mxu0 0.0
        %1151 = vmatpush1.msra.mxu0 0.0
        %1152 = vmatprep.subr.mxu0 0.0
        %1153 = vmatpush1.msra.mxu0 0.0
        %1154 = vmatprep.subr.mxu0 0.0
        %1155 = vmatpush1.msra.mxu0 0.0
        %1156 = vmatprep.subr.mxu0 0.0
        %1157 = vmatpush1.msra.mxu0 0.0
        %1158 = vmatprep.subr.mxu0 0.0
        %1159 = vmatpush1.msra.mxu0 0.0
        %1160 = vmatprep.subr.mxu0 0.0
        %1161 = vmatpush1.msra.mxu0 0.0
        %1162 = vmatprep.subr.mxu0 0.0
        %1163 = vmatpush1.msra.mxu0 0.0
        %1164 = vmatprep.subr.mxu0 0.0
        %1165 = vmatpush1.msra.mxu0 0.0
        %1166 = vmatprep.subr.mxu0 0.0
        %1167 = vmatpush1.msra.mxu0 0.0
        %1168 = vmatprep.subr.mxu0 0.0
        %1169 = vmatpush1.msra.mxu0 0.0
        %1170 = vmatprep.subr.mxu0 0.0
        %1171 = vmatpush1.msra.mxu0 0.0
        %1172 = vmatprep.subr.mxu0 0.0
        %1173 = vmatpush1.msra.mxu0 0.0
        %1174 = vmatprep.subr.mxu0 0.0
        %1175 = vmatpush1.msra.mxu0 0.0
        %1176 = vmatprep.subr.mxu0 0.0
        %1177 = vmatpush1.msra.mxu0 0.0
        %1178 = vmatprep.subr.mxu0 0.0
        %1179 = vmatpush1.msra.mxu0 0.0
        %1180 = vmatprep.subr.mxu0 0.0
        %1181 = vmatpush1.msra.mxu0 0.0
        %1182 = vmatprep.mubr.f32.mxu0 0.0
        %1183 = vmatmul.mubr.f32.gmra.mrb[0].mxu0 %v1018
        %v1184 = vpop.f32.mrb[0].mxu0
        %v1185 = vadd.f32 %v1003, %v1184
        %v1186 = vpop.f32.mrb[0].mxu0
        %v1187 = vadd.f32 %v1003, %v1186
        %1188 = vmatprep.mubr.f32.mxu0 0.0
        %1189 = vmatmul.mubr.f32.gmra.mrb[0].mxu0 %v1021
        %v1190 = vpop.f32.mrb[0].mxu0
        %v1191 = vadd.f32 %v1007, %v1190
        %v1192 = vpop.f32.mrb[0].mxu0
        %v1193 = vadd.f32 %v1007, %v1192
        %1194 = vmatprep.mubr.f32.mxu0 0.0
        %1195 = vmatmul.mubr.f32.gmra.mrb[0].mxu0 %v1024
        %v1196 = vpop.f32.mrb[0].mxu0
        %v1197 = vadd.f32 %v1011, %v1196
        %v1198 = vpop.f32.mrb[0].mxu0
        %v1199 = vadd.f32 %v1011, %v1198
        %1200 = vmatprep.mubr.f32.mxu0 0.0
        %1201 = vmatmul.mubr.f32.gmra.mrb[0].mxu0 %v1027
        %v1202 = vpop.f32.mrb[0].mxu0
        %v1203 = vadd.f32 %v1015, %v1202
        %v1204 = vpop.f32.mrb[0].mxu0
        %v1205 = vadd.f32 %v1015, %v1204
        %1206 = vdwg.mxu0
        %1207 = vmatprep.subr.mxu0 %v970
        %1208 = vmatpush1.msra.mxu0 %v969
        %1209 = vmatprep.subr.mxu0 %v978
        %1210 = vmatpush1.msra.mxu0 %v977
        %1211 = vmatprep.subr.mxu0 %v986
        %1212 = vmatpush1.msra.mxu0 %v985
        %1213 = vmatprep.subr.mxu0 %v994
        %1214 = vmatpush1.msra.mxu0 %v993
        %1215 = vmatprep.subr.mxu0 0.0
        %1216 = vmatpush1.msra.mxu0 0.0
        %1217 = vmatprep.subr.mxu0 0.0
        %1218 = vmatpush1.msra.mxu0 0.0
        %1219 = vmatprep.subr.mxu0 0.0
        %1220 = vmatpush1.msra.mxu0 0.0
        %1221 = vmatprep.subr.mxu0 0.0
        %1222 = vmatpush1.msra.mxu0 0.0
        %1223 = vmatprep.subr.mxu0 0.0
        %1224 = vmatpush1.msra.mxu0 0.0
        %1225 = vmatprep.subr.mxu0 0.0
        %1226 = vmatpush1.msra.mxu0 0.0
        %1227 = vmatprep.subr.mxu0 0.0
        %1228 = vmatpush1.msra.mxu0 0.0
        %1229 = vmatprep.subr.mxu0 0.0
        %1230 = vmatpush1.msra.mxu0 0.0
        %1231 = vmatprep.subr.mxu0 0.0
        %1232 = vmatpush1.msra.mxu0 0.0
        %1233 = vmatprep.subr.mxu0 0.0
        %1234 = vmatpush1.msra.mxu0 0.0
        %1235 = vmatprep.subr.mxu0 0.0
        %1236 = vmatpush1.msra.mxu0 0.0
        %1237 = vmatprep.subr.mxu0 0.0
        %1238 = vmatpush1.msra.mxu0 0.0
        %1239 = vmatprep.subr.mxu0 0.0
        %1240 = vmatpush1.msra.mxu0 0.0
        %1241 = vmatprep.subr.mxu0 0.0
        %1242 = vmatpush1.msra.mxu0 0.0
        %1243 = vmatprep.subr.mxu0 0.0
        %1244 = vmatpush1.msra.mxu0 0.0
        %1245 = vmatprep.subr.mxu0 0.0
        %1246 = vmatpush1.msra.mxu0 0.0
        %1247 = vmatprep.subr.mxu0 0.0
        %1248 = vmatpush1.msra.mxu0 0.0
        %1249 = vmatprep.subr.mxu0 0.0
        %1250 = vmatpush1.msra.mxu0 0.0
        %1251 = vmatprep.subr.mxu0 0.0
        %1252 = vmatpush1.msra.mxu0 0.0
        %1253 = vmatprep.subr.mxu0 0.0
        %1254 = vmatpush1.msra.mxu0 0.0
        %1255 = vmatprep.subr.mxu0 0.0
        %1256 = vmatpush1.msra.mxu0 0.0
        %1257 = vmatprep.subr.mxu0 0.0
        %1258 = vmatpush1.msra.mxu0 0.0
        %1259 = vmatprep.subr.mxu0 0.0
        %1260 = vmatpush1.msra.mxu0 0.0
        %1261 = vmatprep.subr.mxu0 0.0
        %1262 = vmatpush1.msra.mxu0 0.0
        %1263 = vmatprep.subr.mxu0 0.0
        %1264 = vmatpush1.msra.mxu0 0.0
        %1265 = vmatprep.subr.mxu0 0.0
        %1266 = vmatpush1.msra.mxu0 0.0
        %1267 = vmatprep.subr.mxu0 0.0
        %1268 = vmatpush1.msra.mxu0 0.0
        %1269 = vmatprep.subr.mxu0 0.0
        %1270 = vmatpush1.msra.mxu0 0.0
        %1271 = vmatprep.mubr.f32.mxu0 0.0
        %1272 = vmatmul.mubr.f32.gmra.mrb[0].mxu0 %v1018
        %v1273 = vpop.f32.mrb[0].mxu0
        %v1274 = vadd.f32 %v1003, %v1273
        %v1275 = vpop.f32.mrb[0].mxu0
        %v1276 = vadd.f32 %v1003, %v1275
        %1277 = vmatprep.mubr.f32.mxu0 0.0
        %1278 = vmatmul.mubr.f32.gmra.mrb[0].mxu0 %v1021
        %v1279 = vpop.f32.mrb[0].mxu0
        %v1280 = vadd.f32 %v1007, %v1279
        %v1281 = vpop.f32.mrb[0].mxu0
        %v1282 = vadd.f32 %v1007, %v1281
        %1283 = vmatprep.mubr.f32.mxu0 0.0
        %1284 = vmatmul.mubr.f32.gmra.mrb[0].mxu0 %v1024
        %v1285 = vpop.f32.mrb[0].mxu0
        %v1286 = vadd.f32 %v1011, %v1285
        %v1287 = vpop.f32.mrb[0].mxu0
        %v1288 = vadd.f32 %v1011, %v1287
        %1289 = vmatprep.mubr.f32.mxu0 0.0
        %1290 = vmatmul.mubr.f32.gmra.mrb[0].mxu0 %v1027
        %v1291 = vpop.f32.mrb[0].mxu0
        %v1292 = vadd.f32 %v1015, %v1291
        %v1293 = vpop.f32.mrb[0].mxu0
        %v1294 = vadd.f32 %v1015, %v1293
        %1295 = vdwg.mxu0
        %1296 = vmatprep.subr.mxu0 %v972
        %1297 = vmatpush1.msra.mxu0 %v971
        %1298 = vmatprep.subr.mxu0 %v980
        %1299 = vmatpush1.msra.mxu0 %v979
        %1300 = vmatprep.subr.mxu0 %v988
        %1301 = vmatpush1.msra.mxu0 %v987
        %1302 = vmatprep.subr.mxu0 %v996
        %1303 = vmatpush1.msra.mxu0 %v995
        %1304 = vmatprep.subr.mxu0 0.0
        %1305 = vmatpush1.msra.mxu0 0.0
        %1306 = vmatprep.subr.mxu0 0.0
        %1307 = vmatpush1.msra.mxu0 0.0
        %1308 = vmatprep.subr.mxu0 0.0
        %1309 = vmatpush1.msra.mxu0 0.0
        %1310 = vmatprep.subr.mxu0 0.0
        %1311 = vmatpush1.msra.mxu0 0.0
        %1312 = vmatprep.subr.mxu0 0.0
        %1313 = vmatpush1.msra.mxu0 0.0
        %1314 = vmatprep.subr.mxu0 0.0
        %1315 = vmatpush1.msra.mxu0 0.0
        %1316 = vmatprep.subr.mxu0 0.0
        %1317 = vmatpush1.msra.mxu0 0.0
        %1318 = vmatprep.subr.mxu0 0.0
        %1319 = vmatpush1.msra.mxu0 0.0
        %1320 = vmatprep.subr.mxu0 0.0
        %1321 = vmatpush1.msra.mxu0 0.0
        %1322 = vmatprep.subr.mxu0 0.0
        %1323 = vmatpush1.msra.mxu0 0.0
        %1324 = vmatprep.subr.mxu0 0.0
        %1325 = vmatpush1.msra.mxu0 0.0
        %1326 = vmatprep.subr.mxu0 0.0
        %1327 = vmatpush1.msra.mxu0 0.0
        %1328 = vmatprep.subr.mxu0 0.0
        %1329 = vmatpush1.msra.mxu0 0.0
        %1330 = vmatprep.subr.mxu0 0.0
        %1331 = vmatpush1.msra.mxu0 0.0
        %1332 = vmatprep.subr.mxu0 0.0
        %1333 = vmatpush1.msra.mxu0 0.0
        %1334 = vmatprep.subr.mxu0 0.0
        %1335 = vmatpush1.msra.mxu0 0.0
        %1336 = vmatprep.subr.mxu0 0.0
        %1337 = vmatpush1.msra.mxu0 0.0
        %1338 = vmatprep.subr.mxu0 0.0
        %1339 = vmatpush1.msra.mxu0 0.0
        %1340 = vmatprep.subr.mxu0 0.0
        %1341 = vmatpush1.msra.mxu0 0.0
        %1342 = vmatprep.subr.mxu0 0.0
        %1343 = vmatpush1.msra.mxu0 0.0
        %1344 = vmatprep.subr.mxu0 0.0
        %1345 = vmatpush1.msra.mxu0 0.0
        %1346 = vmatprep.subr.mxu0 0.0
        %1347 = vmatpush1.msra.mxu0 0.0
        %1348 = vmatprep.subr.mxu0 0.0
        %1349 = vmatpush1.msra.mxu0 0.0
        %1350 = vmatprep.subr.mxu0 0.0
        %1351 = vmatpush1.msra.mxu0 0.0
        %1352 = vmatprep.subr.mxu0 0.0
        %1353 = vmatpush1.msra.mxu0 0.0
        %1354 = vmatprep.subr.mxu0 0.0
        %1355 = vmatpush1.msra.mxu0 0.0
        %1356 = vmatprep.subr.mxu0 0.0
        %1357 = vmatpush1.msra.mxu0 0.0
        %1358 = vmatprep.subr.mxu0 0.0
        %1359 = vmatpush1.msra.mxu0 0.0
        %1360 = vmatprep.mubr.f32.mxu0 0.0
        %1361 = vmatmul.mubr.f32.gmra.mrb[0].mxu0 %v1018
        %v1362 = vpop.f32.mrb[0].mxu0
        %v1363 = vadd.f32 %v1003, %v1362
        %v1364 = vpop.f32.mrb[0].mxu0
        %v1365 = vadd.f32 %v1003, %v1364
        %1366 = vmatprep.mubr.f32.mxu0 0.0
        %1367 = vmatmul.mubr.f32.gmra.mrb[0].mxu0 %v1021
        %v1368 = vpop.f32.mrb[0].mxu0
        %v1369 = vadd.f32 %v1007, %v1368
        %v1370 = vpop.f32.mrb[0].mxu0
        %v1371 = vadd.f32 %v1007, %v1370
        %1372 = vmatprep.mubr.f32.mxu0 0.0
        %1373 = vmatmul.mubr.f32.gmra.mrb[0].mxu0 %v1024
        %v1374 = vpop.f32.mrb[0].mxu0
        %v1375 = vadd.f32 %v1011, %v1374
        %v1376 = vpop.f32.mrb[0].mxu0
        %v1377 = vadd.f32 %v1011, %v1376
        %1378 = vmatprep.mubr.f32.mxu0 0.0
        %1379 = vmatmul.mubr.f32.gmra.mrb[0].mxu0 %v1027
        %v1380 = vpop.f32.mrb[0].mxu0
        %v1381 = vadd.f32 %v1015, %v1380
        %v1382 = vpop.f32.mrb[0].mxu0
        %v1383 = vadd.f32 %v1015, %v1382
        %1384 = vdwg.mxu0
        %v1385 = vmax.f32 %v1096, 0.0
        %v1386 = vmax.f32 %v1098, 0.0
        %v1387 = vmax.f32 %v1185, 0.0
        %v1388 = vmax.f32 %v1187, 0.0
        %v1389 = vmax.f32 %v1274, 0.0
        %v1390 = vmax.f32 %v1276, 0.0
        %v1391 = vmax.f32 %v1363, 0.0
        %v1392 = vmax.f32 %v1365, 0.0
        %v1393 = vmax.f32 %v1102, 0.0
        %v1394 = vmax.f32 %v1104, 0.0
        %v1395 = vmax.f32 %v1191, 0.0
        %v1396 = vmax.f32 %v1193, 0.0
        %v1397 = vmax.f32 %v1280, 0.0
        %v1398 = vmax.f32 %v1282, 0.0
        %v1399 = vmax.f32 %v1369, 0.0
        %v1400 = vmax.f32 %v1371, 0.0
        %v1401 = vmax.f32 %v1108, 0.0
        %v1402 = vmax.f32 %v1110, 0.0
        %v1403 = vmax.f32 %v1197, 0.0
        %v1404 = vmax.f32 %v1199, 0.0
        %v1405 = vmax.f32 %v1286, 0.0
        %v1406 = vmax.f32 %v1288, 0.0
        %v1407 = vmax.f32 %v1375, 0.0
        %v1408 = vmax.f32 %v1377, 0.0
        %v1409 = vmax.f32 %v1114, 0.0
        %v1410 = vmax.f32 %v1116, 0.0
        %v1411 = vmax.f32 %v1203, 0.0
        %v1412 = vmax.f32 %v1205, 0.0
        %v1413 = vmax.f32 %v1292, 0.0
        %v1414 = vmax.f32 %v1294, 0.0
        %v1415 = vmax.f32 %v1381, 0.0
        %v1416 = vmax.f32 %v1383, 0.0
        %s1417 = scalar_lea.vmem %s500, 32
        %v1418 = vld [vmem:[%s1417] sm:$0xff]
        %v1419 = vld [vmem:[%s1417 + $0x8] sm:$0xff]
        %v1420 = vld [vmem:[%s1417 + $0x10] sm:$0xff]
        %v1421 = vld [vmem:[%s1417 + $0x18] sm:$0xff]
        %1422 = vset.pattern.permute.xlu0 2
        %1423 = vperm.xlu0 %1422, %v572
        %v1424 = vpop.permute.xlu0 %1423
        %1426 = vset.pattern.permute.xlu0 2
        %1427 = vperm.xlu0 %1426, %v573
        %v1428 = vpop.permute.xlu0 %1427
        %1430 = vset.pattern.permute.xlu0 2
        %1431 = vperm.xlu0 %1430, %v574
        %v1432 = vpop.permute.xlu0 %1431
        %1434 = vset.pattern.permute.xlu0 2
        %1435 = vperm.xlu0 %1434, %v575
        %v1436 = vpop.permute.xlu0 %1435
        %v1439 = vsel %vm596, %v1418, 0
        %v1442 = vsel %vm596, %v1419, 0
        %v1445 = vsel %vm596, %v1420, 0
        %v1448 = vsel %vm596, %v1421, 0
        %1450 = vmatprep.subr.mxu0 %v1386
        %1451 = vmatpush1.msra.mxu0 %v1385
        %1452 = vmatprep.subr.mxu0 %v1394
        %1453 = vmatpush1.msra.mxu0 %v1393
        %1454 = vmatprep.subr.mxu0 %v1402
        %1455 = vmatpush1.msra.mxu0 %v1401
        %1456 = vmatprep.subr.mxu0 %v1410
        %1457 = vmatpush1.msra.mxu0 %v1409
        %1458 = vmatprep.subr.mxu0 0.0
        %1459 = vmatpush1.msra.mxu0 0.0
        %1460 = vmatprep.subr.mxu0 0.0
        %1461 = vmatpush1.msra.mxu0 0.0
        %1462 = vmatprep.subr.mxu0 0.0
        %1463 = vmatpush1.msra.mxu0 0.0
        %1464 = vmatprep.subr.mxu0 0.0
        %1465 = vmatpush1.msra.mxu0 0.0
        %1466 = vmatprep.subr.mxu0 0.0
        %1467 = vmatpush1.msra.mxu0 0.0
        %1468 = vmatprep.subr.mxu0 0.0
        %1469 = vmatpush1.msra.mxu0 0.0
        %1470 = vmatprep.subr.mxu0 0.0
        %1471 = vmatpush1.msra.mxu0 0.0
        %1472 = vmatprep.subr.mxu0 0.0
        %1473 = vmatpush1.msra.mxu0 0.0
        %1474 = vmatprep.subr.mxu0 0.0
        %1475 = vmatpush1.msra.mxu0 0.0
        %1476 = vmatprep.subr.mxu0 0.0
        %1477 = vmatpush1.msra.mxu0 0.0
        %1478 = vmatprep.subr.mxu0 0.0
        %1479 = vmatpush1.msra.mxu0 0.0
        %1480 = vmatprep.subr.mxu0 0.0
        %1481 = vmatpush1.msra.mxu0 0.0
        %1482 = vmatprep.subr.mxu0 0.0
        %1483 = vmatpush1.msra.mxu0 0.0
        %1484 = vmatprep.subr.mxu0 0.0
        %1485 = vmatpush1.msra.mxu0 0.0
        %1486 = vmatprep.subr.mxu0 0.0
        %1487 = vmatpush1.msra.mxu0 0.0
        %1488 = vmatprep.subr.mxu0 0.0
        %1489 = vmatpush1.msra.mxu0 0.0
        %1490 = vmatprep.subr.mxu0 0.0
        %1491 = vmatpush1.msra.mxu0 0.0
        %1492 = vmatprep.subr.mxu0 0.0
        %1493 = vmatpush1.msra.mxu0 0.0
        %1494 = vmatprep.subr.mxu0 0.0
        %1495 = vmatpush1.msra.mxu0 0.0
        %1496 = vmatprep.subr.mxu0 0.0
        %1497 = vmatpush1.msra.mxu0 0.0
        %1498 = vmatprep.subr.mxu0 0.0
        %1499 = vmatpush1.msra.mxu0 0.0
        %1500 = vmatprep.subr.mxu0 0.0
        %1501 = vmatpush1.msra.mxu0 0.0
        %1502 = vmatprep.subr.mxu0 0.0
        %1503 = vmatpush1.msra.mxu0 0.0
        %1504 = vmatprep.subr.mxu0 0.0
        %1505 = vmatpush1.msra.mxu0 0.0
        %1506 = vmatprep.subr.mxu0 0.0
        %1507 = vmatpush1.msra.mxu0 0.0
        %1508 = vmatprep.subr.mxu0 0.0
        %1509 = vmatpush1.msra.mxu0 0.0
        %1510 = vmatprep.subr.mxu0 0.0
        %1511 = vmatpush1.msra.mxu0 0.0
        %1512 = vmatprep.subr.mxu0 0.0
        %1513 = vmatpush1.msra.mxu0 0.0
        %1514 = vmatprep.mubr.f32.mxu0 0.0
        %1515 = vmatmul.mubr.f32.gmra.mrb[0].mxu0 %v1439
        %v1516 = vpop.f32.mrb[0].mxu0
        %v1517 = vadd.f32 %v1424, %v1516
        %v1518 = vpop.f32.mrb[0].mxu0
        %v1519 = vadd.f32 %v1424, %v1518
        %1520 = vmatprep.mubr.f32.mxu0 0.0
        %1521 = vmatmul.mubr.f32.gmra.mrb[0].mxu0 %v1442
        %v1522 = vpop.f32.mrb[0].mxu0
        %v1523 = vadd.f32 %v1428, %v1522
        %v1524 = vpop.f32.mrb[0].mxu0
        %v1525 = vadd.f32 %v1428, %v1524
        %1526 = vmatprep.mubr.f32.mxu0 0.0
        %1527 = vmatmul.mubr.f32.gmra.mrb[0].mxu0 %v1445
        %v1528 = vpop.f32.mrb[0].mxu0
        %v1529 = vadd.f32 %v1432, %v1528
        %v1530 = vpop.f32.mrb[0].mxu0
        %v1531 = vadd.f32 %v1432, %v1530
        %1532 = vmatprep.mubr.f32.mxu0 0.0
        %1533 = vmatmul.mubr.f32.gmra.mrb[0].mxu0 %v1448
        %v1534 = vpop.f32.mrb[0].mxu0
        %v1535 = vadd.f32 %v1436, %v1534
        %v1536 = vpop.f32.mrb[0].mxu0
        %v1537 = vadd.f32 %v1436, %v1536
        %1538 = vdwg.mxu0
        %1539 = vmatprep.subr.mxu0 %v1388
        %1540 = vmatpush1.msra.mxu0 %v1387
        %1541 = vmatprep.subr.mxu0 %v1396
        %1542 = vmatpush1.msra.mxu0 %v1395
        %1543 = vmatprep.subr.mxu0 %v1404
        %1544 = vmatpush1.msra.mxu0 %v1403
        %1545 = vmatprep.subr.mxu0 %v1412
        %1546 = vmatpush1.msra.mxu0 %v1411
        %1547 = vmatprep.subr.mxu0 0.0
        %1548 = vmatpush1.msra.mxu0 0.0
        %1549 = vmatprep.subr.mxu0 0.0
        %1550 = vmatpush1.msra.mxu0 0.0
        %1551 = vmatprep.subr.mxu0 0.0
        %1552 = vmatpush1.msra.mxu0 0.0
        %1553 = vmatprep.subr.mxu0 0.0
        %1554 = vmatpush1.msra.mxu0 0.0
        %1555 = vmatprep.subr.mxu0 0.0
        %1556 = vmatpush1.msra.mxu0 0.0
        %1557 = vmatprep.subr.mxu0 0.0
        %1558 = vmatpush1.msra.mxu0 0.0
        %1559 = vmatprep.subr.mxu0 0.0
        %1560 = vmatpush1.msra.mxu0 0.0
        %1561 = vmatprep.subr.mxu0 0.0
        %1562 = vmatpush1.msra.mxu0 0.0
        %1563 = vmatprep.subr.mxu0 0.0
        %1564 = vmatpush1.msra.mxu0 0.0
        %1565 = vmatprep.subr.mxu0 0.0
        %1566 = vmatpush1.msra.mxu0 0.0
        %1567 = vmatprep.subr.mxu0 0.0
        %1568 = vmatpush1.msra.mxu0 0.0
        %1569 = vmatprep.subr.mxu0 0.0
        %1570 = vmatpush1.msra.mxu0 0.0
        %1571 = vmatprep.subr.mxu0 0.0
        %1572 = vmatpush1.msra.mxu0 0.0
        %1573 = vmatprep.subr.mxu0 0.0
        %1574 = vmatpush1.msra.mxu0 0.0
        %1575 = vmatprep.subr.mxu0 0.0
        %1576 = vmatpush1.msra.mxu0 0.0
        %1577 = vmatprep.subr.mxu0 0.0
        %1578 = vmatpush1.msra.mxu0 0.0
        %1579 = vmatprep.subr.mxu0 0.0
        %1580 = vmatpush1.msra.mxu0 0.0
        %1581 = vmatprep.subr.mxu0 0.0
        %1582 = vmatpush1.msra.mxu0 0.0
        %1583 = vmatprep.subr.mxu0 0.0
        %1584 = vmatpush1.msra.mxu0 0.0
        %1585 = vmatprep.subr.mxu0 0.0
        %1586 = vmatpush1.msra.mxu0 0.0
        %1587 = vmatprep.subr.mxu0 0.0
        %1588 = vmatpush1.msra.mxu0 0.0
        %1589 = vmatprep.subr.mxu0 0.0
        %1590 = vmatpush1.msra.mxu0 0.0
        %1591 = vmatprep.subr.mxu0 0.0
        %1592 = vmatpush1.msra.mxu0 0.0
        %1593 = vmatprep.subr.mxu0 0.0
        %1594 = vmatpush1.msra.mxu0 0.0
        %1595 = vmatprep.subr.mxu0 0.0
        %1596 = vmatpush1.msra.mxu0 0.0
        %1597 = vmatprep.subr.mxu0 0.0
        %1598 = vmatpush1.msra.mxu0 0.0
        %1599 = vmatprep.subr.mxu0 0.0
        %1600 = vmatpush1.msra.mxu0 0.0
        %1601 = vmatprep.subr.mxu0 0.0
        %1602 = vmatpush1.msra.mxu0 0.0
        %1603 = vmatprep.mubr.f32.mxu0 0.0
        %1604 = vmatmul.mubr.f32.gmra.mrb[0].mxu0 %v1439
        %v1605 = vpop.f32.mrb[0].mxu0
        %v1606 = vadd.f32 %v1424, %v1605
        %v1607 = vpop.f32.mrb[0].mxu0
        %v1608 = vadd.f32 %v1424, %v1607
        %1609 = vmatprep.mubr.f32.mxu0 0.0
        %1610 = vmatmul.mubr.f32.gmra.mrb[0].mxu0 %v1442
        %v1611 = vpop.f32.mrb[0].mxu0
        %v1612 = vadd.f32 %v1428, %v1611
        %v1613 = vpop.f32.mrb[0].mxu0
        %v1614 = vadd.f32 %v1428, %v1613
        %1615 = vmatprep.mubr.f32.mxu0 0.0
        %1616 = vmatmul.mubr.f32.gmra.mrb[0].mxu0 %v1445
        %v1617 = vpop.f32.mrb[0].mxu0
        %v1618 = vadd.f32 %v1432, %v1617
        %v1619 = vpop.f32.mrb[0].mxu0
        %v1620 = vadd.f32 %v1432, %v1619
        %1621 = vmatprep.mubr.f32.mxu0 0.0
        %1622 = vmatmul.mubr.f32.gmra.mrb[0].mxu0 %v1448
        %v1623 = vpop.f32.mrb[0].mxu0
        %v1624 = vadd.f32 %v1436, %v1623
        %v1625 = vpop.f32.mrb[0].mxu0
        %v1626 = vadd.f32 %v1436, %v1625
        %1627 = vdwg.mxu0
        %1628 = vmatprep.subr.mxu0 %v1390
        %1629 = vmatpush1.msra.mxu0 %v1389
        %1630 = vmatprep.subr.mxu0 %v1398
        %1631 = vmatpush1.msra.mxu0 %v1397
        %1632 = vmatprep.subr.mxu0 %v1406
        %1633 = vmatpush1.msra.mxu0 %v1405
        %1634 = vmatprep.subr.mxu0 %v1414
        %1635 = vmatpush1.msra.mxu0 %v1413
        %1636 = vmatprep.subr.mxu0 0.0
        %1637 = vmatpush1.msra.mxu0 0.0
        %1638 = vmatprep.subr.mxu0 0.0
        %1639 = vmatpush1.msra.mxu0 0.0
        %1640 = vmatprep.subr.mxu0 0.0
        %1641 = vmatpush1.msra.mxu0 0.0
        %1642 = vmatprep.subr.mxu0 0.0
        %1643 = vmatpush1.msra.mxu0 0.0
        %1644 = vmatprep.subr.mxu0 0.0
        %1645 = vmatpush1.msra.mxu0 0.0
        %1646 = vmatprep.subr.mxu0 0.0
        %1647 = vmatpush1.msra.mxu0 0.0
        %1648 = vmatprep.subr.mxu0 0.0
        %1649 = vmatpush1.msra.mxu0 0.0
        %1650 = vmatprep.subr.mxu0 0.0
        %1651 = vmatpush1.msra.mxu0 0.0
        %1652 = vmatprep.subr.mxu0 0.0
        %1653 = vmatpush1.msra.mxu0 0.0
        %1654 = vmatprep.subr.mxu0 0.0
        %1655 = vmatpush1.msra.mxu0 0.0
        %1656 = vmatprep.subr.mxu0 0.0
        %1657 = vmatpush1.msra.mxu0 0.0
        %1658 = vmatprep.subr.mxu0 0.0
        %1659 = vmatpush1.msra.mxu0 0.0
        %1660 = vmatprep.subr.mxu0 0.0
        %1661 = vmatpush1.msra.mxu0 0.0
        %1662 = vmatprep.subr.mxu0 0.0
        %1663 = vmatpush1.msra.mxu0 0.0
        %1664 = vmatprep.subr.mxu0 0.0
        %1665 = vmatpush1.msra.mxu0 0.0
        %1666 = vmatprep.subr.mxu0 0.0
        %1667 = vmatpush1.msra.mxu0 0.0
        %1668 = vmatprep.subr.mxu0 0.0
        %1669 = vmatpush1.msra.mxu0 0.0
        %1670 = vmatprep.subr.mxu0 0.0
        %1671 = vmatpush1.msra.mxu0 0.0
        %1672 = vmatprep.subr.mxu0 0.0
        %1673 = vmatpush1.msra.mxu0 0.0
        %1674 = vmatprep.subr.mxu0 0.0
        %1675 = vmatpush1.msra.mxu0 0.0
        %1676 = vmatprep.subr.mxu0 0.0
        %1677 = vmatpush1.msra.mxu0 0.0
        %1678 = vmatprep.subr.mxu0 0.0
        %1679 = vmatpush1.msra.mxu0 0.0
        %1680 = vmatprep.subr.mxu0 0.0
        %1681 = vmatpush1.msra.mxu0 0.0
        %1682 = vmatprep.subr.mxu0 0.0
        %1683 = vmatpush1.msra.mxu0 0.0
        %1684 = vmatprep.subr.mxu0 0.0
        %1685 = vmatpush1.msra.mxu0 0.0
        %1686 = vmatprep.subr.mxu0 0.0
        %1687 = vmatpush1.msra.mxu0 0.0
        %1688 = vmatprep.subr.mxu0 0.0
        %1689 = vmatpush1.msra.mxu0 0.0
        %1690 = vmatprep.subr.mxu0 0.0
        %1691 = vmatpush1.msra.mxu0 0.0
        %1692 = vmatprep.mubr.f32.mxu0 0.0
        %1693 = vmatmul.mubr.f32.gmra.mrb[0].mxu0 %v1439
        %v1694 = vpop.f32.mrb[0].mxu0
        %v1695 = vadd.f32 %v1424, %v1694
        %v1696 = vpop.f32.mrb[0].mxu0
        %v1697 = vadd.f32 %v1424, %v1696
        %1698 = vmatprep.mubr.f32.mxu0 0.0
        %1699 = vmatmul.mubr.f32.gmra.mrb[0].mxu0 %v1442
        %v1700 = vpop.f32.mrb[0].mxu0
        %v1701 = vadd.f32 %v1428, %v1700
        %v1702 = vpop.f32.mrb[0].mxu0
        %v1703 = vadd.f32 %v1428, %v1702
        %1704 = vmatprep.mubr.f32.mxu0 0.0
        %1705 = vmatmul.mubr.f32.gmra.mrb[0].mxu0 %v1445
        %v1706 = vpop.f32.mrb[0].mxu0
        %v1707 = vadd.f32 %v1432, %v1706
        %v1708 = vpop.f32.mrb[0].mxu0
        %v1709 = vadd.f32 %v1432, %v1708
        %1710 = vmatprep.mubr.f32.mxu0 0.0
        %1711 = vmatmul.mubr.f32.gmra.mrb[0].mxu0 %v1448
        %v1712 = vpop.f32.mrb[0].mxu0
        %v1713 = vadd.f32 %v1436, %v1712
        %v1714 = vpop.f32.mrb[0].mxu0
        %v1715 = vadd.f32 %v1436, %v1714
        %1716 = vdwg.mxu0
        %1717 = vmatprep.subr.mxu0 %v1392
        %1718 = vmatpush1.msra.mxu0 %v1391
        %1719 = vmatprep.subr.mxu0 %v1400
        %1720 = vmatpush1.msra.mxu0 %v1399
        %1721 = vmatprep.subr.mxu0 %v1408
        %1722 = vmatpush1.msra.mxu0 %v1407
        %1723 = vmatprep.subr.mxu0 %v1416
        %1724 = vmatpush1.msra.mxu0 %v1415
        %1725 = vmatprep.subr.mxu0 0.0
        %1726 = vmatpush1.msra.mxu0 0.0
        %1727 = vmatprep.subr.mxu0 0.0
        %1728 = vmatpush1.msra.mxu0 0.0
        %1729 = vmatprep.subr.mxu0 0.0
        %1730 = vmatpush1.msra.mxu0 0.0
        %1731 = vmatprep.subr.mxu0 0.0
        %1732 = vmatpush1.msra.mxu0 0.0
        %1733 = vmatprep.subr.mxu0 0.0
        %1734 = vmatpush1.msra.mxu0 0.0
        %1735 = vmatprep.subr.mxu0 0.0
        %1736 = vmatpush1.msra.mxu0 0.0
        %1737 = vmatprep.subr.mxu0 0.0
        %1738 = vmatpush1.msra.mxu0 0.0
        %1739 = vmatprep.subr.mxu0 0.0
        %1740 = vmatpush1.msra.mxu0 0.0
        %1741 = vmatprep.subr.mxu0 0.0
        %1742 = vmatpush1.msra.mxu0 0.0
        %1743 = vmatprep.subr.mxu0 0.0
        %1744 = vmatpush1.msra.mxu0 0.0
        %1745 = vmatprep.subr.mxu0 0.0
        %1746 = vmatpush1.msra.mxu0 0.0
        %1747 = vmatprep.subr.mxu0 0.0
        %1748 = vmatpush1.msra.mxu0 0.0
        %1749 = vmatprep.subr.mxu0 0.0
        %1750 = vmatpush1.msra.mxu0 0.0
        %1751 = vmatprep.subr.mxu0 0.0
        %1752 = vmatpush1.msra.mxu0 0.0
        %1753 = vmatprep.subr.mxu0 0.0
        %1754 = vmatpush1.msra.mxu0 0.0
        %1755 = vmatprep.subr.mxu0 0.0
        %1756 = vmatpush1.msra.mxu0 0.0
        %1757 = vmatprep.subr.mxu0 0.0
        %1758 = vmatpush1.msra.mxu0 0.0
        %1759 = vmatprep.subr.mxu0 0.0
        %1760 = vmatpush1.msra.mxu0 0.0
        %1761 = vmatprep.subr.mxu0 0.0
        %1762 = vmatpush1.msra.mxu0 0.0
        %1763 = vmatprep.subr.mxu0 0.0
        %1764 = vmatpush1.msra.mxu0 0.0
        %1765 = vmatprep.subr.mxu0 0.0
        %1766 = vmatpush1.msra.mxu0 0.0
        %1767 = vmatprep.subr.mxu0 0.0
        %1768 = vmatpush1.msra.mxu0 0.0
        %1769 = vmatprep.subr.mxu0 0.0
        %1770 = vmatpush1.msra.mxu0 0.0
        %1771 = vmatprep.subr.mxu0 0.0
        %1772 = vmatpush1.msra.mxu0 0.0
        %1773 = vmatprep.subr.mxu0 0.0
        %1774 = vmatpush1.msra.mxu0 0.0
        %1775 = vmatprep.subr.mxu0 0.0
        %1776 = vmatpush1.msra.mxu0 0.0
        %1777 = vmatprep.subr.mxu0 0.0
        %1778 = vmatpush1.msra.mxu0 0.0
        %1779 = vmatprep.subr.mxu0 0.0
        %1780 = vmatpush1.msra.mxu0 0.0
        %1781 = vmatprep.mubr.f32.mxu0 0.0
        %1782 = vmatmul.mubr.f32.gmra.mrb[0].mxu0 %v1439
        %v1783 = vpop.f32.mrb[0].mxu0
        %v1784 = vadd.f32 %v1424, %v1783
        %v1785 = vpop.f32.mrb[0].mxu0
        %v1786 = vadd.f32 %v1424, %v1785
        %1787 = vmatprep.mubr.f32.mxu0 0.0
        %1788 = vmatmul.mubr.f32.gmra.mrb[0].mxu0 %v1442
        %v1789 = vpop.f32.mrb[0].mxu0
        %v1790 = vadd.f32 %v1428, %v1789
        %v1791 = vpop.f32.mrb[0].mxu0
        %v1792 = vadd.f32 %v1428, %v1791
        %1793 = vmatprep.mubr.f32.mxu0 0.0
        %1794 = vmatmul.mubr.f32.gmra.mrb[0].mxu0 %v1445
        %v1795 = vpop.f32.mrb[0].mxu0
        %v1796 = vadd.f32 %v1432, %v1795
        %v1797 = vpop.f32.mrb[0].mxu0
        %v1798 = vadd.f32 %v1432, %v1797
        %1799 = vmatprep.mubr.f32.mxu0 0.0
        %1800 = vmatmul.mubr.f32.gmra.mrb[0].mxu0 %v1448
        %v1801 = vpop.f32.mrb[0].mxu0
        %v1802 = vadd.f32 %v1436, %v1801
        %v1803 = vpop.f32.mrb[0].mxu0
        %v1804 = vadd.f32 %v1436, %v1803
        %1805 = vdwg.mxu0
        %v1806 = vmax.f32 %v1517, 0.0
        %v1807 = vmax.f32 %v1519, 0.0
        %v1808 = vmax.f32 %v1606, 0.0
        %v1809 = vmax.f32 %v1608, 0.0
        %v1810 = vmax.f32 %v1695, 0.0
        %v1811 = vmax.f32 %v1697, 0.0
        %v1812 = vmax.f32 %v1784, 0.0
        %v1813 = vmax.f32 %v1786, 0.0
        %s1814 = scalar_lea.vmem %s500, 64
        %v1815 = vld [vmem:[%s1814] sm:$0xff]
        %v1816 = vld [vmem:[%s1814 + $0x8] sm:$0xff]
        %v1817 = vld [vmem:[%s1814 + $0x10] sm:$0xff]
        %v1818 = vld [vmem:[%s1814 + $0x18] sm:$0xff]
        %v1819 = vld [vmem:[%s505] sm:$0xff]
        %v1820 = vld [vmem:[%s505 + $0x8] sm:$0xff]
        %v1821 = vld [vmem:[%s505 + $0x10] sm:$0xff]
        %v1822 = vld [vmem:[%s505 + $0x18] sm:$0xff]
        %vm1823 = vcmask 130048
        %v1825 = vsel %vm1823, %v1819, 0
        %v1828 = vsel %vm1823, %v1820, 0
        %v1831 = vsel %vm1823, %v1821, 0
        %v1834 = vsel %vm1823, %v1822, 0
        %1836 = vmatprep.subr.mxu0 %v553
        %1837 = vmatpush1.msra.mxu0 %v552
        %1838 = vmatprep.subr.mxu0 %v561
        %1839 = vmatpush1.msra.mxu0 %v560
        %1840 = vmatprep.subr.mxu0 0.0
        %1841 = vmatpush1.msra.mxu0 0.0
        %1842 = vmatprep.subr.mxu0 0.0
        %1843 = vmatpush1.msra.mxu0 0.0
        %1844 = vmatprep.subr.mxu0 0.0
        %1845 = vmatpush1.msra.mxu0 0.0
        %1846 = vmatprep.subr.mxu0 0.0
        %1847 = vmatpush1.msra.mxu0 0.0
        %1848 = vmatprep.subr.mxu0 0.0
        %1849 = vmatpush1.msra.mxu0 0.0
        %1850 = vmatprep.subr.mxu0 0.0
        %1851 = vmatpush1.msra.mxu0 0.0
        %1852 = vmatprep.subr.mxu0 0.0
        %1853 = vmatpush1.msra.mxu0 0.0
        %1854 = vmatprep.subr.mxu0 0.0
        %1855 = vmatpush1.msra.mxu0 0.0
        %1856 = vmatprep.subr.mxu0 0.0
        %1857 = vmatpush1.msra.mxu0 0.0
        %1858 = vmatprep.subr.mxu0 0.0
        %1859 = vmatpush1.msra.mxu0 0.0
        %1860 = vmatprep.subr.mxu0 0.0
        %1861 = vmatpush1.msra.mxu0 0.0
        %1862 = vmatprep.subr.mxu0 0.0
        %1863 = vmatpush1.msra.mxu0 0.0
        %1864 = vmatprep.subr.mxu0 0.0
        %1865 = vmatpush1.msra.mxu0 0.0
        %1866 = vmatprep.subr.mxu0 0.0
        %1867 = vmatpush1.msra.mxu0 0.0
        %1868 = vmatprep.subr.mxu0 0.0
        %1869 = vmatpush1.msra.mxu0 0.0
        %1870 = vmatprep.subr.mxu0 0.0
        %1871 = vmatpush1.msra.mxu0 0.0
        %1872 = vmatprep.subr.mxu0 0.0
        %1873 = vmatpush1.msra.mxu0 0.0
        %1874 = vmatprep.subr.mxu0 0.0
        %1875 = vmatpush1.msra.mxu0 0.0
        %1876 = vmatprep.subr.mxu0 0.0
        %1877 = vmatpush1.msra.mxu0 0.0
        %1878 = vmatprep.subr.mxu0 0.0
        %1879 = vmatpush1.msra.mxu0 0.0
        %1880 = vmatprep.subr.mxu0 0.0
        %1881 = vmatpush1.msra.mxu0 0.0
        %1882 = vmatprep.subr.mxu0 0.0
        %1883 = vmatpush1.msra.mxu0 0.0
        %1884 = vmatprep.subr.mxu0 0.0
        %1885 = vmatpush1.msra.mxu0 0.0
        %1886 = vmatprep.subr.mxu0 0.0
        %1887 = vmatpush1.msra.mxu0 0.0
        %1888 = vmatprep.subr.mxu0 0.0
        %1889 = vmatpush1.msra.mxu0 0.0
        %1890 = vmatprep.subr.mxu0 0.0
        %1891 = vmatpush1.msra.mxu0 0.0
        %1892 = vmatprep.subr.mxu0 0.0
        %1893 = vmatpush1.msra.mxu0 0.0
        %1894 = vmatprep.subr.mxu0 0.0
        %1895 = vmatpush1.msra.mxu0 0.0
        %1896 = vmatprep.subr.mxu0 0.0
        %1897 = vmatpush1.msra.mxu0 0.0
        %1898 = vmatprep.subr.mxu0 0.0
        %1899 = vmatpush1.msra.mxu0 0.0
        %1900 = vmatprep.mubr.f32.mxu0 0.0
        %1901 = vmatmul.mubr.f32.gmra.mrb[0].mxu0 %v1825
        %v1902 = vpop.f32.mrb[0].mxu0
        %v1903 = vadd.f32 0.0, %v1902
        %v1904 = vpop.f32.mrb[0].mxu0
        %v1905 = vadd.f32 0.0, %v1904
        %1906 = vmatprep.mubr.f32.mxu0 0.0
        %1907 = vmatmul.mubr.f32.gmra.mrb[0].mxu0 %v1828
        %v1908 = vpop.f32.mrb[0].mxu0
        %v1909 = vadd.f32 0.0, %v1908
        %v1910 = vpop.f32.mrb[0].mxu0
        %v1911 = vadd.f32 0.0, %v1910
        %1912 = vmatprep.mubr.f32.mxu0 0.0
        %1913 = vmatmul.mubr.f32.gmra.mrb[0].mxu0 %v1831
        %v1914 = vpop.f32.mrb[0].mxu0
        %v1915 = vadd.f32 0.0, %v1914
        %v1916 = vpop.f32.mrb[0].mxu0
        %v1917 = vadd.f32 0.0, %v1916
        %1918 = vmatprep.mubr.f32.mxu0 0.0
        %1919 = vmatmul.mubr.f32.gmra.mrb[0].mxu0 %v1834
        %v1920 = vpop.f32.mrb[0].mxu0
        %v1921 = vadd.f32 0.0, %v1920
        %v1922 = vpop.f32.mrb[0].mxu0
        %v1923 = vadd.f32 0.0, %v1922
        %1924 = vdwg.mxu0
        %1925 = vmatprep.subr.mxu0 %v555
        %1926 = vmatpush1.msra.mxu0 %v554
        %1927 = vmatprep.subr.mxu0 %v563
        %1928 = vmatpush1.msra.mxu0 %v562
        %1929 = vmatprep.subr.mxu0 0.0
        %1930 = vmatpush1.msra.mxu0 0.0
        %1931 = vmatprep.subr.mxu0 0.0
        %1932 = vmatpush1.msra.mxu0 0.0
        %1933 = vmatprep.subr.mxu0 0.0
        %1934 = vmatpush1.msra.mxu0 0.0
        %1935 = vmatprep.subr.mxu0 0.0
        %1936 = vmatpush1.msra.mxu0 0.0
        %1937 = vmatprep.subr.mxu0 0.0
        %1938 = vmatpush1.msra.mxu0 0.0
        %1939 = vmatprep.subr.mxu0 0.0
        %1940 = vmatpush1.msra.mxu0 0.0
        %1941 = vmatprep.subr.mxu0 0.0
        %1942 = vmatpush1.msra.mxu0 0.0
        %1943 = vmatprep.subr.mxu0 0.0
        %1944 = vmatpush1.msra.mxu0 0.0
        %1945 = vmatprep.subr.mxu0 0.0
        %1946 = vmatpush1.msra.mxu0 0.0
        %1947 = vmatprep.subr.mxu0 0.0
        %1948 = vmatpush1.msra.mxu0 0.0
        %1949 = vmatprep.subr.mxu0 0.0
        %1950 = vmatpush1.msra.mxu0 0.0
        %1951 = vmatprep.subr.mxu0 0.0
        %1952 = vmatpush1.msra.mxu0 0.0
        %1953 = vmatprep.subr.mxu0 0.0
        %1954 = vmatpush1.msra.mxu0 0.0
        %1955 = vmatprep.subr.mxu0 0.0
        %1956 = vmatpush1.msra.mxu0 0.0
        %1957 = vmatprep.subr.mxu0 0.0
        %1958 = vmatpush1.msra.mxu0 0.0
        %1959 = vmatprep.subr.mxu0 0.0
        %1960 = vmatpush1.msra.mxu0 0.0
        %1961 = vmatprep.subr.mxu0 0.0
        %1962 = vmatpush1.msra.mxu0 0.0
        %1963 = vmatprep.subr.mxu0 0.0
        %1964 = vmatpush1.msra.mxu0 0.0
        %1965 = vmatprep.subr.mxu0 0.0
        %1966 = vmatpush1.msra.mxu0 0.0
        %1967 = vmatprep.subr.mxu0 0.0
        %1968 = vmatpush1.msra.mxu0 0.0
        %1969 = vmatprep.subr.mxu0 0.0
        %1970 = vmatpush1.msra.mxu0 0.0
        %1971 = vmatprep.subr.mxu0 0.0
        %1972 = vmatpush1.msra.mxu0 0.0
        %1973 = vmatprep.subr.mxu0 0.0
        %1974 = vmatpush1.msra.mxu0 0.0
        %1975 = vmatprep.subr.mxu0 0.0
        %1976 = vmatpush1.msra.mxu0 0.0
        %1977 = vmatprep.subr.mxu0 0.0
        %1978 = vmatpush1.msra.mxu0 0.0
        %1979 = vmatprep.subr.mxu0 0.0
        %1980 = vmatpush1.msra.mxu0 0.0
        %1981 = vmatprep.subr.mxu0 0.0
        %1982 = vmatpush1.msra.mxu0 0.0
        %1983 = vmatprep.subr.mxu0 0.0
        %1984 = vmatpush1.msra.mxu0 0.0
        %1985 = vmatprep.subr.mxu0 0.0
        %1986 = vmatpush1.msra.mxu0 0.0
        %1987 = vmatprep.subr.mxu0 0.0
        %1988 = vmatpush1.msra.mxu0 0.0
        %1989 = vmatprep.mubr.f32.mxu0 0.0
        %1990 = vmatmul.mubr.f32.gmra.mrb[0].mxu0 %v1825
        %v1991 = vpop.f32.mrb[0].mxu0
        %v1992 = vadd.f32 0.0, %v1991
        %v1993 = vpop.f32.mrb[0].mxu0
        %v1994 = vadd.f32 0.0, %v1993
        %1995 = vmatprep.mubr.f32.mxu0 0.0
        %1996 = vmatmul.mubr.f32.gmra.mrb[0].mxu0 %v1828
        %v1997 = vpop.f32.mrb[0].mxu0
        %v1998 = vadd.f32 0.0, %v1997
        %v1999 = vpop.f32.mrb[0].mxu0
        %v2000 = vadd.f32 0.0, %v1999
        %2001 = vmatprep.mubr.f32.mxu0 0.0
        %2002 = vmatmul.mubr.f32.gmra.mrb[0].mxu0 %v1831
        %v2003 = vpop.f32.mrb[0].mxu0
        %v2004 = vadd.f32 0.0, %v2003
        %v2005 = vpop.f32.mrb[0].mxu0
        %v2006 = vadd.f32 0.0, %v2005
        %2007 = vmatprep.mubr.f32.mxu0 0.0
        %2008 = vmatmul.mubr.f32.gmra.mrb[0].mxu0 %v1834
        %v2009 = vpop.f32.mrb[0].mxu0
        %v2010 = vadd.f32 0.0, %v2009
        %v2011 = vpop.f32.mrb[0].mxu0
        %v2012 = vadd.f32 0.0, %v2011
        %2013 = vdwg.mxu0
        %2014 = vmatprep.subr.mxu0 %v557
        %2015 = vmatpush1.msra.mxu0 %v556
        %2016 = vmatprep.subr.mxu0 %v565
        %2017 = vmatpush1.msra.mxu0 %v564
        %2018 = vmatprep.subr.mxu0 0.0
        %2019 = vmatpush1.msra.mxu0 0.0
        %2020 = vmatprep.subr.mxu0 0.0
        %2021 = vmatpush1.msra.mxu0 0.0
        %2022 = vmatprep.subr.mxu0 0.0
        %2023 = vmatpush1.msra.mxu0 0.0
        %2024 = vmatprep.subr.mxu0 0.0
        %2025 = vmatpush1.msra.mxu0 0.0
        %2026 = vmatprep.subr.mxu0 0.0
        %2027 = vmatpush1.msra.mxu0 0.0
        %2028 = vmatprep.subr.mxu0 0.0
        %2029 = vmatpush1.msra.mxu0 0.0
        %2030 = vmatprep.subr.mxu0 0.0
        %2031 = vmatpush1.msra.mxu0 0.0
        %2032 = vmatprep.subr.mxu0 0.0
        %2033 = vmatpush1.msra.mxu0 0.0
        %2034 = vmatprep.subr.mxu0 0.0
        %2035 = vmatpush1.msra.mxu0 0.0
        %2036 = vmatprep.subr.mxu0 0.0
        %2037 = vmatpush1.msra.mxu0 0.0
        %2038 = vmatprep.subr.mxu0 0.0
        %2039 = vmatpush1.msra.mxu0 0.0
        %2040 = vmatprep.subr.mxu0 0.0
        %2041 = vmatpush1.msra.mxu0 0.0
        %2042 = vmatprep.subr.mxu0 0.0
        %2043 = vmatpush1.msra.mxu0 0.0
        %2044 = vmatprep.subr.mxu0 0.0
        %2045 = vmatpush1.msra.mxu0 0.0
        %2046 = vmatprep.subr.mxu0 0.0
        %2047 = vmatpush1.msra.mxu0 0.0
        %2048 = vmatprep.subr.mxu0 0.0
        %2049 = vmatpush1.msra.mxu0 0.0
        %2050 = vmatprep.subr.mxu0 0.0
        %2051 = vmatpush1.msra.mxu0 0.0
        %2052 = vmatprep.subr.mxu0 0.0
        %2053 = vmatpush1.msra.mxu0 0.0
        %2054 = vmatprep.subr.mxu0 0.0
        %2055 = vmatpush1.msra.mxu0 0.0
        %2056 = vmatprep.subr.mxu0 0.0
        %2057 = vmatpush1.msra.mxu0 0.0
        %2058 = vmatprep.subr.mxu0 0.0
        %2059 = vmatpush1.msra.mxu0 0.0
        %2060 = vmatprep.subr.mxu0 0.0
        %2061 = vmatpush1.msra.mxu0 0.0
        %2062 = vmatprep.subr.mxu0 0.0
        %2063 = vmatpush1.msra.mxu0 0.0
        %2064 = vmatprep.subr.mxu0 0.0
        %2065 = vmatpush1.msra.mxu0 0.0
        %2066 = vmatprep.subr.mxu0 0.0
        %2067 = vmatpush1.msra.mxu0 0.0
        %2068 = vmatprep.subr.mxu0 0.0
        %2069 = vmatpush1.msra.mxu0 0.0
        %2070 = vmatprep.subr.mxu0 0.0
        %2071 = vmatpush1.msra.mxu0 0.0
        %2072 = vmatprep.subr.mxu0 0.0
        %2073 = vmatpush1.msra.mxu0 0.0
        %2074 = vmatprep.subr.mxu0 0.0
        %2075 = vmatpush1.msra.mxu0 0.0
        %2076 = vmatprep.subr.mxu0 0.0
        %2077 = vmatpush1.msra.mxu0 0.0
        %2078 = vmatprep.mubr.f32.mxu0 0.0
        %2079 = vmatmul.mubr.f32.gmra.mrb[0].mxu0 %v1825
        %v2080 = vpop.f32.mrb[0].mxu0
        %v2081 = vadd.f32 0.0, %v2080
        %v2082 = vpop.f32.mrb[0].mxu0
        %v2083 = vadd.f32 0.0, %v2082
        %2084 = vmatprep.mubr.f32.mxu0 0.0
        %2085 = vmatmul.mubr.f32.gmra.mrb[0].mxu0 %v1828
        %v2086 = vpop.f32.mrb[0].mxu0
        %v2087 = vadd.f32 0.0, %v2086
        %v2088 = vpop.f32.mrb[0].mxu0
        %v2089 = vadd.f32 0.0, %v2088
        %2090 = vmatprep.mubr.f32.mxu0 0.0
        %2091 = vmatmul.mubr.f32.gmra.mrb[0].mxu0 %v1831
        %v2092 = vpop.f32.mrb[0].mxu0
        %v2093 = vadd.f32 0.0, %v2092
        %v2094 = vpop.f32.mrb[0].mxu0
        %v2095 = vadd.f32 0.0, %v2094
        %2096 = vmatprep.mubr.f32.mxu0 0.0
        %2097 = vmatmul.mubr.f32.gmra.mrb[0].mxu0 %v1834
        %v2098 = vpop.f32.mrb[0].mxu0
        %v2099 = vadd.f32 0.0, %v2098
        %v2100 = vpop.f32.mrb[0].mxu0
        %v2101 = vadd.f32 0.0, %v2100
        %2102 = vdwg.mxu0
        %2103 = vmatprep.subr.mxu0 %v559
        %2104 = vmatpush1.msra.mxu0 %v558
        %2105 = vmatprep.subr.mxu0 %v567
        %2106 = vmatpush1.msra.mxu0 %v566
        %2107 = vmatprep.subr.mxu0 0.0
        %2108 = vmatpush1.msra.mxu0 0.0
        %2109 = vmatprep.subr.mxu0 0.0
        %2110 = vmatpush1.msra.mxu0 0.0
        %2111 = vmatprep.subr.mxu0 0.0
        %2112 = vmatpush1.msra.mxu0 0.0
        %2113 = vmatprep.subr.mxu0 0.0
        %2114 = vmatpush1.msra.mxu0 0.0
        %2115 = vmatprep.subr.mxu0 0.0
        %2116 = vmatpush1.msra.mxu0 0.0
        %2117 = vmatprep.subr.mxu0 0.0
        %2118 = vmatpush1.msra.mxu0 0.0
        %2119 = vmatprep.subr.mxu0 0.0
        %2120 = vmatpush1.msra.mxu0 0.0
        %2121 = vmatprep.subr.mxu0 0.0
        %2122 = vmatpush1.msra.mxu0 0.0
        %2123 = vmatprep.subr.mxu0 0.0
        %2124 = vmatpush1.msra.mxu0 0.0
        %2125 = vmatprep.subr.mxu0 0.0
        %2126 = vmatpush1.msra.mxu0 0.0
        %2127 = vmatprep.subr.mxu0 0.0
        %2128 = vmatpush1.msra.mxu0 0.0
        %2129 = vmatprep.subr.mxu0 0.0
        %2130 = vmatpush1.msra.mxu0 0.0
        %2131 = vmatprep.subr.mxu0 0.0
        %2132 = vmatpush1.msra.mxu0 0.0
        %2133 = vmatprep.subr.mxu0 0.0
        %2134 = vmatpush1.msra.mxu0 0.0
        %2135 = vmatprep.subr.mxu0 0.0
        %2136 = vmatpush1.msra.mxu0 0.0
        %2137 = vmatprep.subr.mxu0 0.0
        %2138 = vmatpush1.msra.mxu0 0.0
        %2139 = vmatprep.subr.mxu0 0.0
        %2140 = vmatpush1.msra.mxu0 0.0
        %2141 = vmatprep.subr.mxu0 0.0
        %2142 = vmatpush1.msra.mxu0 0.0
        %2143 = vmatprep.subr.mxu0 0.0
        %2144 = vmatpush1.msra.mxu0 0.0
        %2145 = vmatprep.subr.mxu0 0.0
        %2146 = vmatpush1.msra.mxu0 0.0
        %2147 = vmatprep.subr.mxu0 0.0
        %2148 = vmatpush1.msra.mxu0 0.0
        %2149 = vmatprep.subr.mxu0 0.0
        %2150 = vmatpush1.msra.mxu0 0.0
        %2151 = vmatprep.subr.mxu0 0.0
        %2152 = vmatpush1.msra.mxu0 0.0
        %2153 = vmatprep.subr.mxu0 0.0
        %2154 = vmatpush1.msra.mxu0 0.0
        %2155 = vmatprep.subr.mxu0 0.0
        %2156 = vmatpush1.msra.mxu0 0.0
        %2157 = vmatprep.subr.mxu0 0.0
        %2158 = vmatpush1.msra.mxu0 0.0
        %2159 = vmatprep.subr.mxu0 0.0
        %2160 = vmatpush1.msra.mxu0 0.0
        %2161 = vmatprep.subr.mxu0 0.0
        %2162 = vmatpush1.msra.mxu0 0.0
        %2163 = vmatprep.subr.mxu0 0.0
        %2164 = vmatpush1.msra.mxu0 0.0
        %2165 = vmatprep.subr.mxu0 0.0
        %2166 = vmatpush1.msra.mxu0 0.0
        %2167 = vmatprep.mubr.f32.mxu0 0.0
        %2168 = vmatmul.mubr.f32.gmra.mrb[0].mxu0 %v1825
        %v2169 = vpop.f32.mrb[0].mxu0
        %v2170 = vadd.f32 0.0, %v2169
        %v2171 = vpop.f32.mrb[0].mxu0
        %v2172 = vadd.f32 0.0, %v2171
        %2173 = vmatprep.mubr.f32.mxu0 0.0
        %2174 = vmatmul.mubr.f32.gmra.mrb[0].mxu0 %v1828
        %v2175 = vpop.f32.mrb[0].mxu0
        %v2176 = vadd.f32 0.0, %v2175
        %v2177 = vpop.f32.mrb[0].mxu0
        %v2178 = vadd.f32 0.0, %v2177
        %2179 = vmatprep.mubr.f32.mxu0 0.0
        %2180 = vmatmul.mubr.f32.gmra.mrb[0].mxu0 %v1831
        %v2181 = vpop.f32.mrb[0].mxu0
        %v2182 = vadd.f32 0.0, %v2181
        %v2183 = vpop.f32.mrb[0].mxu0
        %v2184 = vadd.f32 0.0, %v2183
        %2185 = vmatprep.mubr.f32.mxu0 0.0
        %2186 = vmatmul.mubr.f32.gmra.mrb[0].mxu0 %v1834
        %v2187 = vpop.f32.mrb[0].mxu0
        %v2188 = vadd.f32 0.0, %v2187
        %v2189 = vpop.f32.mrb[0].mxu0
        %v2190 = vadd.f32 0.0, %v2189
        %2191 = vdwg.mxu0
        %v2193 = vsel %vm596, %v1815, 0
        %v2196 = vsel %vm596, %v1816, 0
        %v2199 = vsel %vm596, %v1817, 0
        %v2202 = vsel %vm596, %v1818, 0
        %2204 = vmatprep.subr.mxu0 %v1519
        %2205 = vmatpush1.msra.mxu0 %v1517
        %2206 = vmatprep.subr.mxu0 %v1525
        %2207 = vmatpush1.msra.mxu0 %v1523
        %2208 = vmatprep.subr.mxu0 %v1531
        %2209 = vmatpush1.msra.mxu0 %v1529
        %2210 = vmatprep.subr.mxu0 %v1537
        %2211 = vmatpush1.msra.mxu0 %v1535
        %2212 = vmatprep.subr.mxu0 0.0
        %2213 = vmatpush1.msra.mxu0 0.0
        %2214 = vmatprep.subr.mxu0 0.0
        %2215 = vmatpush1.msra.mxu0 0.0
        %2216 = vmatprep.subr.mxu0 0.0
        %2217 = vmatpush1.msra.mxu0 0.0
        %2218 = vmatprep.subr.mxu0 0.0
        %2219 = vmatpush1.msra.mxu0 0.0
        %2220 = vmatprep.subr.mxu0 0.0
        %2221 = vmatpush1.msra.mxu0 0.0
        %2222 = vmatprep.subr.mxu0 0.0
        %2223 = vmatpush1.msra.mxu0 0.0
        %2224 = vmatprep.subr.mxu0 0.0
        %2225 = vmatpush1.msra.mxu0 0.0
        %2226 = vmatprep.subr.mxu0 0.0
        %2227 = vmatpush1.msra.mxu0 0.0
        %2228 = vmatprep.subr.mxu0 0.0
        %2229 = vmatpush1.msra.mxu0 0.0
        %2230 = vmatprep.subr.mxu0 0.0
        %2231 = vmatpush1.msra.mxu0 0.0
        %2232 = vmatprep.subr.mxu0 0.0
        %2233 = vmatpush1.msra.mxu0 0.0
        %2234 = vmatprep.subr.mxu0 0.0
        %2235 = vmatpush1.msra.mxu0 0.0
        %2236 = vmatprep.subr.mxu0 0.0
        %2237 = vmatpush1.msra.mxu0 0.0
        %2238 = vmatprep.subr.mxu0 0.0
        %2239 = vmatpush1.msra.mxu0 0.0
        %2240 = vmatprep.subr.mxu0 0.0
        %2241 = vmatpush1.msra.mxu0 0.0
        %2242 = vmatprep.subr.mxu0 0.0
        %2243 = vmatpush1.msra.mxu0 0.0
        %2244 = vmatprep.subr.mxu0 0.0
        %2245 = vmatpush1.msra.mxu0 0.0
        %2246 = vmatprep.subr.mxu0 0.0
        %2247 = vmatpush1.msra.mxu0 0.0
        %2248 = vmatprep.subr.mxu0 0.0
        %2249 = vmatpush1.msra.mxu0 0.0
        %2250 = vmatprep.subr.mxu0 0.0
        %2251 = vmatpush1.msra.mxu0 0.0
        %2252 = vmatprep.subr.mxu0 0.0
        %2253 = vmatpush1.msra.mxu0 0.0
        %2254 = vmatprep.subr.mxu0 0.0
        %2255 = vmatpush1.msra.mxu0 0.0
        %2256 = vmatprep.subr.mxu0 0.0
        %2257 = vmatpush1.msra.mxu0 0.0
        %2258 = vmatprep.subr.mxu0 0.0
        %2259 = vmatpush1.msra.mxu0 0.0
        %2260 = vmatprep.subr.mxu0 0.0
        %2261 = vmatpush1.msra.mxu0 0.0
        %2262 = vmatprep.subr.mxu0 0.0
        %2263 = vmatpush1.msra.mxu0 0.0
        %2264 = vmatprep.subr.mxu0 0.0
        %2265 = vmatpush1.msra.mxu0 0.0
        %2266 = vmatprep.subr.mxu0 0.0
        %2267 = vmatpush1.msra.mxu0 0.0
        %2268 = vmatprep.mubr.f32.mxu0 0.0
        %2269 = vmatmul.mubr.f32.gmra.mrb[0].mxu0 %v2193
        %v2270 = vpop.f32.mrb[0].mxu0
        %v2271 = vadd.f32 %v1903, %v2270
        %v2272 = vpop.f32.mrb[0].mxu0
        %v2273 = vadd.f32 %v1905, %v2272
        %2274 = vmatprep.mubr.f32.mxu0 0.0
        %2275 = vmatmul.mubr.f32.gmra.mrb[0].mxu0 %v2196
        %v2276 = vpop.f32.mrb[0].mxu0
        %v2277 = vadd.f32 %v1909, %v2276
        %v2278 = vpop.f32.mrb[0].mxu0
        %v2279 = vadd.f32 %v1911, %v2278
        %2280 = vmatprep.mubr.f32.mxu0 0.0
        %2281 = vmatmul.mubr.f32.gmra.mrb[0].mxu0 %v2199
        %v2282 = vpop.f32.mrb[0].mxu0
        %v2283 = vadd.f32 %v1915, %v2282
        %v2284 = vpop.f32.mrb[0].mxu0
        %v2285 = vadd.f32 %v1917, %v2284
        %2286 = vmatprep.mubr.f32.mxu0 0.0
        %2287 = vmatmul.mubr.f32.gmra.mrb[0].mxu0 %v2202
        %v2288 = vpop.f32.mrb[0].mxu0
        %v2289 = vadd.f32 %v1921, %v2288
        %v2290 = vpop.f32.mrb[0].mxu0
        %v2291 = vadd.f32 %v1923, %v2290
        %2292 = vdwg.mxu0
        %2293 = vmatprep.subr.mxu0 %v1608
        %2294 = vmatpush1.msra.mxu0 %v1606
        %2295 = vmatprep.subr.mxu0 %v1614
        %2296 = vmatpush1.msra.mxu0 %v1612
        %2297 = vmatprep.subr.mxu0 %v1620
        %2298 = vmatpush1.msra.mxu0 %v1618
        %2299 = vmatprep.subr.mxu0 %v1626
        %2300 = vmatpush1.msra.mxu0 %v1624
        %2301 = vmatprep.subr.mxu0 0.0
        %2302 = vmatpush1.msra.mxu0 0.0
        %2303 = vmatprep.subr.mxu0 0.0
        %2304 = vmatpush1.msra.mxu0 0.0
        %2305 = vmatprep.subr.mxu0 0.0
        %2306 = vmatpush1.msra.mxu0 0.0
        %2307 = vmatprep.subr.mxu0 0.0
        %2308 = vmatpush1.msra.mxu0 0.0
        %2309 = vmatprep.subr.mxu0 0.0
        %2310 = vmatpush1.msra.mxu0 0.0
        %2311 = vmatprep.subr.mxu0 0.0
        %2312 = vmatpush1.msra.mxu0 0.0
        %2313 = vmatprep.subr.mxu0 0.0
        %2314 = vmatpush1.msra.mxu0 0.0
        %2315 = vmatprep.subr.mxu0 0.0
        %2316 = vmatpush1.msra.mxu0 0.0
        %2317 = vmatprep.subr.mxu0 0.0
        %2318 = vmatpush1.msra.mxu0 0.0
        %2319 = vmatprep.subr.mxu0 0.0
        %2320 = vmatpush1.msra.mxu0 0.0
        %2321 = vmatprep.subr.mxu0 0.0
        %2322 = vmatpush1.msra.mxu0 0.0
        %2323 = vmatprep.subr.mxu0 0.0
        %2324 = vmatpush1.msra.mxu0 0.0
        %2325 = vmatprep.subr.mxu0 0.0
        %2326 = vmatpush1.msra.mxu0 0.0
        %2327 = vmatprep.subr.mxu0 0.0
        %2328 = vmatpush1.msra.mxu0 0.0
        %2329 = vmatprep.subr.mxu0 0.0
        %2330 = vmatpush1.msra.mxu0 0.0
        %2331 = vmatprep.subr.mxu0 0.0
        %2332 = vmatpush1.msra.mxu0 0.0
        %2333 = vmatprep.subr.mxu0 0.0
        %2334 = vmatpush1.msra.mxu0 0.0
        %2335 = vmatprep.subr.mxu0 0.0
        %2336 = vmatpush1.msra.mxu0 0.0
        %2337 = vmatprep.subr.mxu0 0.0
        %2338 = vmatpush1.msra.mxu0 0.0
        %2339 = vmatprep.subr.mxu0 0.0
        %2340 = vmatpush1.msra.mxu0 0.0
        %2341 = vmatprep.subr.mxu0 0.0
        %2342 = vmatpush1.msra.mxu0 0.0
        %2343 = vmatprep.subr.mxu0 0.0
        %2344 = vmatpush1.msra.mxu0 0.0
        %2345 = vmatprep.subr.mxu0 0.0
        %2346 = vmatpush1.msra.mxu0 0.0
        %2347 = vmatprep.subr.mxu0 0.0
        %2348 = vmatpush1.msra.mxu0 0.0
        %2349 = vmatprep.subr.mxu0 0.0
        %2350 = vmatpush1.msra.mxu0 0.0
        %2351 = vmatprep.subr.mxu0 0.0
        %2352 = vmatpush1.msra.mxu0 0.0
        %2353 = vmatprep.subr.mxu0 0.0
        %2354 = vmatpush1.msra.mxu0 0.0
        %2355 = vmatprep.subr.mxu0 0.0
        %2356 = vmatpush1.msra.mxu0 0.0
        %2357 = vmatprep.mubr.f32.mxu0 0.0
        %2358 = vmatmul.mubr.f32.gmra.mrb[0].mxu0 %v2193
        %v2359 = vpop.f32.mrb[0].mxu0
        %v2360 = vadd.f32 %v1992, %v2359
        %v2361 = vpop.f32.mrb[0].mxu0
        %v2362 = vadd.f32 %v1994, %v2361
        %2363 = vmatprep.mubr.f32.mxu0 0.0
        %2364 = vmatmul.mubr.f32.gmra.mrb[0].mxu0 %v2196
        %v2365 = vpop.f32.mrb[0].mxu0
        %v2366 = vadd.f32 %v1998, %v2365
        %v2367 = vpop.f32.mrb[0].mxu0
        %v2368 = vadd.f32 %v2000, %v2367
        %2369 = vmatprep.mubr.f32.mxu0 0.0
        %2370 = vmatmul.mubr.f32.gmra.mrb[0].mxu0 %v2199
        %v2371 = vpop.f32.mrb[0].mxu0
        %v2372 = vadd.f32 %v2004, %v2371
        %v2373 = vpop.f32.mrb[0].mxu0
        %v2374 = vadd.f32 %v2006, %v2373
        %2375 = vmatprep.mubr.f32.mxu0 0.0
        %2376 = vmatmul.mubr.f32.gmra.mrb[0].mxu0 %v2202
        %v2377 = vpop.f32.mrb[0].mxu0
        %v2378 = vadd.f32 %v2010, %v2377
        %v2379 = vpop.f32.mrb[0].mxu0
        %v2380 = vadd.f32 %v2012, %v2379
        %2381 = vdwg.mxu0
        %2382 = vmatprep.subr.mxu0 %v1697
        %2383 = vmatpush1.msra.mxu0 %v1695
        %2384 = vmatprep.subr.mxu0 %v1703
        %2385 = vmatpush1.msra.mxu0 %v1701
        %2386 = vmatprep.subr.mxu0 %v1709
        %2387 = vmatpush1.msra.mxu0 %v1707
        %2388 = vmatprep.subr.mxu0 %v1715
        %2389 = vmatpush1.msra.mxu0 %v1713
        %2390 = vmatprep.subr.mxu0 0.0
        %2391 = vmatpush1.msra.mxu0 0.0
        %2392 = vmatprep.subr.mxu0 0.0
        %2393 = vmatpush1.msra.mxu0 0.0
        %2394 = vmatprep.subr.mxu0 0.0
        %2395 = vmatpush1.msra.mxu0 0.0
        %2396 = vmatprep.subr.mxu0 0.0
        %2397 = vmatpush1.msra.mxu0 0.0
        %2398 = vmatprep.subr.mxu0 0.0
        %2399 = vmatpush1.msra.mxu0 0.0
        %2400 = vmatprep.subr.mxu0 0.0
        %2401 = vmatpush1.msra.mxu0 0.0
        %2402 = vmatprep.subr.mxu0 0.0
        %2403 = vmatpush1.msra.mxu0 0.0
        %2404 = vmatprep.subr.mxu0 0.0
        %2405 = vmatpush1.msra.mxu0 0.0
        %2406 = vmatprep.subr.mxu0 0.0
        %2407 = vmatpush1.msra.mxu0 0.0
        %2408 = vmatprep.subr.mxu0 0.0
        %2409 = vmatpush1.msra.mxu0 0.0
        %2410 = vmatprep.subr.mxu0 0.0
        %2411 = vmatpush1.msra.mxu0 0.0
        %2412 = vmatprep.subr.mxu0 0.0
        %2413 = vmatpush1.msra.mxu0 0.0
        %2414 = vmatprep.subr.mxu0 0.0
        %2415 = vmatpush1.msra.mxu0 0.0
        %2416 = vmatprep.subr.mxu0 0.0
        %2417 = vmatpush1.msra.mxu0 0.0
        %2418 = vmatprep.subr.mxu0 0.0
        %2419 = vmatpush1.msra.mxu0 0.0
        %2420 = vmatprep.subr.mxu0 0.0
        %2421 = vmatpush1.msra.mxu0 0.0
        %2422 = vmatprep.subr.mxu0 0.0
        %2423 = vmatpush1.msra.mxu0 0.0
        %2424 = vmatprep.subr.mxu0 0.0
        %2425 = vmatpush1.msra.mxu0 0.0
        %2426 = vmatprep.subr.mxu0 0.0
        %2427 = vmatpush1.msra.mxu0 0.0
        %2428 = vmatprep.subr.mxu0 0.0
        %2429 = vmatpush1.msra.mxu0 0.0
        %2430 = vmatprep.subr.mxu0 0.0
        %2431 = vmatpush1.msra.mxu0 0.0
        %2432 = vmatprep.subr.mxu0 0.0
        %2433 = vmatpush1.msra.mxu0 0.0
        %2434 = vmatprep.subr.mxu0 0.0
        %2435 = vmatpush1.msra.mxu0 0.0
        %2436 = vmatprep.subr.mxu0 0.0
        %2437 = vmatpush1.msra.mxu0 0.0
        %2438 = vmatprep.subr.mxu0 0.0
        %2439 = vmatpush1.msra.mxu0 0.0
        %2440 = vmatprep.subr.mxu0 0.0
        %2441 = vmatpush1.msra.mxu0 0.0
        %2442 = vmatprep.subr.mxu0 0.0
        %2443 = vmatpush1.msra.mxu0 0.0
        %2444 = vmatprep.subr.mxu0 0.0
        %2445 = vmatpush1.msra.mxu0 0.0
        %2446 = vmatprep.mubr.f32.mxu0 0.0
        %2447 = vmatmul.mubr.f32.gmra.mrb[0].mxu0 %v2193
        %v2448 = vpop.f32.mrb[0].mxu0
        %v2449 = vadd.f32 %v2081, %v2448
        %v2450 = vpop.f32.mrb[0].mxu0
        %v2451 = vadd.f32 %v2083, %v2450
        %2452 = vmatprep.mubr.f32.mxu0 0.0
        %2453 = vmatmul.mubr.f32.gmra.mrb[0].mxu0 %v2196
        %v2454 = vpop.f32.mrb[0].mxu0
        %v2455 = vadd.f32 %v2087, %v2454
        %v2456 = vpop.f32.mrb[0].mxu0
        %v2457 = vadd.f32 %v2089, %v2456
        %2458 = vmatprep.mubr.f32.mxu0 0.0
        %2459 = vmatmul.mubr.f32.gmra.mrb[0].mxu0 %v2199
        %v2460 = vpop.f32.mrb[0].mxu0
        %v2461 = vadd.f32 %v2093, %v2460
        %v2462 = vpop.f32.mrb[0].mxu0
        %v2463 = vadd.f32 %v2095, %v2462
        %2464 = vmatprep.mubr.f32.mxu0 0.0
        %2465 = vmatmul.mubr.f32.gmra.mrb[0].mxu0 %v2202
        %v2466 = vpop.f32.mrb[0].mxu0
        %v2467 = vadd.f32 %v2099, %v2466
        %v2468 = vpop.f32.mrb[0].mxu0
        %v2469 = vadd.f32 %v2101, %v2468
        %2470 = vdwg.mxu0
        %2471 = vmatprep.subr.mxu0 %v1786
        %2472 = vmatpush1.msra.mxu0 %v1784
        %2473 = vmatprep.subr.mxu0 %v1792
        %2474 = vmatpush1.msra.mxu0 %v1790
        %2475 = vmatprep.subr.mxu0 %v1798
        %2476 = vmatpush1.msra.mxu0 %v1796
        %2477 = vmatprep.subr.mxu0 %v1804
        %2478 = vmatpush1.msra.mxu0 %v1802
        %2479 = vmatprep.subr.mxu0 0.0
        %2480 = vmatpush1.msra.mxu0 0.0
        %2481 = vmatprep.subr.mxu0 0.0
        %2482 = vmatpush1.msra.mxu0 0.0
        %2483 = vmatprep.subr.mxu0 0.0
        %2484 = vmatpush1.msra.mxu0 0.0
        %2485 = vmatprep.subr.mxu0 0.0
        %2486 = vmatpush1.msra.mxu0 0.0
        %2487 = vmatprep.subr.mxu0 0.0
        %2488 = vmatpush1.msra.mxu0 0.0
        %2489 = vmatprep.subr.mxu0 0.0
        %2490 = vmatpush1.msra.mxu0 0.0
        %2491 = vmatprep.subr.mxu0 0.0
        %2492 = vmatpush1.msra.mxu0 0.0
        %2493 = vmatprep.subr.mxu0 0.0
        %2494 = vmatpush1.msra.mxu0 0.0
        %2495 = vmatprep.subr.mxu0 0.0
        %2496 = vmatpush1.msra.mxu0 0.0
        %2497 = vmatprep.subr.mxu0 0.0
        %2498 = vmatpush1.msra.mxu0 0.0
        %2499 = vmatprep.subr.mxu0 0.0
        %2500 = vmatpush1.msra.mxu0 0.0
        %2501 = vmatprep.subr.mxu0 0.0
        %2502 = vmatpush1.msra.mxu0 0.0
        %2503 = vmatprep.subr.mxu0 0.0
        %2504 = vmatpush1.msra.mxu0 0.0
        %2505 = vmatprep.subr.mxu0 0.0
        %2506 = vmatpush1.msra.mxu0 0.0
        %2507 = vmatprep.subr.mxu0 0.0
        %2508 = vmatpush1.msra.mxu0 0.0
        %2509 = vmatprep.subr.mxu0 0.0
        %2510 = vmatpush1.msra.mxu0 0.0
        %2511 = vmatprep.subr.mxu0 0.0
        %2512 = vmatpush1.msra.mxu0 0.0
        %2513 = vmatprep.subr.mxu0 0.0
        %2514 = vmatpush1.msra.mxu0 0.0
        %2515 = vmatprep.subr.mxu0 0.0
        %2516 = vmatpush1.msra.mxu0 0.0
        %2517 = vmatprep.subr.mxu0 0.0
        %2518 = vmatpush1.msra.mxu0 0.0
        %2519 = vmatprep.subr.mxu0 0.0
        %2520 = vmatpush1.msra.mxu0 0.0
        %2521 = vmatprep.subr.mxu0 0.0
        %2522 = vmatpush1.msra.mxu0 0.0
        %2523 = vmatprep.subr.mxu0 0.0
        %2524 = vmatpush1.msra.mxu0 0.0
        %2525 = vmatprep.subr.mxu0 0.0
        %2526 = vmatpush1.msra.mxu0 0.0
        %2527 = vmatprep.subr.mxu0 0.0
        %2528 = vmatpush1.msra.mxu0 0.0
        %2529 = vmatprep.subr.mxu0 0.0
        %2530 = vmatpush1.msra.mxu0 0.0
        %2531 = vmatprep.subr.mxu0 0.0
        %2532 = vmatpush1.msra.mxu0 0.0
        %2533 = vmatprep.subr.mxu0 0.0
        %2534 = vmatpush1.msra.mxu0 0.0
        %2535 = vmatprep.mubr.f32.mxu0 0.0
        %2536 = vmatmul.mubr.f32.gmra.mrb[0].mxu0 %v2193
        %v2537 = vpop.f32.mrb[0].mxu0
        %v2538 = vadd.f32 %v2170, %v2537
        %v2539 = vpop.f32.mrb[0].mxu0
        %v2540 = vadd.f32 %v2172, %v2539
        %2541 = vmatprep.mubr.f32.mxu0 0.0
        %2542 = vmatmul.mubr.f32.gmra.mrb[0].mxu0 %v2196
        %v2543 = vpop.f32.mrb[0].mxu0
        %v2544 = vadd.f32 %v2176, %v2543
        %v2545 = vpop.f32.mrb[0].mxu0
        %v2546 = vadd.f32 %v2178, %v2545
        %2547 = vmatprep.mubr.f32.mxu0 0.0
        %2548 = vmatmul.mubr.f32.gmra.mrb[0].mxu0 %v2199
        %v2549 = vpop.f32.mrb[0].mxu0
        %v2550 = vadd.f32 %v2182, %v2549
        %v2551 = vpop.f32.mrb[0].mxu0
        %v2552 = vadd.f32 %v2184, %v2551
        %2553 = vmatprep.mubr.f32.mxu0 0.0
        %2554 = vmatmul.mubr.f32.gmra.mrb[0].mxu0 %v2202
        %v2555 = vpop.f32.mrb[0].mxu0
        %v2556 = vadd.f32 %v2188, %v2555
        %v2557 = vpop.f32.mrb[0].mxu0
        %v2558 = vadd.f32 %v2190, %v2557
        %2559 = vdwg.mxu0
        %2560 = vset.pattern.permute.xlu0 3
        %2561 = vperm.xlu0 %2560, %v572
        %v2562 = vpop.permute.xlu0 %2561
        %2564 = vset.pattern.permute.xlu0 3
        %2565 = vperm.xlu0 %2564, %v573
        %v2566 = vpop.permute.xlu0 %2565
        %2568 = vset.pattern.permute.xlu0 3
        %2569 = vperm.xlu0 %2568, %v574
        %v2570 = vpop.permute.xlu0 %2569
        %2572 = vset.pattern.permute.xlu0 3
        %2573 = vperm.xlu0 %2572, %v575
        %v2574 = vpop.permute.xlu0 %2573
        %v2576 = vadd.f32 %v2271, %v2562
        %v2577 = vadd.f32 %v2273, %v2562
        %v2578 = vadd.f32 %v2360, %v2562
        %v2579 = vadd.f32 %v2362, %v2562
        %v2580 = vadd.f32 %v2449, %v2562
        %v2581 = vadd.f32 %v2451, %v2562
        %v2582 = vadd.f32 %v2538, %v2562
        %v2583 = vadd.f32 %v2540, %v2562
        %v2584 = vadd.f32 %v2277, %v2566
        %v2585 = vadd.f32 %v2279, %v2566
        %v2586 = vadd.f32 %v2366, %v2566
        %v2587 = vadd.f32 %v2368, %v2566
        %v2588 = vadd.f32 %v2455, %v2566
        %v2589 = vadd.f32 %v2457, %v2566
        %v2590 = vadd.f32 %v2544, %v2566
        %v2591 = vadd.f32 %v2546, %v2566
        %v2592 = vadd.f32 %v2283, %v2570
        %v2593 = vadd.f32 %v2285, %v2570
        %v2594 = vadd.f32 %v2372, %v2570
        %v2595 = vadd.f32 %v2374, %v2570
        %v2596 = vadd.f32 %v2461, %v2570
        %v2597 = vadd.f32 %v2463, %v2570
        %v2598 = vadd.f32 %v2550, %v2570
        %v2599 = vadd.f32 %v2552, %v2570
        %v2600 = vadd.f32 %v2289, %v2574
        %v2601 = vadd.f32 %v2291, %v2574
        %v2602 = vadd.f32 %v2378, %v2574
        %v2603 = vadd.f32 %v2380, %v2574
        %v2604 = vadd.f32 %v2467, %v2574
        %v2605 = vadd.f32 %v2469, %v2574
        %v2606 = vadd.f32 %v2556, %v2574
        %v2607 = vadd.f32 %v2558, %v2574
        %v2608 = vmax.f32 %v2576, 0.0
        %v2609 = vmax.f32 %v2577, 0.0
        %v2610 = vmax.f32 %v2578, 0.0
        %v2611 = vmax.f32 %v2579, 0.0
        %v2612 = vmax.f32 %v2580, 0.0
        %v2613 = vmax.f32 %v2581, 0.0
        %v2614 = vmax.f32 %v2582, 0.0
        %v2615 = vmax.f32 %v2583, 0.0
        %v2616 = vmax.f32 %v2584, 0.0
        %v2617 = vmax.f32 %v2585, 0.0
        %v2618 = vmax.f32 %v2586, 0.0
        %v2619 = vmax.f32 %v2587, 0.0
        %v2620 = vmax.f32 %v2588, 0.0
        %v2621 = vmax.f32 %v2589, 0.0
        %v2622 = vmax.f32 %v2590, 0.0
        %v2623 = vmax.f32 %v2591, 0.0
        %v2624 = vmax.f32 %v2592, 0.0
        %v2625 = vmax.f32 %v2593, 0.0
        %v2626 = vmax.f32 %v2594, 0.0
        %v2627 = vmax.f32 %v2595, 0.0
        %v2628 = vmax.f32 %v2596, 0.0
        %v2629 = vmax.f32 %v2597, 0.0
        %v2630 = vmax.f32 %v2598, 0.0
        %v2631 = vmax.f32 %v2599, 0.0
        %v2632 = vmax.f32 %v2600, 0.0
        %v2633 = vmax.f32 %v2601, 0.0
        %v2634 = vmax.f32 %v2602, 0.0
        %v2635 = vmax.f32 %v2603, 0.0
        %v2636 = vmax.f32 %v2604, 0.0
        %v2637 = vmax.f32 %v2605, 0.0
        %v2638 = vmax.f32 %v2606, 0.0
        %v2639 = vmax.f32 %v2607, 0.0
        %v2640 = vld [vmem:[%s509] sm:$0x7]
        %v2641 = vld [vmem:[%s518] sm:$0x7]
        %2643 = vset.pattern.permute.xlu0 0
        %2644 = vperm.xlu0 %2643, %v2641
        %v2645 = vpop.permute.xlu0 %2644
        %v2648 = vsel %vm596, %v2640, 0
        %2650 = vmatprep.subr.mxu0 %v2609
        %2651 = vmatpush1.msra.mxu0 %v2608
        %2652 = vmatprep.subr.mxu0 %v2617
        %2653 = vmatpush1.msra.mxu0 %v2616
        %2654 = vmatprep.subr.mxu0 %v2625
        %2655 = vmatpush1.msra.mxu0 %v2624
        %2656 = vmatprep.subr.mxu0 %v2633
        %2657 = vmatpush1.msra.mxu0 %v2632
        %2658 = vmatprep.subr.mxu0 0.0
        %2659 = vmatpush1.msra.mxu0 0.0
        %2660 = vmatprep.subr.mxu0 0.0
        %2661 = vmatpush1.msra.mxu0 0.0
        %2662 = vmatprep.subr.mxu0 0.0
        %2663 = vmatpush1.msra.mxu0 0.0
        %2664 = vmatprep.subr.mxu0 0.0
        %2665 = vmatpush1.msra.mxu0 0.0
        %2666 = vmatprep.subr.mxu0 0.0
        %2667 = vmatpush1.msra.mxu0 0.0
        %2668 = vmatprep.subr.mxu0 0.0
        %2669 = vmatpush1.msra.mxu0 0.0
        %2670 = vmatprep.subr.mxu0 0.0
        %2671 = vmatpush1.msra.mxu0 0.0
        %2672 = vmatprep.subr.mxu0 0.0
        %2673 = vmatpush1.msra.mxu0 0.0
        %2674 = vmatprep.subr.mxu0 0.0
        %2675 = vmatpush1.msra.mxu0 0.0
        %2676 = vmatprep.subr.mxu0 0.0
        %2677 = vmatpush1.msra.mxu0 0.0
        %2678 = vmatprep.subr.mxu0 0.0
        %2679 = vmatpush1.msra.mxu0 0.0
        %2680 = vmatprep.subr.mxu0 0.0
        %2681 = vmatpush1.msra.mxu0 0.0
        %2682 = vmatprep.subr.mxu0 0.0
        %2683 = vmatpush1.msra.mxu0 0.0
        %2684 = vmatprep.subr.mxu0 0.0
        %2685 = vmatpush1.msra.mxu0 0.0
        %2686 = vmatprep.subr.mxu0 0.0
        %2687 = vmatpush1.msra.mxu0 0.0
        %2688 = vmatprep.subr.mxu0 0.0
        %2689 = vmatpush1.msra.mxu0 0.0
        %2690 = vmatprep.subr.mxu0 0.0
        %2691 = vmatpush1.msra.mxu0 0.0
        %2692 = vmatprep.subr.mxu0 0.0
        %2693 = vmatpush1.msra.mxu0 0.0
        %2694 = vmatprep.subr.mxu0 0.0
        %2695 = vmatpush1.msra.mxu0 0.0
        %2696 = vmatprep.subr.mxu0 0.0
        %2697 = vmatpush1.msra.mxu0 0.0
        %2698 = vmatprep.subr.mxu0 0.0
        %2699 = vmatpush1.msra.mxu0 0.0
        %2700 = vmatprep.subr.mxu0 0.0
        %2701 = vmatpush1.msra.mxu0 0.0
        %2702 = vmatprep.subr.mxu0 0.0
        %2703 = vmatpush1.msra.mxu0 0.0
        %2704 = vmatprep.subr.mxu0 0.0
        %2705 = vmatpush1.msra.mxu0 0.0
        %2706 = vmatprep.subr.mxu0 0.0
        %2707 = vmatpush1.msra.mxu0 0.0
        %2708 = vmatprep.subr.mxu0 0.0
        %2709 = vmatpush1.msra.mxu0 0.0
        %2710 = vmatprep.subr.mxu0 0.0
        %2711 = vmatpush1.msra.mxu0 0.0
        %2712 = vmatprep.subr.mxu0 0.0
        %2713 = vmatpush1.msra.mxu0 0.0
        %2714 = vmatprep.mubr.f32.mxu0 0.0
        %2715 = vmatmul.mubr.f32.gmra.mrb[0].mxu0 %v2648
        %v2716 = vpop.f32.mrb[0].mxu0
        %v2717 = vadd.f32 %v2645, %v2716
        %v2718 = vpop.f32.mrb[0].mxu0
        %v2719 = vadd.f32 %v2645, %v2718
        %2720 = vdwg.mxu0
        %2721 = vmatprep.subr.mxu0 %v2611
        %2722 = vmatpush1.msra.mxu0 %v2610
        %2723 = vmatprep.subr.mxu0 %v2619
        %2724 = vmatpush1.msra.mxu0 %v2618
        %2725 = vmatprep.subr.mxu0 %v2627
        %2726 = vmatpush1.msra.mxu0 %v2626
        %2727 = vmatprep.subr.mxu0 %v2635
        %2728 = vmatpush1.msra.mxu0 %v2634
        %2729 = vmatprep.subr.mxu0 0.0
        %2730 = vmatpush1.msra.mxu0 0.0
        %2731 = vmatprep.subr.mxu0 0.0
        %2732 = vmatpush1.msra.mxu0 0.0
        %2733 = vmatprep.subr.mxu0 0.0
        %2734 = vmatpush1.msra.mxu0 0.0
        %2735 = vmatprep.subr.mxu0 0.0
        %2736 = vmatpush1.msra.mxu0 0.0
        %2737 = vmatprep.subr.mxu0 0.0
        %2738 = vmatpush1.msra.mxu0 0.0
        %2739 = vmatprep.subr.mxu0 0.0
        %2740 = vmatpush1.msra.mxu0 0.0
        %2741 = vmatprep.subr.mxu0 0.0
        %2742 = vmatpush1.msra.mxu0 0.0
        %2743 = vmatprep.subr.mxu0 0.0
        %2744 = vmatpush1.msra.mxu0 0.0
        %2745 = vmatprep.subr.mxu0 0.0
        %2746 = vmatpush1.msra.mxu0 0.0
        %2747 = vmatprep.subr.mxu0 0.0
        %2748 = vmatpush1.msra.mxu0 0.0
        %2749 = vmatprep.subr.mxu0 0.0
        %2750 = vmatpush1.msra.mxu0 0.0
        %2751 = vmatprep.subr.mxu0 0.0
        %2752 = vmatpush1.msra.mxu0 0.0
        %2753 = vmatprep.subr.mxu0 0.0
        %2754 = vmatpush1.msra.mxu0 0.0
        %2755 = vmatprep.subr.mxu0 0.0
        %2756 = vmatpush1.msra.mxu0 0.0
        %2757 = vmatprep.subr.mxu0 0.0
        %2758 = vmatpush1.msra.mxu0 0.0
        %2759 = vmatprep.subr.mxu0 0.0
        %2760 = vmatpush1.msra.mxu0 0.0
        %2761 = vmatprep.subr.mxu0 0.0
        %2762 = vmatpush1.msra.mxu0 0.0
        %2763 = vmatprep.subr.mxu0 0.0
        %2764 = vmatpush1.msra.mxu0 0.0
        %2765 = vmatprep.subr.mxu0 0.0
        %2766 = vmatpush1.msra.mxu0 0.0
        %2767 = vmatprep.subr.mxu0 0.0
        %2768 = vmatpush1.msra.mxu0 0.0
        %2769 = vmatprep.subr.mxu0 0.0
        %2770 = vmatpush1.msra.mxu0 0.0
        %2771 = vmatprep.subr.mxu0 0.0
        %2772 = vmatpush1.msra.mxu0 0.0
        %2773 = vmatprep.subr.mxu0 0.0
        %2774 = vmatpush1.msra.mxu0 0.0
        %2775 = vmatprep.subr.mxu0 0.0
        %2776 = vmatpush1.msra.mxu0 0.0
        %2777 = vmatprep.subr.mxu0 0.0
        %2778 = vmatpush1.msra.mxu0 0.0
        %2779 = vmatprep.subr.mxu0 0.0
        %2780 = vmatpush1.msra.mxu0 0.0
        %2781 = vmatprep.subr.mxu0 0.0
        %2782 = vmatpush1.msra.mxu0 0.0
        %2783 = vmatprep.subr.mxu0 0.0
        %2784 = vmatpush1.msra.mxu0 0.0
        %2785 = vmatprep.mubr.f32.mxu0 0.0
        %2786 = vmatmul.mubr.f32.gmra.mrb[0].mxu0 %v2648
        %v2787 = vpop.f32.mrb[0].mxu0
        %v2788 = vadd.f32 %v2645, %v2787
        %v2789 = vpop.f32.mrb[0].mxu0
        %v2790 = vadd.f32 %v2645, %v2789
        %2791 = vdwg.mxu0
        %2792 = vmatprep.subr.mxu0 %v2613
        %2793 = vmatpush1.msra.mxu0 %v2612
        %2794 = vmatprep.subr.mxu0 %v2621
        %2795 = vmatpush1.msra.mxu0 %v2620
        %2796 = vmatprep.subr.mxu0 %v2629
        %2797 = vmatpush1.msra.mxu0 %v2628
        %2798 = vmatprep.subr.mxu0 %v2637
        %2799 = vmatpush1.msra.mxu0 %v2636
        %2800 = vmatprep.subr.mxu0 0.0
        %2801 = vmatpush1.msra.mxu0 0.0
        %2802 = vmatprep.subr.mxu0 0.0
        %2803 = vmatpush1.msra.mxu0 0.0
        %2804 = vmatprep.subr.mxu0 0.0
        %2805 = vmatpush1.msra.mxu0 0.0
        %2806 = vmatprep.subr.mxu0 0.0
        %2807 = vmatpush1.msra.mxu0 0.0
        %2808 = vmatprep.subr.mxu0 0.0
        %2809 = vmatpush1.msra.mxu0 0.0
        %2810 = vmatprep.subr.mxu0 0.0
        %2811 = vmatpush1.msra.mxu0 0.0
        %2812 = vmatprep.subr.mxu0 0.0
        %2813 = vmatpush1.msra.mxu0 0.0
        %2814 = vmatprep.subr.mxu0 0.0
        %2815 = vmatpush1.msra.mxu0 0.0
        %2816 = vmatprep.subr.mxu0 0.0
        %2817 = vmatpush1.msra.mxu0 0.0
        %2818 = vmatprep.subr.mxu0 0.0
        %2819 = vmatpush1.msra.mxu0 0.0
        %2820 = vmatprep.subr.mxu0 0.0
        %2821 = vmatpush1.msra.mxu0 0.0
        %2822 = vmatprep.subr.mxu0 0.0
        %2823 = vmatpush1.msra.mxu0 0.0
        %2824 = vmatprep.subr.mxu0 0.0
        %2825 = vmatpush1.msra.mxu0 0.0
        %2826 = vmatprep.subr.mxu0 0.0
        %2827 = vmatpush1.msra.mxu0 0.0
        %2828 = vmatprep.subr.mxu0 0.0
        %2829 = vmatpush1.msra.mxu0 0.0
        %2830 = vmatprep.subr.mxu0 0.0
        %2831 = vmatpush1.msra.mxu0 0.0
        %2832 = vmatprep.subr.mxu0 0.0
        %2833 = vmatpush1.msra.mxu0 0.0
        %2834 = vmatprep.subr.mxu0 0.0
        %2835 = vmatpush1.msra.mxu0 0.0
        %2836 = vmatprep.subr.mxu0 0.0
        %2837 = vmatpush1.msra.mxu0 0.0
        %2838 = vmatprep.subr.mxu0 0.0
        %2839 = vmatpush1.msra.mxu0 0.0
        %2840 = vmatprep.subr.mxu0 0.0
        %2841 = vmatpush1.msra.mxu0 0.0
        %2842 = vmatprep.subr.mxu0 0.0
        %2843 = vmatpush1.msra.mxu0 0.0
        %2844 = vmatprep.subr.mxu0 0.0
        %2845 = vmatpush1.msra.mxu0 0.0
        %2846 = vmatprep.subr.mxu0 0.0
        %2847 = vmatpush1.msra.mxu0 0.0
        %2848 = vmatprep.subr.mxu0 0.0
        %2849 = vmatpush1.msra.mxu0 0.0
        %2850 = vmatprep.subr.mxu0 0.0
        %2851 = vmatpush1.msra.mxu0 0.0
        %2852 = vmatprep.subr.mxu0 0.0
        %2853 = vmatpush1.msra.mxu0 0.0
        %2854 = vmatprep.subr.mxu0 0.0
        %2855 = vmatpush1.msra.mxu0 0.0
        %2856 = vmatprep.mubr.f32.mxu0 0.0
        %2857 = vmatmul.mubr.f32.gmra.mrb[0].mxu0 %v2648
        %v2858 = vpop.f32.mrb[0].mxu0
        %v2859 = vadd.f32 %v2645, %v2858
        %v2860 = vpop.f32.mrb[0].mxu0
        %v2861 = vadd.f32 %v2645, %v2860
        %2862 = vdwg.mxu0
        %2863 = vmatprep.subr.mxu0 %v2615
        %2864 = vmatpush1.msra.mxu0 %v2614
        %2865 = vmatprep.subr.mxu0 %v2623
        %2866 = vmatpush1.msra.mxu0 %v2622
        %2867 = vmatprep.subr.mxu0 %v2631
        %2868 = vmatpush1.msra.mxu0 %v2630
        %2869 = vmatprep.subr.mxu0 %v2639
        %2870 = vmatpush1.msra.mxu0 %v2638
        %2871 = vmatprep.subr.mxu0 0.0
        %2872 = vmatpush1.msra.mxu0 0.0
        %2873 = vmatprep.subr.mxu0 0.0
        %2874 = vmatpush1.msra.mxu0 0.0
        %2875 = vmatprep.subr.mxu0 0.0
        %2876 = vmatpush1.msra.mxu0 0.0
        %2877 = vmatprep.subr.mxu0 0.0
        %2878 = vmatpush1.msra.mxu0 0.0
        %2879 = vmatprep.subr.mxu0 0.0
        %2880 = vmatpush1.msra.mxu0 0.0
        %2881 = vmatprep.subr.mxu0 0.0
        %2882 = vmatpush1.msra.mxu0 0.0
        %2883 = vmatprep.subr.mxu0 0.0
        %2884 = vmatpush1.msra.mxu0 0.0
        %2885 = vmatprep.subr.mxu0 0.0
        %2886 = vmatpush1.msra.mxu0 0.0
        %2887 = vmatprep.subr.mxu0 0.0
        %2888 = vmatpush1.msra.mxu0 0.0
        %2889 = vmatprep.subr.mxu0 0.0
        %2890 = vmatpush1.msra.mxu0 0.0
        %2891 = vmatprep.subr.mxu0 0.0
        %2892 = vmatpush1.msra.mxu0 0.0
        %2893 = vmatprep.subr.mxu0 0.0
        %2894 = vmatpush1.msra.mxu0 0.0
        %2895 = vmatprep.subr.mxu0 0.0
        %2896 = vmatpush1.msra.mxu0 0.0
        %2897 = vmatprep.subr.mxu0 0.0
        %2898 = vmatpush1.msra.mxu0 0.0
        %2899 = vmatprep.subr.mxu0 0.0
        %2900 = vmatpush1.msra.mxu0 0.0
        %2901 = vmatprep.subr.mxu0 0.0
        %2902 = vmatpush1.msra.mxu0 0.0
        %2903 = vmatprep.subr.mxu0 0.0
        %2904 = vmatpush1.msra.mxu0 0.0
        %2905 = vmatprep.subr.mxu0 0.0
        %2906 = vmatpush1.msra.mxu0 0.0
        %2907 = vmatprep.subr.mxu0 0.0
        %2908 = vmatpush1.msra.mxu0 0.0
        %2909 = vmatprep.subr.mxu0 0.0
        %2910 = vmatpush1.msra.mxu0 0.0
        %2911 = vmatprep.subr.mxu0 0.0
        %2912 = vmatpush1.msra.mxu0 0.0
        %2913 = vmatprep.subr.mxu0 0.0
        %2914 = vmatpush1.msra.mxu0 0.0
        %2915 = vmatprep.subr.mxu0 0.0
        %2916 = vmatpush1.msra.mxu0 0.0
        %2917 = vmatprep.subr.mxu0 0.0
        %2918 = vmatpush1.msra.mxu0 0.0
        %2919 = vmatprep.subr.mxu0 0.0
        %2920 = vmatpush1.msra.mxu0 0.0
        %2921 = vmatprep.subr.mxu0 0.0
        %2922 = vmatpush1.msra.mxu0 0.0
        %2923 = vmatprep.subr.mxu0 0.0
        %2924 = vmatpush1.msra.mxu0 0.0
        %2925 = vmatprep.subr.mxu0 0.0
        %2926 = vmatpush1.msra.mxu0 0.0
        %2927 = vmatprep.mubr.f32.mxu0 0.0
        %2928 = vmatmul.mubr.f32.gmra.mrb[0].mxu0 %v2648
        %v2929 = vpop.f32.mrb[0].mxu0
        %v2930 = vadd.f32 %v2645, %v2929
        %v2931 = vpop.f32.mrb[0].mxu0
        %v2932 = vadd.f32 %v2645, %v2931
        %2933 = vdwg.mxu0
        %v2934 = vxor.u32 %v2717, 2147483648
        %v2935 = vxor.u32 %v2719, 2147483648
        %v2936 = vxor.u32 %v2788, 2147483648
        %v2937 = vxor.u32 %v2790, 2147483648
        %v2938 = vxor.u32 %v2859, 2147483648
        %v2939 = vxor.u32 %v2861, 2147483648
        %v2940 = vxor.u32 %v2930, 2147483648
        %v2941 = vxor.u32 %v2932, 2147483648
        %v2942 = vmul.f32 %v2934, 1.442695
        %v2943 = vpow.pop %v2942
        %v2944 = vmul.f32 %v2935, 1.442695
        %v2945 = vpow.pop %v2944
        %v2946 = vmul.f32 %v2936, 1.442695
        %v2947 = vpow.pop %v2946
        %v2948 = vmul.f32 %v2937, 1.442695
        %v2949 = vpow.pop %v2948
        %v2950 = vmul.f32 %v2938, 1.442695
        %v2951 = vpow.pop %v2950
        %v2952 = vmul.f32 %v2939, 1.442695
        %v2953 = vpow.pop %v2952
        %v2954 = vmul.f32 %v2940, 1.442695
        %v2955 = vpow.pop %v2954
        %v2956 = vmul.f32 %v2941, 1.442695
        %v2957 = vpow.pop %v2956
        %v2958 = vadd.f32 %v2943, 1.0
        %v2959 = vadd.f32 %v2945, 1.0
        %v2960 = vadd.f32 %v2947, 1.0
        %v2961 = vadd.f32 %v2949, 1.0
        %v2962 = vadd.f32 %v2951, 1.0
        %v2963 = vadd.f32 %v2953, 1.0
        %v2964 = vadd.f32 %v2955, 1.0
        %v2965 = vadd.f32 %v2957, 1.0
        %v2966 = vrcp.pop %v2958
        %v2967 = vmul.f32 1.0, %v2966
        %v2968 = vrcp.pop %v2959
        %v2969 = vmul.f32 1.0, %v2968
        %v2970 = vrcp.pop %v2960
        %v2971 = vmul.f32 1.0, %v2970
        %v2972 = vrcp.pop %v2961
        %v2973 = vmul.f32 1.0, %v2972
        %v2974 = vrcp.pop %v2962
        %v2975 = vmul.f32 1.0, %v2974
        %v2976 = vrcp.pop %v2963
        %v2977 = vmul.f32 1.0, %v2976
        %v2978 = vrcp.pop %v2964
        %v2979 = vmul.f32 1.0, %v2978
        %v2980 = vrcp.pop %v2965
        %v2981 = vmul.f32 1.0, %v2980
        %v2990 = vcombine.low %v2967, %v2969
        %v2991 = vcombine.low %v2971, %v2973
        %v2992 = vcombine.low %v2975, %v2977
        %v2993 = vcombine.low %v2979, %v2981
        %2998 = vst [vmem:[%s493] sm:$0x77] %v2990
        %2999 = vst [vmem:[%s493 + $0x8] sm:$0x77] %v2991
        %3000 = vst [vmem:[%s493 + $0x10] sm:$0x77] %v2992
        %3001 = vst [vmem:[%s493 + $0x18] sm:$0x77] %v2993
        %v3010 = vcombine.low %v1806, %v1807
        %v3011 = vcombine.low %v1808, %v1809
        %v3012 = vcombine.low %v1810, %v1811
        %v3013 = vcombine.low %v1812, %v1813
        %v3015 = vunpack.c.l.s4 1966171168
        %v3016 = vunpack.c.0.s8 %v3015
        %v3017 = vlaneseq
        %v3018 = vshrl.u32 %v3017, 7
        %v3019 = vsub.s32 %v3016, %v3018
        %v3020 = vrot.slane %v3010, %v3019
        %v3022 = vunpack.c.l.s4 1966171168
        %v3023 = vunpack.c.0.s8 %v3022
        %v3024 = vlaneseq
        %v3025 = vshrl.u32 %v3024, 7
        %v3026 = vsub.s32 %v3023, %v3025
        %v3027 = vrot.slane %v3011, %v3026
        %v3029 = vunpack.c.l.s4 1966171168
        %v3030 = vunpack.c.0.s8 %v3029
        %v3031 = vlaneseq
        %v3032 = vshrl.u32 %v3031, 7
        %v3033 = vsub.s32 %v3030, %v3032
        %v3034 = vrot.slane %v3012, %v3033
        %v3036 = vunpack.c.l.s4 1966171168
        %v3037 = vunpack.c.0.s8 %v3036
        %v3038 = vlaneseq
        %v3039 = vshrl.u32 %v3038, 7
        %v3040 = vsub.s32 %v3037, %v3039
        %v3041 = vrot.slane %v3013, %v3040
        %v3042 = vcombine.low %v3020, %v3027
        %v3043 = vcombine.low %v3034, %v3041
        %v3045 = vunpack.c.l.s4 1966171168
        %v3046 = vunpack.c.0.s8 %v3045
        %v3047 = vlaneseq
        %v3048 = vshrl.u32 %v3047, 7
        %v3049 = vsub.s32 %v3046, %v3048
        %v3050 = vrot.slane %v3042, %v3049
        %v3052 = vunpack.c.l.s4 1966171168
        %v3053 = vunpack.c.0.s8 %v3052
        %v3054 = vlaneseq
        %v3055 = vshrl.u32 %v3054, 7
        %v3056 = vsub.s32 %v3053, %v3055
        %v3057 = vrot.slane %v3043, %v3056
        %v3058 = vcombine.low %v3050, %v3057
        %s3060 = scalar_lea.vmem %s493, 3 [#allocation8]
        %3061 = vst [vmem:[%s3060] ss:$4 sm:$0xff] %v3058
        %s3062 = sand.u32 %s262, 1
        %s3063 = scalar_lea.sflag [#allocation4], %s3062
        %s3064 = sand.u32 %s262, 1
        %s3065 = smul.addr %s3064, 32
        %s3066 = scalar_lea.vmem [#allocation8], %s3065
        // Predicated region
        $region65: #{tpu_custom_call.1} parent=51 // pred_check
          %p3067 = pneg %p272
        $region66: #{tpu_custom_call.1} parent=51 // pred_check_branch
          %3069 = sbr.rel (%p3067) target = $region68
        $region67: #{tpu_custom_call.1} parent=51 // pred_region
          %s3070 = smul.u32 8, %s33
          %s3072 = ssub.s32 512, 512
          %3073 = vsyncadd %s3063, %s3072
          %s3074 = smul.addr %s32, 16
          %s3075 = sadd.s32 %s3070, %s3074
          %s3076 = smul.addr %s3075, 64
          %s3077 = scalar_lea.hbm %s8, %s3076
          %s3079 = sshll.u32 %s3066, 4
          %s3080 = int_to_ptr.vmem [resolvable:$true] %s3079
          %3082 = dma.vmem_to_hbm [thread:$0]  %s3080, 512, %s3077, %s3063
        $region68: #{tpu_custom_call.1} parent=51 // pred_fallthru
          _
      $region52: #{tpu_custom_call.1} parent=5 // pred_fallthru
        _
      %p3083 = scmp.le.s32.totalorder 2, %s23
      // Predicated region
      $region69: #{tpu_custom_call.1} parent=5 // pred_check
        %p3084 = pneg %p3083
      $region70: #{tpu_custom_call.1} parent=5 // pred_check_branch
        %3086 = sbr.rel (%p3084) target = $region72
      $region71: #{tpu_custom_call.1} parent=5 // pred_region
        %s3087 = ssub.s32 %s23, 2
        // Predicated region
        $region73: #{tpu_custom_call.1} parent=71 // pred_check
          %p3088 = pneg %p278
        $region74: #{tpu_custom_call.1} parent=71 // pred_check_branch
          %3090 = sbr.rel (%p3088) target = $region76
        $region75: #{tpu_custom_call.1} parent=71 // pred_region
          %s3091 = sand.u32 %s263, 1
          %s3092 = scalar_lea.sflag [#allocation4], %s3091
          %s3093 = sand.u32 %s263, 1
          %s3094 = smul.addr %s3093, 32
          %s3095 = scalar_lea.vmem [#allocation8], %s3094
          %3096 = dma.done %s3092, 512
        $region76: #{tpu_custom_call.1} parent=71 // pred_fallthru
          _
      $region72: #{tpu_custom_call.1} parent=5 // pred_fallthru
        _
    $region6: #{tpu_custom_call.1} parent=1 // loop_footer
      %s27 = sadd.s32 1, %s23
    $region7: #{tpu_custom_call.1} parent=1 // loop_footer_branch
      %22 = sbr.rel target = $region3
    $region8: #{tpu_custom_call.1} parent=1 // loop_exit
      _
    %3097 = vsyncpa [#allocation3], 1
    %s3098 = scalar_lea.sflag [#allocation3], 1
    %3099 = vsyncpa %s3098, 1
    %3100 = vsyncpa [#allocation6], 1
    %s3101 = scalar_lea.sflag [#allocation6], 1
    %3102 = vsyncpa %s3101, 1
    %3103 = vsyncpa [#allocation4], 1
    %s3104 = scalar_lea.sflag [#allocation4], 1
    %3105 = vsyncpa %s3104, 1

</llo_original>
